<compile_context>
chip_gen: v5e
topology: v5e:2x2
jax: 0.10.0
libtpu: 0.0.40
codegen_flags: <defaults>
</compile_context>

<pallas_src>
import functools

import jax
import jax.numpy as jnp
from jax import lax
from jax.experimental import pallas as pl
from jax.experimental.pallas import tpu as pltpu


# ----------------------------- Pallas kernel --------------------------------
def _lstm_kernel(gin_ref,          # (T, B, 4H)  precomputed x @ Wih1 + b1 (gates [i,f,o,g])
                 whh1_ref,         # (H, 4H)     layer-1 recurrent weight
                 w2_ref,           # (2H, 4H)    stacked [Wih2; Whh2]
                 b2_ref,           # (1, 4H)     b_ih2 + b_hh2
                 wfc_ref,          # (H, OUT_PAD)
                 bfc_ref,          # (1, OUT_PAD)
                 out_ref,          # (B, OUT_PAD)
                 *, hidden_size, seq_len, batch, unroll):
    H = hidden_size

    # Hoist weight loads / bias broadcast out of the recurrent loop
    # (JAX does not CSE broadcast_in_dim, so do it once here).
    whh1 = whh1_ref[...]
    w2 = w2_ref[...]
    b2 = jnp.broadcast_to(b2_ref[...], (batch, 4 * H))

    def gate_math(gates, c_prev):
        # gate order [i, f, o, g]: one contiguous sigmoid slab + one tanh slab
        sg = jax.nn.sigmoid(gates[:, :3 * H])
        i_g = sg[:, 0 * H:1 * H]
        f_g = sg[:, 1 * H:2 * H]
        o_g = sg[:, 2 * H:3 * H]
        g_g = jnp.tanh(gates[:, 3 * H:])
        c_new = f_g * c_prev + i_g * g_g
        h_new = o_g * jnp.tanh(c_new)
        return h_new, c_new

    def step(t, carry):
        h1, c1, h2, c2 = carry
        # layer 1: input projection already hoisted; only the recurrent matmul
        g1 = gin_ref[t] + jnp.dot(h1, whh1, preferred_element_type=jnp.float32)
        h1, c1 = gate_math(g1, c1)
        # layer 2: single fused matmul over concat([h1, h2]) @ [Wih2; Whh2]
        hcat = jnp.concatenate([h1, h2], axis=-1)            # (B, 2H)
        g2 = jnp.dot(hcat, w2, preferred_element_type=jnp.float32) + b2
        h2, c2 = gate_math(g2, c2)
        return (h1, c1, h2, c2)

    zeros = jnp.zeros((batch, H), jnp.float32)
    _, _, h2, _ = lax.fori_loop(0, seq_len, step, (zeros, zeros, zeros, zeros),
                                unroll=unroll)

    # dropout (eval mode) = identity, then FC head (lane-padded to 128)
    out_ref[...] = (jnp.dot(h2, wfc_ref[...], preferred_element_type=jnp.float32)
                    + bfc_ref[...])


# ------------------------------ wrapper --------------------------------------
def _permute_gates(w):
    """Reorder gate columns from PyTorch [i, f, g, o] to [i, f, o, g]."""
    i, f, g, o = jnp.split(w, 4, axis=-1)
    return jnp.concatenate([i, f, o, g], axis=-1)


def lstm_network_forward(x, params, *, hidden_size, output_size):
    """x: (B, T, I) or (B, I) float32; returns (B, output_size)."""
    if x.ndim == 2:                       # matches x.unsqueeze(1)
        x = x[:, None, :]
    B, T, I = x.shape
    H = hidden_size
    OUT_PAD = 128                         # lane-pad the tiny FC output

    wih1, whh1, b1, wih2, whh2, b2, wfc, bfc = params

    # one-time gate permutation to [i, f, o, g]
    wih1_p, whh1_p, b1_p = map(_permute_gates, (wih1, whh1, b1))
    wih2_p, whh2_p, b2_p = map(_permute_gates, (wih2, whh2, b2))

    # Hoisted layer-1 input projection: one big MXU-efficient matmul over T*B rows.
    x_tm = jnp.transpose(x, (1, 0, 2)).astype(jnp.float32)          # (T, B, I)
    gin = (x_tm.reshape(T * B, I) @ wih1_p + b1_p).reshape(T, B, 4 * H)

    # Fuse layer-2's two matmuls: stack [Wih2; Whh2] -> (2H, 4H).
    w2 = jnp.concatenate([wih2_p, whh2_p], axis=0)

    # pad FC weight/bias out to OUT_PAD lanes (unmasked, lane-dense output store)
    wfc_pad = jnp.zeros((H, OUT_PAD), jnp.float32).at[:, :output_size].set(wfc)
    bfc_pad = jnp.zeros((1, OUT_PAD), jnp.float32).at[:, :output_size].set(bfc)

    operands = (gin, whh1_p, w2, b2_p, wfc_pad, bfc_pad)

    # VMEM budget: everything is resident once (no grid, no double-buffering).
    # 2x margin for compiler scratch, clamped to stay under v7x's 64 MiB VMEM
    # while still covering the H=512 configuration on v5e/v6e.
    in_bytes = sum(int(a.size) * a.dtype.itemsize for a in operands)
    out_bytes = B * OUT_PAD * 4
    vmem_limit = int(min(max(2 * (in_bytes + out_bytes) + (4 << 20), 32 << 20),
                         56 << 20))

    # Fully unroll short recurrences (LLO scheduler visibility); cap the unroll
    # factor for long sequences to keep compile time / code size bounded.
    unroll = True if T <= 32 else 8

    kernel = functools.partial(_lstm_kernel, hidden_size=H, seq_len=T,
                               batch=B, unroll=unroll)
    vmem_spec = pl.BlockSpec(memory_space=pltpu.MemorySpace.VMEM)

    out = pl.pallas_call(
        kernel,
        out_shape=jax.ShapeDtypeStruct((B, OUT_PAD), jnp.float32),
        in_specs=[vmem_spec] * len(operands),
        out_specs=vmem_spec,
        compiler_params=pltpu.CompilerParams(vmem_limit_bytes=vmem_limit),
    )(*operands)

    return out[:, :output_size]


# ------------------------- deterministic params ------------------------------
def init_params(key, input_size, hidden_size, output_size):
    H = hidden_size
    k = 1.0 / jnp.sqrt(jnp.float32(H))
    keys = jax.random.split(key, 10)
    u = lambda kk, shape: jax.random.uniform(kk, shape, jnp.float32, -k, k)
    # stored already transposed for x @ W  (PyTorch stores (4H, in))
    wih1 = u(keys[0], (input_size, 4 * H))
    whh1 = u(keys[1], (H, 4 * H))
    b1 = u(keys[2], (1, 4 * H)) + u(keys[3], (1, 4 * H))      # b_ih + b_hh
    wih2 = u(keys[4], (H, 4 * H))
    whh2 = u(keys[5], (H, 4 * H))
    b2 = u(keys[6], (1, 4 * H)) + u(keys[7], (1, 4 * H))
    kf = 1.0 / jnp.sqrt(jnp.float32(H))
    wfc = jax.random.uniform(keys[8], (H, output_size), jnp.float32, -kf, kf)
    bfc = jax.random.uniform(keys[9], (1, output_size), jnp.float32, -kf, kf)
    return (wih1, whh1, b1, wih2, whh2, b2, wfc, bfc)


# --------------------------- pure-JAX reference -------------------------------
def reference_forward(x, params, *, hidden_size, output_size):
    if x.ndim == 2:
        x = x[:, None, :]
    B, T, I = x.shape
    H = hidden_size
    wih1, whh1, b1, wih2, whh2, b2, wfc, bfc = params

    def cell(carry, inp, wih, whh, b):
        h, c = carry
        g = inp @ wih + h @ whh + b
        i_g = jax.nn.sigmoid(g[:, 0 * H:1 * H])
        f_g = jax.nn.sigmoid(g[:, 1 * H:2 * H])
        g_g = jnp.tanh(g[:, 2 * H:3 * H])
        o_g = jax.nn.sigmoid(g[:, 3 * H:4 * H])
        c = f_g * c + i_g * g_g
        h = o_g * jnp.tanh(c)
        return (h, c), h

    def step(carry, x_t):
        (h1, c1, h2, c2) = carry
        (h1, c1), y1 = cell((h1, c1), x_t, wih1, whh1, b1)
        (h2, c2), y2 = cell((h2, c2), y1, wih2, whh2, b2)
        return (h1, c1, h2, c2), y2

    zeros = jnp.zeros((B, H), jnp.float32)
    (_, _, h2, _), _ = lax.scan(step, (zeros, zeros, zeros, zeros),
                                jnp.transpose(x, (1, 0, 2)))
    return h2 @ wfc + bfc


# ---------------------------------- main --------------------------------------
if __name__ == "__main__":
    INPUT_SIZE = 2
    HIDDEN_SIZE = 128     # small, lane-aligned stand-in for the default 512
    OUTPUT_SIZE = 3
    B, T = 2, 8

    key = jax.random.PRNGKey(0)
    kx, kp = jax.random.split(key)
    x = jax.random.normal(kx, (B, T, INPUT_SIZE), jnp.float32)
    params = init_params(kp, INPUT_SIZE, HIDDEN_SIZE, OUTPUT_SIZE)

    out = lstm_network_forward(x, params,
                               hidden_size=HIDDEN_SIZE, output_size=OUTPUT_SIZE)
    out = jax.block_until_ready(out)

    ref = reference_forward(x, params,
                            hidden_size=HIDDEN_SIZE, output_size=OUTPUT_SIZE)
    assert out.shape == (B, OUTPUT_SIZE), out.shape
    assert jnp.allclose(out, ref, atol=2e-3, rtol=2e-3), (out, ref)

    print("KERNEL_OK")
</pallas_src>

<mosaic_0001>
module attributes {stable_mosaic.version = 11 : i64} {
  func.func @_lstm_kernel(%arg0: memref<8x2x512xf32, #tpu.memory_space<vmem>>, %arg1: memref<128x512xf32, #tpu.memory_space<vmem>>, %arg2: memref<256x512xf32, #tpu.memory_space<vmem>>, %arg3: memref<1x512xf32, #tpu.memory_space<vmem>>, %arg4: memref<128x128xf32, #tpu.memory_space<vmem>>, %arg5: memref<1x128xf32, #tpu.memory_space<vmem>>, %arg6: memref<2x128xf32, #tpu.memory_space<vmem>>) attributes {dimension_semantics = [], scalar_prefetch = 0 : i64, scratch_operands = 0 : i64, tpu.core_type = #tpu.core_type<tc>} {
    %c0 = arith.constant 0 : index
    %c0_0 = arith.constant 0 : index
    %0 = vector.load %arg1[%c0, %c0_0] : memref<128x512xf32, #tpu.memory_space<vmem>>, vector<128x512xf32>
    %c0_1 = arith.constant 0 : index
    %c0_2 = arith.constant 0 : index
    %1 = vector.load %arg2[%c0_1, %c0_2] : memref<256x512xf32, #tpu.memory_space<vmem>>, vector<256x512xf32>
    %c0_3 = arith.constant 0 : index
    %c0_4 = arith.constant 0 : index
    %2 = vector.load %arg3[%c0_3, %c0_4] : memref<1x512xf32, #tpu.memory_space<vmem>>, vector<1x512xf32>
    %3 = vector.shape_cast %2 : vector<1x512xf32> to vector<1x512xf32>
    %4 = vector.broadcast %3 : vector<1x512xf32> to vector<2x512xf32>
    %cst = arith.constant 0.000000e+00 : f32
    %5 = vector.broadcast %cst : f32 to vector<2x128xf32>
    %c0_i32 = arith.constant 0 : i32
    %6 = arith.index_cast %c0_i32 : i32 to index
    %c0_5 = arith.constant 0 : index
    %c0_6 = arith.constant 0 : index
    %7 = vector.load %arg0[%6, %c0_5, %c0_6] : memref<8x2x512xf32, #tpu.memory_space<vmem>>, vector<1x2x512xf32>
    %8 = vector.shape_cast %7 : vector<1x2x512xf32> to vector<2x512xf32>
    %cst_7 = arith.constant dense<0.000000e+00> : vector<2x512xf32>
    %9 = tpu.matmul %5, %0, %cst_7 {dimension_numbers = #tpu.dot_dimension_numbers<[1], [0], [0], [1], [0, 0, 1, 1], [], []>} : vector<2x128xf32>, vector<128x512xf32>, vector<2x512xf32> -> vector<2x512xf32>
    %10 = arith.addf %8, %9 : vector<2x512xf32>
    %11 = vector.extract_strided_slice %10 {offsets = [0, 0], sizes = [2, 384], strides = [1, 1]} : vector<2x512xf32> to vector<2x384xf32>
    %12 = arith.negf %11 : vector<2x384xf32>
    %13 = math.exp %12 : vector<2x384xf32>
    %cst_8 = arith.constant 1.000000e+00 : f32
    %14 = vector.broadcast %cst_8 : f32 to vector<2x384xf32>
    %15 = arith.addf %14, %13 : vector<2x384xf32>
    %16 = arith.divf %14, %15 : vector<2x384xf32>
    %17 = vector.extract_strided_slice %16 {offsets = [0, 0], sizes = [2, 128], strides = [1, 1]} : vector<2x384xf32> to vector<2x128xf32>
    %18 = vector.extract_strided_slice %16 {offsets = [0, 128], sizes = [2, 128], strides = [1, 1]} : vector<2x384xf32> to vector<2x128xf32>
    %19 = vector.extract_strided_slice %16 {offsets = [0, 256], sizes = [2, 128], strides = [1, 1]} : vector<2x384xf32> to vector<2x128xf32>
    %20 = vector.extract_strided_slice %10 {offsets = [0, 384], sizes = [2, 128], strides = [1, 1]} : vector<2x512xf32> to vector<2x128xf32>
    %21 = math.tanh %20 : vector<2x128xf32>
    %22 = arith.mulf %18, %5 : vector<2x128xf32>
    %23 = arith.mulf %17, %21 : vector<2x128xf32>
    %24 = arith.addf %22, %23 : vector<2x128xf32>
    %25 = math.tanh %24 : vector<2x128xf32>
    %26 = arith.mulf %19, %25 : vector<2x128xf32>
    %27 = tpu.concatenate %26, %5 in 1 : vector<2x128xf32>, vector<2x128xf32> -> vector<2x256xf32>
    %cst_9 = arith.constant dense<0.000000e+00> : vector<2x512xf32>
    %28 = tpu.matmul %27, %1, %cst_9 {dimension_numbers = #tpu.dot_dimension_numbers<[1], [0], [0], [1], [0, 0, 1, 1], [], []>} : vector<2x256xf32>, vector<256x512xf32>, vector<2x512xf32> -> vector<2x512xf32>
    %29 = arith.addf %28, %4 : vector<2x512xf32>
    %30 = vector.extract_strided_slice %29 {offsets = [0, 0], sizes = [2, 384], strides = [1, 1]} : vector<2x512xf32> to vector<2x384xf32>
    %31 = arith.negf %30 : vector<2x384xf32>
    %32 = math.exp %31 : vector<2x384xf32>
    %cst_10 = arith.constant 1.000000e+00 : f32
    %33 = vector.broadcast %cst_10 : f32 to vector<2x384xf32>
    %34 = arith.addf %33, %32 : vector<2x384xf32>
    %35 = arith.divf %33, %34 : vector<2x384xf32>
    %36 = vector.extract_strided_slice %35 {offsets = [0, 0], sizes = [2, 128], strides = [1, 1]} : vector<2x384xf32> to vector<2x128xf32>
    %37 = vector.extract_strided_slice %35 {offsets = [0, 128], sizes = [2, 128], strides = [1, 1]} : vector<2x384xf32> to vector<2x128xf32>
    %38 = vector.extract_strided_slice %35 {offsets = [0, 256], sizes = [2, 128], strides = [1, 1]} : vector<2x384xf32> to vector<2x128xf32>
    %39 = vector.extract_strided_slice %29 {offsets = [0, 384], sizes = [2, 128], strides = [1, 1]} : vector<2x512xf32> to vector<2x128xf32>
    %40 = math.tanh %39 : vector<2x128xf32>
    %41 = arith.mulf %37, %5 : vector<2x128xf32>
    %42 = arith.mulf %36, %40 : vector<2x128xf32>
    %43 = arith.addf %41, %42 : vector<2x128xf32>
    %44 = math.tanh %43 : vector<2x128xf32>
    %45 = arith.mulf %38, %44 : vector<2x128xf32>
    %c1_i32 = arith.constant 1 : i32
    %46 = arith.index_cast %c1_i32 : i32 to index
    %c0_11 = arith.constant 0 : index
    %c0_12 = arith.constant 0 : index
    %47 = vector.load %arg0[%46, %c0_11, %c0_12] : memref<8x2x512xf32, #tpu.memory_space<vmem>>, vector<1x2x512xf32>
    %48 = vector.shape_cast %47 : vector<1x2x512xf32> to vector<2x512xf32>
    %cst_13 = arith.constant dense<0.000000e+00> : vector<2x512xf32>
    %49 = tpu.matmul %26, %0, %cst_13 {dimension_numbers = #tpu.dot_dimension_numbers<[1], [0], [0], [1], [0, 0, 1, 1], [], []>} : vector<2x128xf32>, vector<128x512xf32>, vector<2x512xf32> -> vector<2x512xf32>
    %50 = arith.addf %48, %49 : vector<2x512xf32>
    %51 = vector.extract_strided_slice %50 {offsets = [0, 0], sizes = [2, 384], strides = [1, 1]} : vector<2x512xf32> to vector<2x384xf32>
    %52 = arith.negf %51 : vector<2x384xf32>
    %53 = math.exp %52 : vector<2x384xf32>
    %cst_14 = arith.constant 1.000000e+00 : f32
    %54 = vector.broadcast %cst_14 : f32 to vector<2x384xf32>
    %55 = arith.addf %54, %53 : vector<2x384xf32>
    %56 = arith.divf %54, %55 : vector<2x384xf32>
    %57 = vector.extract_strided_slice %56 {offsets = [0, 0], sizes = [2, 128], strides = [1, 1]} : vector<2x384xf32> to vector<2x128xf32>
    %58 = vector.extract_strided_slice %56 {offsets = [0, 128], sizes = [2, 128], strides = [1, 1]} : vector<2x384xf32> to vector<2x128xf32>
    %59 = vector.extract_strided_slice %56 {offsets = [0, 256], sizes = [2, 128], strides = [1, 1]} : vector<2x384xf32> to vector<2x128xf32>
    %60 = vector.extract_strided_slice %50 {offsets = [0, 384], sizes = [2, 128], strides = [1, 1]} : vector<2x512xf32> to vector<2x128xf32>
    %61 = math.tanh %60 : vector<2x128xf32>
    %62 = arith.mulf %58, %24 : vector<2x128xf32>
    %63 = arith.mulf %57, %61 : vector<2x128xf32>
    %64 = arith.addf %62, %63 : vector<2x128xf32>
    %65 = math.tanh %64 : vector<2x128xf32>
    %66 = arith.mulf %59, %65 : vector<2x128xf32>
    %67 = tpu.concatenate %66, %45 in 1 : vector<2x128xf32>, vector<2x128xf32> -> vector<2x256xf32>
    %cst_15 = arith.constant dense<0.000000e+00> : vector<2x512xf32>
    %68 = tpu.matmul %67, %1, %cst_15 {dimension_numbers = #tpu.dot_dimension_numbers<[1], [0], [0], [1], [0, 0, 1, 1], [], []>} : vector<2x256xf32>, vector<256x512xf32>, vector<2x512xf32> -> vector<2x512xf32>
    %69 = arith.addf %68, %4 : vector<2x512xf32>
    %70 = vector.extract_strided_slice %69 {offsets = [0, 0], sizes = [2, 384], strides = [1, 1]} : vector<2x512xf32> to vector<2x384xf32>
    %71 = arith.negf %70 : vector<2x384xf32>
    %72 = math.exp %71 : vector<2x384xf32>
    %cst_16 = arith.constant 1.000000e+00 : f32
    %73 = vector.broadcast %cst_16 : f32 to vector<2x384xf32>
    %74 = arith.addf %73, %72 : vector<2x384xf32>
    %75 = arith.divf %73, %74 : vector<2x384xf32>
    %76 = vector.extract_strided_slice %75 {offsets = [0, 0], sizes = [2, 128], strides = [1, 1]} : vector<2x384xf32> to vector<2x128xf32>
    %77 = vector.extract_strided_slice %75 {offsets = [0, 128], sizes = [2, 128], strides = [1, 1]} : vector<2x384xf32> to vector<2x128xf32>
    %78 = vector.extract_strided_slice %75 {offsets = [0, 256], sizes = [2, 128], strides = [1, 1]} : vector<2x384xf32> to vector<2x128xf32>
    %79 = vector.extract_strided_slice %69 {offsets = [0, 384], sizes = [2, 128], strides = [1, 1]} : vector<2x512xf32> to vector<2x128xf32>
    %80 = math.tanh %79 : vector<2x128xf32>
    %81 = arith.mulf %77, %43 : vector<2x128xf32>
    %82 = arith.mulf %76, %80 : vector<2x128xf32>
    %83 = arith.addf %81, %82 : vector<2x128xf32>
    %84 = math.tanh %83 : vector<2x128xf32>
    %85 = arith.mulf %78, %84 : vector<2x128xf32>
    %c2_i32 = arith.constant 2 : i32
    %86 = arith.index_cast %c2_i32 : i32 to index
    %c0_17 = arith.constant 0 : index
    %c0_18 = arith.constant 0 : index
    %87 = vector.load %arg0[%86, %c0_17, %c0_18] : memref<8x2x512xf32, #tpu.memory_space<vmem>>, vector<1x2x512xf32>
    %88 = vector.shape_cast %87 : vector<1x2x512xf32> to vector<2x512xf32>
    %cst_19 = arith.constant dense<0.000000e+00> : vector<2x512xf32>
    %89 = tpu.matmul %66, %0, %cst_19 {dimension_numbers = #tpu.dot_dimension_numbers<[1], [0], [0], [1], [0, 0, 1, 1], [], []>} : vector<2x128xf32>, vector<128x512xf32>, vector<2x512xf32> -> vector<2x512xf32>
    %90 = arith.addf %88, %89 : vector<2x512xf32>
    %91 = vector.extract_strided_slice %90 {offsets = [0, 0], sizes = [2, 384], strides = [1, 1]} : vector<2x512xf32> to vector<2x384xf32>
    %92 = arith.negf %91 : vector<2x384xf32>
    %93 = math.exp %92 : vector<2x384xf32>
    %cst_20 = arith.constant 1.000000e+00 : f32
    %94 = vector.broadcast %cst_20 : f32 to vector<2x384xf32>
    %95 = arith.addf %94, %93 : vector<2x384xf32>
    %96 = arith.divf %94, %95 : vector<2x384xf32>
    %97 = vector.extract_strided_slice %96 {offsets = [0, 0], sizes = [2, 128], strides = [1, 1]} : vector<2x384xf32> to vector<2x128xf32>
    %98 = vector.extract_strided_slice %96 {offsets = [0, 128], sizes = [2, 128], strides = [1, 1]} : vector<2x384xf32> to vector<2x128xf32>
    %99 = vector.extract_strided_slice %96 {offsets = [0, 256], sizes = [2, 128], strides = [1, 1]} : vector<2x384xf32> to vector<2x128xf32>
    %100 = vector.extract_strided_slice %90 {offsets = [0, 384], sizes = [2, 128], strides = [1, 1]} : vector<2x512xf32> to vector<2x128xf32>
    %101 = math.tanh %100 : vector<2x128xf32>
    %102 = arith.mulf %98, %64 : vector<2x128xf32>
    %103 = arith.mulf %97, %101 : vector<2x128xf32>
    %104 = arith.addf %102, %103 : vector<2x128xf32>
    %105 = math.tanh %104 : vector<2x128xf32>
    %106 = arith.mulf %99, %105 : vector<2x128xf32>
    %107 = tpu.concatenate %106, %85 in 1 : vector<2x128xf32>, vector<2x128xf32> -> vector<2x256xf32>
    %cst_21 = arith.constant dense<0.000000e+00> : vector<2x512xf32>
    %108 = tpu.matmul %107, %1, %cst_21 {dimension_numbers = #tpu.dot_dimension_numbers<[1], [0], [0], [1], [0, 0, 1, 1], [], []>} : vector<2x256xf32>, vector<256x512xf32>, vector<2x512xf32> -> vector<2x512xf32>
    %109 = arith.addf %108, %4 : vector<2x512xf32>
    %110 = vector.extract_strided_slice %109 {offsets = [0, 0], sizes = [2, 384], strides = [1, 1]} : vector<2x512xf32> to vector<2x384xf32>
    %111 = arith.negf %110 : vector<2x384xf32>
    %112 = math.exp %111 : vector<2x384xf32>
    %cst_22 = arith.constant 1.000000e+00 : f32
    %113 = vector.broadcast %cst_22 : f32 to vector<2x384xf32>
    %114 = arith.addf %113, %112 : vector<2x384xf32>
    %115 = arith.divf %113, %114 : vector<2x384xf32>
    %116 = vector.extract_strided_slice %115 {offsets = [0, 0], sizes = [2, 128], strides = [1, 1]} : vector<2x384xf32> to vector<2x128xf32>
    %117 = vector.extract_strided_slice %115 {offsets = [0, 128], sizes = [2, 128], strides = [1, 1]} : vector<2x384xf32> to vector<2x128xf32>
    %118 = vector.extract_strided_slice %115 {offsets = [0, 256], sizes = [2, 128], strides = [1, 1]} : vector<2x384xf32> to vector<2x128xf32>
    %119 = vector.extract_strided_slice %109 {offsets = [0, 384], sizes = [2, 128], strides = [1, 1]} : vector<2x512xf32> to vector<2x128xf32>
    %120 = math.tanh %119 : vector<2x128xf32>
    %121 = arith.mulf %117, %83 : vector<2x128xf32>
    %122 = arith.mulf %116, %120 : vector<2x128xf32>
    %123 = arith.addf %121, %122 : vector<2x128xf32>
    %124 = math.tanh %123 : vector<2x128xf32>
    %125 = arith.mulf %118, %124 : vector<2x128xf32>
    %c3_i32 = arith.constant 3 : i32
    %126 = arith.index_cast %c3_i32 : i32 to index
    %c0_23 = arith.constant 0 : index
    %c0_24 = arith.constant 0 : index
    %127 = vector.load %arg0[%126, %c0_23, %c0_24] : memref<8x2x512xf32, #tpu.memory_space<vmem>>, vector<1x2x512xf32>
    %128 = vector.shape_cast %127 : vector<1x2x512xf32> to vector<2x512xf32>
    %cst_25 = arith.constant dense<0.000000e+00> : vector<2x512xf32>
    %129 = tpu.matmul %106, %0, %cst_25 {dimension_numbers = #tpu.dot_dimension_numbers<[1], [0], [0], [1], [0, 0, 1, 1], [], []>} : vector<2x128xf32>, vector<128x512xf32>, vector<2x512xf32> -> vector<2x512xf32>
    %130 = arith.addf %128, %129 : vector<2x512xf32>
    %131 = vector.extract_strided_slice %130 {offsets = [0, 0], sizes = [2, 384], strides = [1, 1]} : vector<2x512xf32> to vector<2x384xf32>
    %132 = arith.negf %131 : vector<2x384xf32>
    %133 = math.exp %132 : vector<2x384xf32>
    %cst_26 = arith.constant 1.000000e+00 : f32
    %134 = vector.broadcast %cst_26 : f32 to vector<2x384xf32>
    %135 = arith.addf %134, %133 : vector<2x384xf32>
    %136 = arith.divf %134, %135 : vector<2x384xf32>
    %137 = vector.extract_strided_slice %136 {offsets = [0, 0], sizes = [2, 128], strides = [1, 1]} : vector<2x384xf32> to vector<2x128xf32>
    %138 = vector.extract_strided_slice %136 {offsets = [0, 128], sizes = [2, 128], strides = [1, 1]} : vector<2x384xf32> to vector<2x128xf32>
    %139 = vector.extract_strided_slice %136 {offsets = [0, 256], sizes = [2, 128], strides = [1, 1]} : vector<2x384xf32> to vector<2x128xf32>
    %140 = vector.extract_strided_slice %130 {offsets = [0, 384], sizes = [2, 128], strides = [1, 1]} : vector<2x512xf32> to vector<2x128xf32>
    %141 = math.tanh %140 : vector<2x128xf32>
    %142 = arith.mulf %138, %104 : vector<2x128xf32>
    %143 = arith.mulf %137, %141 : vector<2x128xf32>
    %144 = arith.addf %142, %143 : vector<2x128xf32>
    %145 = math.tanh %144 : vector<2x128xf32>
    %146 = arith.mulf %139, %145 : vector<2x128xf32>
    %147 = tpu.concatenate %146, %125 in 1 : vector<2x128xf32>, vector<2x128xf32> -> vector<2x256xf32>
    %cst_27 = arith.constant dense<0.000000e+00> : vector<2x512xf32>
    %148 = tpu.matmul %147, %1, %cst_27 {dimension_numbers = #tpu.dot_dimension_numbers<[1], [0], [0], [1], [0, 0, 1, 1], [], []>} : vector<2x256xf32>, vector<256x512xf32>, vector<2x512xf32> -> vector<2x512xf32>
    %149 = arith.addf %148, %4 : vector<2x512xf32>
    %150 = vector.extract_strided_slice %149 {offsets = [0, 0], sizes = [2, 384], strides = [1, 1]} : vector<2x512xf32> to vector<2x384xf32>
    %151 = arith.negf %150 : vector<2x384xf32>
    %152 = math.exp %151 : vector<2x384xf32>
    %cst_28 = arith.constant 1.000000e+00 : f32
    %153 = vector.broadcast %cst_28 : f32 to vector<2x384xf32>
    %154 = arith.addf %153, %152 : vector<2x384xf32>
    %155 = arith.divf %153, %154 : vector<2x384xf32>
    %156 = vector.extract_strided_slice %155 {offsets = [0, 0], sizes = [2, 128], strides = [1, 1]} : vector<2x384xf32> to vector<2x128xf32>
    %157 = vector.extract_strided_slice %155 {offsets = [0, 128], sizes = [2, 128], strides = [1, 1]} : vector<2x384xf32> to vector<2x128xf32>
    %158 = vector.extract_strided_slice %155 {offsets = [0, 256], sizes = [2, 128], strides = [1, 1]} : vector<2x384xf32> to vector<2x128xf32>
    %159 = vector.extract_strided_slice %149 {offsets = [0, 384], sizes = [2, 128], strides = [1, 1]} : vector<2x512xf32> to vector<2x128xf32>
    %160 = math.tanh %159 : vector<2x128xf32>
    %161 = arith.mulf %157, %123 : vector<2x128xf32>
    %162 = arith.mulf %156, %160 : vector<2x128xf32>
    %163 = arith.addf %161, %162 : vector<2x128xf32>
    %164 = math.tanh %163 : vector<2x128xf32>
    %165 = arith.mulf %158, %164 : vector<2x128xf32>
    %c4_i32 = arith.constant 4 : i32
    %166 = arith.index_cast %c4_i32 : i32 to index
    %c0_29 = arith.constant 0 : index
    %c0_30 = arith.constant 0 : index
    %167 = vector.load %arg0[%166, %c0_29, %c0_30] : memref<8x2x512xf32, #tpu.memory_space<vmem>>, vector<1x2x512xf32>
    %168 = vector.shape_cast %167 : vector<1x2x512xf32> to vector<2x512xf32>
    %cst_31 = arith.constant dense<0.000000e+00> : vector<2x512xf32>
    %169 = tpu.matmul %146, %0, %cst_31 {dimension_numbers = #tpu.dot_dimension_numbers<[1], [0], [0], [1], [0, 0, 1, 1], [], []>} : vector<2x128xf32>, vector<128x512xf32>, vector<2x512xf32> -> vector<2x512xf32>
    %170 = arith.addf %168, %169 : vector<2x512xf32>
    %171 = vector.extract_strided_slice %170 {offsets = [0, 0], sizes = [2, 384], strides = [1, 1]} : vector<2x512xf32> to vector<2x384xf32>
    %172 = arith.negf %171 : vector<2x384xf32>
    %173 = math.exp %172 : vector<2x384xf32>
    %cst_32 = arith.constant 1.000000e+00 : f32
    %174 = vector.broadcast %cst_32 : f32 to vector<2x384xf32>
    %175 = arith.addf %174, %173 : vector<2x384xf32>
    %176 = arith.divf %174, %175 : vector<2x384xf32>
    %177 = vector.extract_strided_slice %176 {offsets = [0, 0], sizes = [2, 128], strides = [1, 1]} : vector<2x384xf32> to vector<2x128xf32>
    %178 = vector.extract_strided_slice %176 {offsets = [0, 128], sizes = [2, 128], strides = [1, 1]} : vector<2x384xf32> to vector<2x128xf32>
    %179 = vector.extract_strided_slice %176 {offsets = [0, 256], sizes = [2, 128], strides = [1, 1]} : vector<2x384xf32> to vector<2x128xf32>
    %180 = vector.extract_strided_slice %170 {offsets = [0, 384], sizes = [2, 128], strides = [1, 1]} : vector<2x512xf32> to vector<2x128xf32>
    %181 = math.tanh %180 : vector<2x128xf32>
    %182 = arith.mulf %178, %144 : vector<2x128xf32>
    %183 = arith.mulf %177, %181 : vector<2x128xf32>
    %184 = arith.addf %182, %183 : vector<2x128xf32>
    %185 = math.tanh %184 : vector<2x128xf32>
    %186 = arith.mulf %179, %185 : vector<2x128xf32>
    %187 = tpu.concatenate %186, %165 in 1 : vector<2x128xf32>, vector<2x128xf32> -> vector<2x256xf32>
    %cst_33 = arith.constant dense<0.000000e+00> : vector<2x512xf32>
    %188 = tpu.matmul %187, %1, %cst_33 {dimension_numbers = #tpu.dot_dimension_numbers<[1], [0], [0], [1], [0, 0, 1, 1], [], []>} : vector<2x256xf32>, vector<256x512xf32>, vector<2x512xf32> -> vector<2x512xf32>
    %189 = arith.addf %188, %4 : vector<2x512xf32>
    %190 = vector.extract_strided_slice %189 {offsets = [0, 0], sizes = [2, 384], strides = [1, 1]} : vector<2x512xf32> to vector<2x384xf32>
    %191 = arith.negf %190 : vector<2x384xf32>
    %192 = math.exp %191 : vector<2x384xf32>
    %cst_34 = arith.constant 1.000000e+00 : f32
    %193 = vector.broadcast %cst_34 : f32 to vector<2x384xf32>
    %194 = arith.addf %193, %192 : vector<2x384xf32>
    %195 = arith.divf %193, %194 : vector<2x384xf32>
    %196 = vector.extract_strided_slice %195 {offsets = [0, 0], sizes = [2, 128], strides = [1, 1]} : vector<2x384xf32> to vector<2x128xf32>
    %197 = vector.extract_strided_slice %195 {offsets = [0, 128], sizes = [2, 128], strides = [1, 1]} : vector<2x384xf32> to vector<2x128xf32>
    %198 = vector.extract_strided_slice %195 {offsets = [0, 256], sizes = [2, 128], strides = [1, 1]} : vector<2x384xf32> to vector<2x128xf32>
    %199 = vector.extract_strided_slice %189 {offsets = [0, 384], sizes = [2, 128], strides = [1, 1]} : vector<2x512xf32> to vector<2x128xf32>
    %200 = math.tanh %199 : vector<2x128xf32>
    %201 = arith.mulf %197, %163 : vector<2x128xf32>
    %202 = arith.mulf %196, %200 : vector<2x128xf32>
    %203 = arith.addf %201, %202 : vector<2x128xf32>
    %204 = math.tanh %203 : vector<2x128xf32>
    %205 = arith.mulf %198, %204 : vector<2x128xf32>
    %c5_i32 = arith.constant 5 : i32
    %206 = arith.index_cast %c5_i32 : i32 to index
    %c0_35 = arith.constant 0 : index
    %c0_36 = arith.constant 0 : index
    %207 = vector.load %arg0[%206, %c0_35, %c0_36] : memref<8x2x512xf32, #tpu.memory_space<vmem>>, vector<1x2x512xf32>
    %208 = vector.shape_cast %207 : vector<1x2x512xf32> to vector<2x512xf32>
    %cst_37 = arith.constant dense<0.000000e+00> : vector<2x512xf32>
    %209 = tpu.matmul %186, %0, %cst_37 {dimension_numbers = #tpu.dot_dimension_numbers<[1], [0], [0], [1], [0, 0, 1, 1], [], []>} : vector<2x128xf32>, vector<128x512xf32>, vector<2x512xf32> -> vector<2x512xf32>
    %210 = arith.addf %208, %209 : vector<2x512xf32>
    %211 = vector.extract_strided_slice %210 {offsets = [0, 0], sizes = [2, 384], strides = [1, 1]} : vector<2x512xf32> to vector<2x384xf32>
    %212 = arith.negf %211 : vector<2x384xf32>
    %213 = math.exp %212 : vector<2x384xf32>
    %cst_38 = arith.constant 1.000000e+00 : f32
    %214 = vector.broadcast %cst_38 : f32 to vector<2x384xf32>
    %215 = arith.addf %214, %213 : vector<2x384xf32>
    %216 = arith.divf %214, %215 : vector<2x384xf32>
    %217 = vector.extract_strided_slice %216 {offsets = [0, 0], sizes = [2, 128], strides = [1, 1]} : vector<2x384xf32> to vector<2x128xf32>
    %218 = vector.extract_strided_slice %216 {offsets = [0, 128], sizes = [2, 128], strides = [1, 1]} : vector<2x384xf32> to vector<2x128xf32>
    %219 = vector.extract_strided_slice %216 {offsets = [0, 256], sizes = [2, 128], strides = [1, 1]} : vector<2x384xf32> to vector<2x128xf32>
    %220 = vector.extract_strided_slice %210 {offsets = [0, 384], sizes = [2, 128], strides = [1, 1]} : vector<2x512xf32> to vector<2x128xf32>
    %221 = math.tanh %220 : vector<2x128xf32>
    %222 = arith.mulf %218, %184 : vector<2x128xf32>
    %223 = arith.mulf %217, %221 : vector<2x128xf32>
    %224 = arith.addf %222, %223 : vector<2x128xf32>
    %225 = math.tanh %224 : vector<2x128xf32>
    %226 = arith.mulf %219, %225 : vector<2x128xf32>
    %227 = tpu.concatenate %226, %205 in 1 : vector<2x128xf32>, vector<2x128xf32> -> vector<2x256xf32>
    %cst_39 = arith.constant dense<0.000000e+00> : vector<2x512xf32>
    %228 = tpu.matmul %227, %1, %cst_39 {dimension_numbers = #tpu.dot_dimension_numbers<[1], [0], [0], [1], [0, 0, 1, 1], [], []>} : vector<2x256xf32>, vector<256x512xf32>, vector<2x512xf32> -> vector<2x512xf32>
    %229 = arith.addf %228, %4 : vector<2x512xf32>
    %230 = vector.extract_strided_slice %229 {offsets = [0, 0], sizes = [2, 384], strides = [1, 1]} : vector<2x512xf32> to vector<2x384xf32>
    %231 = arith.negf %230 : vector<2x384xf32>
    %232 = math.exp %231 : vector<2x384xf32>
    %cst_40 = arith.constant 1.000000e+00 : f32
    %233 = vector.broadcast %cst_40 : f32 to vector<2x384xf32>
    %234 = arith.addf %233, %232 : vector<2x384xf32>
    %235 = arith.divf %233, %234 : vector<2x384xf32>
    %236 = vector.extract_strided_slice %235 {offsets = [0, 0], sizes = [2, 128], strides = [1, 1]} : vector<2x384xf32> to vector<2x128xf32>
    %237 = vector.extract_strided_slice %235 {offsets = [0, 128], sizes = [2, 128], strides = [1, 1]} : vector<2x384xf32> to vector<2x128xf32>
    %238 = vector.extract_strided_slice %235 {offsets = [0, 256], sizes = [2, 128], strides = [1, 1]} : vector<2x384xf32> to vector<2x128xf32>
    %239 = vector.extract_strided_slice %229 {offsets = [0, 384], sizes = [2, 128], strides = [1, 1]} : vector<2x512xf32> to vector<2x128xf32>
    %240 = math.tanh %239 : vector<2x128xf32>
    %241 = arith.mulf %237, %203 : vector<2x128xf32>
    %242 = arith.mulf %236, %240 : vector<2x128xf32>
    %243 = arith.addf %241, %242 : vector<2x128xf32>
    %244 = math.tanh %243 : vector<2x128xf32>
    %245 = arith.mulf %238, %244 : vector<2x128xf32>
    %c6_i32 = arith.constant 6 : i32
    %246 = arith.index_cast %c6_i32 : i32 to index
    %c0_41 = arith.constant 0 : index
    %c0_42 = arith.constant 0 : index
    %247 = vector.load %arg0[%246, %c0_41, %c0_42] : memref<8x2x512xf32, #tpu.memory_space<vmem>>, vector<1x2x512xf32>
    %248 = vector.shape_cast %247 : vector<1x2x512xf32> to vector<2x512xf32>
    %cst_43 = arith.constant dense<0.000000e+00> : vector<2x512xf32>
    %249 = tpu.matmul %226, %0, %cst_43 {dimension_numbers = #tpu.dot_dimension_numbers<[1], [0], [0], [1], [0, 0, 1, 1], [], []>} : vector<2x128xf32>, vector<128x512xf32>, vector<2x512xf32> -> vector<2x512xf32>
    %250 = arith.addf %248, %249 : vector<2x512xf32>
    %251 = vector.extract_strided_slice %250 {offsets = [0, 0], sizes = [2, 384], strides = [1, 1]} : vector<2x512xf32> to vector<2x384xf32>
    %252 = arith.negf %251 : vector<2x384xf32>
    %253 = math.exp %252 : vector<2x384xf32>
    %cst_44 = arith.constant 1.000000e+00 : f32
    %254 = vector.broadcast %cst_44 : f32 to vector<2x384xf32>
    %255 = arith.addf %254, %253 : vector<2x384xf32>
    %256 = arith.divf %254, %255 : vector<2x384xf32>
    %257 = vector.extract_strided_slice %256 {offsets = [0, 0], sizes = [2, 128], strides = [1, 1]} : vector<2x384xf32> to vector<2x128xf32>
    %258 = vector.extract_strided_slice %256 {offsets = [0, 128], sizes = [2, 128], strides = [1, 1]} : vector<2x384xf32> to vector<2x128xf32>
    %259 = vector.extract_strided_slice %256 {offsets = [0, 256], sizes = [2, 128], strides = [1, 1]} : vector<2x384xf32> to vector<2x128xf32>
    %260 = vector.extract_strided_slice %250 {offsets = [0, 384], sizes = [2, 128], strides = [1, 1]} : vector<2x512xf32> to vector<2x128xf32>
    %261 = math.tanh %260 : vector<2x128xf32>
    %262 = arith.mulf %258, %224 : vector<2x128xf32>
    %263 = arith.mulf %257, %261 : vector<2x128xf32>
    %264 = arith.addf %262, %263 : vector<2x128xf32>
    %265 = math.tanh %264 : vector<2x128xf32>
    %266 = arith.mulf %259, %265 : vector<2x128xf32>
    %267 = tpu.concatenate %266, %245 in 1 : vector<2x128xf32>, vector<2x128xf32> -> vector<2x256xf32>
    %cst_45 = arith.constant dense<0.000000e+00> : vector<2x512xf32>
    %268 = tpu.matmul %267, %1, %cst_45 {dimension_numbers = #tpu.dot_dimension_numbers<[1], [0], [0], [1], [0, 0, 1, 1], [], []>} : vector<2x256xf32>, vector<256x512xf32>, vector<2x512xf32> -> vector<2x512xf32>
    %269 = arith.addf %268, %4 : vector<2x512xf32>
    %270 = vector.extract_strided_slice %269 {offsets = [0, 0], sizes = [2, 384], strides = [1, 1]} : vector<2x512xf32> to vector<2x384xf32>
    %271 = arith.negf %270 : vector<2x384xf32>
    %272 = math.exp %271 : vector<2x384xf32>
    %cst_46 = arith.constant 1.000000e+00 : f32
    %273 = vector.broadcast %cst_46 : f32 to vector<2x384xf32>
    %274 = arith.addf %273, %272 : vector<2x384xf32>
    %275 = arith.divf %273, %274 : vector<2x384xf32>
    %276 = vector.extract_strided_slice %275 {offsets = [0, 0], sizes = [2, 128], strides = [1, 1]} : vector<2x384xf32> to vector<2x128xf32>
    %277 = vector.extract_strided_slice %275 {offsets = [0, 128], sizes = [2, 128], strides = [1, 1]} : vector<2x384xf32> to vector<2x128xf32>
    %278 = vector.extract_strided_slice %275 {offsets = [0, 256], sizes = [2, 128], strides = [1, 1]} : vector<2x384xf32> to vector<2x128xf32>
    %279 = vector.extract_strided_slice %269 {offsets = [0, 384], sizes = [2, 128], strides = [1, 1]} : vector<2x512xf32> to vector<2x128xf32>
    %280 = math.tanh %279 : vector<2x128xf32>
    %281 = arith.mulf %277, %243 : vector<2x128xf32>
    %282 = arith.mulf %276, %280 : vector<2x128xf32>
    %283 = arith.addf %281, %282 : vector<2x128xf32>
    %284 = math.tanh %283 : vector<2x128xf32>
    %285 = arith.mulf %278, %284 : vector<2x128xf32>
    %c7_i32 = arith.constant 7 : i32
    %286 = arith.index_cast %c7_i32 : i32 to index
    %c0_47 = arith.constant 0 : index
    %c0_48 = arith.constant 0 : index
    %287 = vector.load %arg0[%286, %c0_47, %c0_48] : memref<8x2x512xf32, #tpu.memory_space<vmem>>, vector<1x2x512xf32>
    %288 = vector.shape_cast %287 : vector<1x2x512xf32> to vector<2x512xf32>
    %cst_49 = arith.constant dense<0.000000e+00> : vector<2x512xf32>
    %289 = tpu.matmul %266, %0, %cst_49 {dimension_numbers = #tpu.dot_dimension_numbers<[1], [0], [0], [1], [0, 0, 1, 1], [], []>} : vector<2x128xf32>, vector<128x512xf32>, vector<2x512xf32> -> vector<2x512xf32>
    %290 = arith.addf %288, %289 : vector<2x512xf32>
    %291 = vector.extract_strided_slice %290 {offsets = [0, 0], sizes = [2, 384], strides = [1, 1]} : vector<2x512xf32> to vector<2x384xf32>
    %292 = arith.negf %291 : vector<2x384xf32>
    %293 = math.exp %292 : vector<2x384xf32>
    %cst_50 = arith.constant 1.000000e+00 : f32
    %294 = vector.broadcast %cst_50 : f32 to vector<2x384xf32>
    %295 = arith.addf %294, %293 : vector<2x384xf32>
    %296 = arith.divf %294, %295 : vector<2x384xf32>
    %297 = vector.extract_strided_slice %296 {offsets = [0, 0], sizes = [2, 128], strides = [1, 1]} : vector<2x384xf32> to vector<2x128xf32>
    %298 = vector.extract_strided_slice %296 {offsets = [0, 128], sizes = [2, 128], strides = [1, 1]} : vector<2x384xf32> to vector<2x128xf32>
    %299 = vector.extract_strided_slice %296 {offsets = [0, 256], sizes = [2, 128], strides = [1, 1]} : vector<2x384xf32> to vector<2x128xf32>
    %300 = vector.extract_strided_slice %290 {offsets = [0, 384], sizes = [2, 128], strides = [1, 1]} : vector<2x512xf32> to vector<2x128xf32>
    %301 = math.tanh %300 : vector<2x128xf32>
    %302 = arith.mulf %298, %264 : vector<2x128xf32>
    %303 = arith.mulf %297, %301 : vector<2x128xf32>
    %304 = arith.addf %302, %303 : vector<2x128xf32>
    %305 = math.tanh %304 : vector<2x128xf32>
    %306 = arith.mulf %299, %305 : vector<2x128xf32>
    %307 = tpu.concatenate %306, %285 in 1 : vector<2x128xf32>, vector<2x128xf32> -> vector<2x256xf32>
    %cst_51 = arith.constant dense<0.000000e+00> : vector<2x512xf32>
    %308 = tpu.matmul %307, %1, %cst_51 {dimension_numbers = #tpu.dot_dimension_numbers<[1], [0], [0], [1], [0, 0, 1, 1], [], []>} : vector<2x256xf32>, vector<256x512xf32>, vector<2x512xf32> -> vector<2x512xf32>
    %309 = arith.addf %308, %4 : vector<2x512xf32>
    %310 = vector.extract_strided_slice %309 {offsets = [0, 0], sizes = [2, 384], strides = [1, 1]} : vector<2x512xf32> to vector<2x384xf32>
    %311 = arith.negf %310 : vector<2x384xf32>
    %312 = math.exp %311 : vector<2x384xf32>
    %cst_52 = arith.constant 1.000000e+00 : f32
    %313 = vector.broadcast %cst_52 : f32 to vector<2x384xf32>
    %314 = arith.addf %313, %312 : vector<2x384xf32>
    %315 = arith.divf %313, %314 : vector<2x384xf32>
    %316 = vector.extract_strided_slice %315 {offsets = [0, 0], sizes = [2, 128], strides = [1, 1]} : vector<2x384xf32> to vector<2x128xf32>
    %317 = vector.extract_strided_slice %315 {offsets = [0, 128], sizes = [2, 128], strides = [1, 1]} : vector<2x384xf32> to vector<2x128xf32>
    %318 = vector.extract_strided_slice %315 {offsets = [0, 256], sizes = [2, 128], strides = [1, 1]} : vector<2x384xf32> to vector<2x128xf32>
    %319 = vector.extract_strided_slice %309 {offsets = [0, 384], sizes = [2, 128], strides = [1, 1]} : vector<2x512xf32> to vector<2x128xf32>
    %320 = math.tanh %319 : vector<2x128xf32>
    %321 = arith.mulf %317, %283 : vector<2x128xf32>
    %322 = arith.mulf %316, %320 : vector<2x128xf32>
    %323 = arith.addf %321, %322 : vector<2x128xf32>
    %324 = math.tanh %323 : vector<2x128xf32>
    %325 = arith.mulf %318, %324 : vector<2x128xf32>
    %c8_i32 = arith.constant 8 : i32
    %c0_53 = arith.constant 0 : index
    %c0_54 = arith.constant 0 : index
    %326 = vector.load %arg4[%c0_53, %c0_54] : memref<128x128xf32, #tpu.memory_space<vmem>>, vector<128x128xf32>
    %cst_55 = arith.constant dense<0.000000e+00> : vector<2x128xf32>
    %327 = tpu.matmul %325, %326, %cst_55 {dimension_numbers = #tpu.dot_dimension_numbers<[1], [0], [0], [1], [0, 0, 1, 1], [], []>} : vector<2x128xf32>, vector<128x128xf32>, vector<2x128xf32> -> vector<2x128xf32>
    %c0_56 = arith.constant 0 : index
    %c0_57 = arith.constant 0 : index
    %328 = vector.load %arg5[%c0_56, %c0_57] : memref<1x128xf32, #tpu.memory_space<vmem>>, vector<1x128xf32>
    %329 = vector.broadcast %328 : vector<1x128xf32> to vector<2x128xf32>
    %330 = arith.addf %327, %329 : vector<2x128xf32>
    %c0_58 = arith.constant 0 : index
    %c0_59 = arith.constant 0 : index
    %331 = vector.load %arg6[%c0_58, %c0_59] : memref<2x128xf32, #tpu.memory_space<vmem>>, vector<2x128xf32>
    tpu.vector_store %arg6[%c0_58, %c0_59], %330 {strides = array<i32>} : memref<2x128xf32, #tpu.memory_space<vmem>>, vector<2x128xf32>,
    return
  }
}

</mosaic_0001>

<llo_original>
// kernel: tpu_custom_call.1
$region0: #{tpu_custom_call.1}
  #allocation0 [shape = 'u32[]', space=smem, size = 0x4, offset = 0x4, fixed_abs, tag = 'smem constant byte address 0x4 - core index']
  #allocation1 [shape = 'u32[72,128]{1,0:T(1,128)}', space=vmem, size = 0x9000, scoped, tag = 'internal scratch']
  %s0 = inlined_call_operand.hbm [shape: f32[8,2,512], index: 0, kind: input, shape index: {}]
  %s1 = inlined_call_operand.hbm [shape: f32[128,512], index: 1, kind: input, shape index: {}]
  %s2 = inlined_call_operand.hbm [shape: f32[256,512], index: 2, kind: input, shape index: {}]
  %s3 = inlined_call_operand.hbm [shape: f32[1,512], index: 3, kind: input, shape index: {}]
  %s4 = inlined_call_operand.hbm [shape: f32[128,128], index: 4, kind: input, shape index: {}]
  %s5 = inlined_call_operand.vmem [shape: f32[1,128], index: 5, kind: input, shape index: {}]
  %s6 = inlined_call_operand.hbm [shape: f32[2,128], index: 6, kind: output, shape index: {}]
  %s7 = sld [smem:[#allocation0]]
  $region54: #{tpu_custom_call.1} parent=0
    _
  %s9 = ssub.s32 1, %s7
  %s10 = scalar_select 0, %s9, %s7
  $region1: #{tpu_custom_call.1} parent=0
    #allocation2 [shape = 'u8[32768]{0}', space=vmem, size = 0x8000, scoped, tag = 'input window, operand 0, single buffered']
    #allocation3 [shape = 's32[1]{0}', space=sflag, size = 0x4, scoped, tag = 'scoped memory for tpu_custom_call.1']
    #allocation4 [shape = 's32[1]{0}', space=sflag, size = 0x4, scoped, tag = 'scoped memory for tpu_custom_call.1']
    #allocation5 [shape = 'u8[262144]{0}', space=vmem, size = 0x40000, scoped, tag = 'input window, operand 1, single buffered']
    #allocation6 [shape = 's32[1]{0}', space=sflag, size = 0x4, scoped, tag = 'scoped memory for tpu_custom_call.1']
    #allocation7 [shape = 'u8[524288]{0}', space=vmem, size = 0x80000, scoped, tag = 'input window, operand 2, single buffered']
    #allocation8 [shape = 'u8[2048]{0}', space=vmem, size = 0x800, scoped, tag = 'input window, operand 3, single buffered']
    #allocation9 [shape = 's32[1]{0}', space=sflag, size = 0x4, scoped, tag = 'scoped memory for tpu_custom_call.1']
    #allocation10 [shape = 'u8[65536]{0}', space=vmem, size = 0x10000, scoped, tag = 'input window, operand 4, single buffered']
    #allocation11 [shape = 'u8[1024]{0}', space=vmem, size = 0x400, scoped, tag = 'output window, operand 0, single buffered']
    %11 = vsyncpa [#allocation3], 0
    %12 = vsyncpa [#allocation6], 0
    %13 = vsyncpa [#allocation9], 0
    %14 = vsyncpa [#allocation4], 0
    // Predicated region
    $region2: #{tpu_custom_call.1} parent=1 // pred_check
      _
    $region3: #{tpu_custom_call.1} parent=1 // pred_check_branch
      %16 = sbr.rel (0) target = $region5
    $region4: #{tpu_custom_call.1} parent=1 // pred_region
      %18 = vsyncadd [#allocation3], 0
      %s19 = sshll.u32 %s0, 4
      %s20 = int_to_ptr.hbm [resolvable:$true] %s19
      %s21 = sshll.u32 [#allocation2], 4
      %s22 = int_to_ptr.vmem [resolvable:$true] %s21
      %27 = dma.hbm_to_vmem [thread:$0]  %s20, 1024, %s22, [#allocation3], 128, 128, 8
    $region5: #{tpu_custom_call.1} parent=1 // pred_fallthru
      _
    // Predicated region
    $region6: #{tpu_custom_call.1} parent=1 // pred_check
      _
    $region7: #{tpu_custom_call.1} parent=1 // pred_check_branch
      %29 = sbr.rel (0) target = $region9
    $region8: #{tpu_custom_call.1} parent=1 // pred_region
      %31 = vsyncadd [#allocation6], 0
      %s32 = sshll.u32 %s1, 4
      %s33 = int_to_ptr.hbm [resolvable:$true] %s32
      %s34 = sshll.u32 [#allocation5], 4
      %s35 = int_to_ptr.vmem [resolvable:$true] %s34
      %40 = dma.hbm_to_vmem [thread:$0]  %s33, 8192, %s35, [#allocation6], 512, 512, 32
    $region9: #{tpu_custom_call.1} parent=1 // pred_fallthru
      _
    // Predicated region
    $region10: #{tpu_custom_call.1} parent=1 // pred_check
      _
    $region11: #{tpu_custom_call.1} parent=1 // pred_check_branch
      %42 = sbr.rel (0) target = $region13
    $region12: #{tpu_custom_call.1} parent=1 // pred_region
      %44 = vsyncadd [#allocation6], 0
      %s45 = sshll.u32 %s2, 4
      %s46 = int_to_ptr.hbm [resolvable:$true] %s45
      %s47 = sshll.u32 [#allocation7], 4
      %s48 = int_to_ptr.vmem [resolvable:$true] %s47
      %53 = dma.hbm_to_vmem [thread:$0]  %s46, 16384, %s48, [#allocation6], 512, 512, 32
    $region13: #{tpu_custom_call.1} parent=1 // pred_fallthru
      _
    // Predicated region
    $region14: #{tpu_custom_call.1} parent=1 // pred_check
      _
    $region15: #{tpu_custom_call.1} parent=1 // pred_check_branch
      %55 = sbr.rel (0) target = $region17
    $region16: #{tpu_custom_call.1} parent=1 // pred_region
      %57 = vsyncadd [#allocation9], 0
      %s59 = sshll.u32 %s3, 4
      %s60 = int_to_ptr.hbm [resolvable:$true] %s59
      %s61 = sshll.u32 [#allocation8], 4
      %s62 = int_to_ptr.vmem [resolvable:$true] %s61
      %64 = dma.hbm_to_vmem [thread:$0]  %s60, 64, %s62, [#allocation9]
    $region17: #{tpu_custom_call.1} parent=1 // pred_fallthru
      _
    // Predicated region
    $region18: #{tpu_custom_call.1} parent=1 // pred_check
      _
    $region19: #{tpu_custom_call.1} parent=1 // pred_check_branch
      %66 = sbr.rel (0) target = $region21
    $region20: #{tpu_custom_call.1} parent=1 // pred_region
      %68 = vsyncadd [#allocation9], 0
      %s69 = sshll.u32 %s4, 4
      %s70 = int_to_ptr.hbm [resolvable:$true] %s69
      %s71 = sshll.u32 [#allocation10], 4
      %s72 = int_to_ptr.vmem [resolvable:$true] %s71
      %77 = dma.hbm_to_vmem [thread:$0]  %s70, 2048, %s72, [#allocation9], 128, 128, 8
    $region21: #{tpu_custom_call.1} parent=1 // pred_fallthru
      _
    // Predicated region
    $region22: #{tpu_custom_call.1} parent=1 // pred_check
      _
    $region23: #{tpu_custom_call.1} parent=1 // pred_check_branch
      %79 = sbr.rel (0) target = $region25
    $region24: #{tpu_custom_call.1} parent=1 // pred_region
      _
    $region25: #{tpu_custom_call.1} parent=1 // pred_fallthru
      _
    // Predicated region
    $region26: #{tpu_custom_call.1} parent=1 // pred_check
      _
    $region27: #{tpu_custom_call.1} parent=1 // pred_check_branch
      %81 = sbr.rel (0) target = $region29
    $region28: #{tpu_custom_call.1} parent=1 // pred_region
      %83 = dma.done [#allocation3], 1024
    $region29: #{tpu_custom_call.1} parent=1 // pred_fallthru
      _
    // Predicated region
    $region30: #{tpu_custom_call.1} parent=1 // pred_check
      _
    $region31: #{tpu_custom_call.1} parent=1 // pred_check_branch
      %85 = sbr.rel (0) target = $region33
    $region32: #{tpu_custom_call.1} parent=1 // pred_region
      %87 = dma.done [#allocation6], 8192
    $region33: #{tpu_custom_call.1} parent=1 // pred_fallthru
      _
    // Predicated region
    $region34: #{tpu_custom_call.1} parent=1 // pred_check
      _
    $region35: #{tpu_custom_call.1} parent=1 // pred_check_branch
      %89 = sbr.rel (0) target = $region37
    $region36: #{tpu_custom_call.1} parent=1 // pred_region
      %91 = dma.done [#allocation6], 16384
    $region37: #{tpu_custom_call.1} parent=1 // pred_fallthru
      _
    // Predicated region
    $region38: #{tpu_custom_call.1} parent=1 // pred_check
      _
    $region39: #{tpu_custom_call.1} parent=1 // pred_check_branch
      %93 = sbr.rel (0) target = $region41
    $region40: #{tpu_custom_call.1} parent=1 // pred_region
      %95 = dma.done [#allocation9], 64
    $region41: #{tpu_custom_call.1} parent=1 // pred_fallthru
      _
    // Predicated region
    $region42: #{tpu_custom_call.1} parent=1 // pred_check
      _
    $region43: #{tpu_custom_call.1} parent=1 // pred_check_branch
      %97 = sbr.rel (0) target = $region45
    $region44: #{tpu_custom_call.1} parent=1 // pred_region
      %99 = dma.done [#allocation9], 2048
    $region45: #{tpu_custom_call.1} parent=1 // pred_fallthru
      _
    %v100 = vld [vmem:[#allocation5] sm:$0xff]
    %v101 = vld [vmem:[#allocation5 + $0x8] sm:$0xff]
    %v102 = vld [vmem:[#allocation5 + $0x10] sm:$0xff]
    %v103 = vld [vmem:[#allocation5 + $0x18] sm:$0xff]
    %v104 = vld [vmem:[#allocation5 + $0x20] sm:$0xff]
    %v105 = vld [vmem:[#allocation5 + $0x28] sm:$0xff]
    %v106 = vld [vmem:[#allocation5 + $0x30] sm:$0xff]
    %v107 = vld [vmem:[#allocation5 + $0x38] sm:$0xff]
    %v108 = vld [vmem:[#allocation5 + $0x40] sm:$0xff]
    %v109 = vld [vmem:[#allocation5 + $0x48] sm:$0xff]
    %v110 = vld [vmem:[#allocation5 + $0x50] sm:$0xff]
    %v111 = vld [vmem:[#allocation5 + $0x58] sm:$0xff]
    %v112 = vld [vmem:[#allocation5 + $0x60] sm:$0xff]
    %v113 = vld [vmem:[#allocation5 + $0x68] sm:$0xff]
    %v114 = vld [vmem:[#allocation5 + $0x70] sm:$0xff]
    %v115 = vld [vmem:[#allocation5 + $0x78] sm:$0xff]
    %v116 = vld [vmem:[#allocation5 + $0x80] sm:$0xff]
    %v117 = vld [vmem:[#allocation5 + $0x88] sm:$0xff]
    %v118 = vld [vmem:[#allocation5 + $0x90] sm:$0xff]
    %v119 = vld [vmem:[#allocation5 + $0x98] sm:$0xff]
    %v120 = vld [vmem:[#allocation5 + $0xa0] sm:$0xff]
    %v121 = vld [vmem:[#allocation5 + $0xa8] sm:$0xff]
    %v122 = vld [vmem:[#allocation5 + $0xb0] sm:$0xff]
    %v123 = vld [vmem:[#allocation5 + $0xb8] sm:$0xff]
    %v124 = vld [vmem:[#allocation5 + $0xc0] sm:$0xff]
    %v125 = vld [vmem:[#allocation5 + $0xc8] sm:$0xff]
    %v126 = vld [vmem:[#allocation5 + $0xd0] sm:$0xff]
    %v127 = vld [vmem:[#allocation5 + $0xd8] sm:$0xff]
    %v128 = vld [vmem:[#allocation5 + $0xe0] sm:$0xff]
    %v129 = vld [vmem:[#allocation5 + $0xe8] sm:$0xff]
    %v130 = vld [vmem:[#allocation5 + $0xf0] sm:$0xff]
    %v131 = vld [vmem:[#allocation5 + $0xf8] sm:$0xff]
    %v132 = vld [vmem:[#allocation5 + $0x100] sm:$0xff]
    %v133 = vld [vmem:[#allocation5 + $0x108] sm:$0xff]
    %v134 = vld [vmem:[#allocation5 + $0x110] sm:$0xff]
    %v135 = vld [vmem:[#allocation5 + $0x118] sm:$0xff]
    %v136 = vld [vmem:[#allocation5 + $0x120] sm:$0xff]
    %v137 = vld [vmem:[#allocation5 + $0x128] sm:$0xff]
    %v138 = vld [vmem:[#allocation5 + $0x130] sm:$0xff]
    %v139 = vld [vmem:[#allocation5 + $0x138] sm:$0xff]
    %v140 = vld [vmem:[#allocation5 + $0x140] sm:$0xff]
    %v141 = vld [vmem:[#allocation5 + $0x148] sm:$0xff]
    %v142 = vld [vmem:[#allocation5 + $0x150] sm:$0xff]
    %v143 = vld [vmem:[#allocation5 + $0x158] sm:$0xff]
    %v144 = vld [vmem:[#allocation5 + $0x160] sm:$0xff]
    %v145 = vld [vmem:[#allocation5 + $0x168] sm:$0xff]
    %v146 = vld [vmem:[#allocation5 + $0x170] sm:$0xff]
    %v147 = vld [vmem:[#allocation5 + $0x178] sm:$0xff]
    %v148 = vld [vmem:[#allocation5 + $0x180] sm:$0xff]
    %v149 = vld [vmem:[#allocation5 + $0x188] sm:$0xff]
    %v150 = vld [vmem:[#allocation5 + $0x190] sm:$0xff]
    %v151 = vld [vmem:[#allocation5 + $0x198] sm:$0xff]
    %v152 = vld [vmem:[#allocation5 + $0x1a0] sm:$0xff]
    %v153 = vld [vmem:[#allocation5 + $0x1a8] sm:$0xff]
    %v154 = vld [vmem:[#allocation5 + $0x1b0] sm:$0xff]
    %v155 = vld [vmem:[#allocation5 + $0x1b8] sm:$0xff]
    %v156 = vld [vmem:[#allocation5 + $0x1c0] sm:$0xff]
    %v157 = vld [vmem:[#allocation5 + $0x1c8] sm:$0xff]
    %v158 = vld [vmem:[#allocation5 + $0x1d0] sm:$0xff]
    %v159 = vld [vmem:[#allocation5 + $0x1d8] sm:$0xff]
    %v160 = vld [vmem:[#allocation5 + $0x1e0] sm:$0xff]
    %v161 = vld [vmem:[#allocation5 + $0x1e8] sm:$0xff]
    %v162 = vld [vmem:[#allocation5 + $0x1f0] sm:$0xff]
    %v163 = vld [vmem:[#allocation5 + $0x1f8] sm:$0xff]
    %v164 = vld [vmem:[#allocation7] sm:$0xff]
    %v165 = vld [vmem:[#allocation7 + $0x8] sm:$0xff]
    %v166 = vld [vmem:[#allocation7 + $0x10] sm:$0xff]
    %v167 = vld [vmem:[#allocation7 + $0x18] sm:$0xff]
    %v168 = vld [vmem:[#allocation7 + $0x20] sm:$0xff]
    %v169 = vld [vmem:[#allocation7 + $0x28] sm:$0xff]
    %v170 = vld [vmem:[#allocation7 + $0x30] sm:$0xff]
    %v171 = vld [vmem:[#allocation7 + $0x38] sm:$0xff]
    %v172 = vld [vmem:[#allocation7 + $0x40] sm:$0xff]
    %v173 = vld [vmem:[#allocation7 + $0x48] sm:$0xff]
    %v174 = vld [vmem:[#allocation7 + $0x50] sm:$0xff]
    %v175 = vld [vmem:[#allocation7 + $0x58] sm:$0xff]
    %v176 = vld [vmem:[#allocation7 + $0x60] sm:$0xff]
    %v177 = vld [vmem:[#allocation7 + $0x68] sm:$0xff]
    %v178 = vld [vmem:[#allocation7 + $0x70] sm:$0xff]
    %v179 = vld [vmem:[#allocation7 + $0x78] sm:$0xff]
    %v180 = vld [vmem:[#allocation7 + $0x80] sm:$0xff]
    %v181 = vld [vmem:[#allocation7 + $0x88] sm:$0xff]
    %v182 = vld [vmem:[#allocation7 + $0x90] sm:$0xff]
    %v183 = vld [vmem:[#allocation7 + $0x98] sm:$0xff]
    %v184 = vld [vmem:[#allocation7 + $0xa0] sm:$0xff]
    %v185 = vld [vmem:[#allocation7 + $0xa8] sm:$0xff]
    %v186 = vld [vmem:[#allocation7 + $0xb0] sm:$0xff]
    %v187 = vld [vmem:[#allocation7 + $0xb8] sm:$0xff]
    %v188 = vld [vmem:[#allocation7 + $0xc0] sm:$0xff]
    %v189 = vld [vmem:[#allocation7 + $0xc8] sm:$0xff]
    %v190 = vld [vmem:[#allocation7 + $0xd0] sm:$0xff]
    %v191 = vld [vmem:[#allocation7 + $0xd8] sm:$0xff]
    %v192 = vld [vmem:[#allocation7 + $0xe0] sm:$0xff]
    %v193 = vld [vmem:[#allocation7 + $0xe8] sm:$0xff]
    %v194 = vld [vmem:[#allocation7 + $0xf0] sm:$0xff]
    %v195 = vld [vmem:[#allocation7 + $0xf8] sm:$0xff]
    %v196 = vld [vmem:[#allocation7 + $0x100] sm:$0xff]
    %v197 = vld [vmem:[#allocation7 + $0x108] sm:$0xff]
    %v198 = vld [vmem:[#allocation7 + $0x110] sm:$0xff]
    %v199 = vld [vmem:[#allocation7 + $0x118] sm:$0xff]
    %v200 = vld [vmem:[#allocation7 + $0x120] sm:$0xff]
    %v201 = vld [vmem:[#allocation7 + $0x128] sm:$0xff]
    %v202 = vld [vmem:[#allocation7 + $0x130] sm:$0xff]
    %v203 = vld [vmem:[#allocation7 + $0x138] sm:$0xff]
    %v204 = vld [vmem:[#allocation7 + $0x140] sm:$0xff]
    %v205 = vld [vmem:[#allocation7 + $0x148] sm:$0xff]
    %v206 = vld [vmem:[#allocation7 + $0x150] sm:$0xff]
    %v207 = vld [vmem:[#allocation7 + $0x158] sm:$0xff]
    %v208 = vld [vmem:[#allocation7 + $0x160] sm:$0xff]
    %v209 = vld [vmem:[#allocation7 + $0x168] sm:$0xff]
    %v210 = vld [vmem:[#allocation7 + $0x170] sm:$0xff]
    %v211 = vld [vmem:[#allocation7 + $0x178] sm:$0xff]
    %v212 = vld [vmem:[#allocation7 + $0x180] sm:$0xff]
    %v213 = vld [vmem:[#allocation7 + $0x188] sm:$0xff]
    %v214 = vld [vmem:[#allocation7 + $0x190] sm:$0xff]
    %v215 = vld [vmem:[#allocation7 + $0x198] sm:$0xff]
    %v216 = vld [vmem:[#allocation7 + $0x1a0] sm:$0xff]
    %v217 = vld [vmem:[#allocation7 + $0x1a8] sm:$0xff]
    %v218 = vld [vmem:[#allocation7 + $0x1b0] sm:$0xff]
    %v219 = vld [vmem:[#allocation7 + $0x1b8] sm:$0xff]
    %v220 = vld [vmem:[#allocation7 + $0x1c0] sm:$0xff]
    %v221 = vld [vmem:[#allocation7 + $0x1c8] sm:$0xff]
    %v222 = vld [vmem:[#allocation7 + $0x1d0] sm:$0xff]
    %v223 = vld [vmem:[#allocation7 + $0x1d8] sm:$0xff]
    %v224 = vld [vmem:[#allocation7 + $0x1e0] sm:$0xff]
    %v225 = vld [vmem:[#allocation7 + $0x1e8] sm:$0xff]
    %v226 = vld [vmem:[#allocation7 + $0x1f0] sm:$0xff]
    %v227 = vld [vmem:[#allocation7 + $0x1f8] sm:$0xff]
    %v228 = vld [vmem:[#allocation7 + $0x200] sm:$0xff]
    %v229 = vld [vmem:[#allocation7 + $0x208] sm:$0xff]
    %v230 = vld [vmem:[#allocation7 + $0x210] sm:$0xff]
    %v231 = vld [vmem:[#allocation7 + $0x218] sm:$0xff]
    %v232 = vld [vmem:[#allocation7 + $0x220] sm:$0xff]
    %v233 = vld [vmem:[#allocation7 + $0x228] sm:$0xff]
    %v234 = vld [vmem:[#allocation7 + $0x230] sm:$0xff]
    %v235 = vld [vmem:[#allocation7 + $0x238] sm:$0xff]
    %v236 = vld [vmem:[#allocation7 + $0x240] sm:$0xff]
    %v237 = vld [vmem:[#allocation7 + $0x248] sm:$0xff]
    %v238 = vld [vmem:[#allocation7 + $0x250] sm:$0xff]
    %v239 = vld [vmem:[#allocation7 + $0x258] sm:$0xff]
    %v240 = vld [vmem:[#allocation7 + $0x260] sm:$0xff]
    %v241 = vld [vmem:[#allocation7 + $0x268] sm:$0xff]
    %v242 = vld [vmem:[#allocation7 + $0x270] sm:$0xff]
    %v243 = vld [vmem:[#allocation7 + $0x278] sm:$0xff]
    %v244 = vld [vmem:[#allocation7 + $0x280] sm:$0xff]
    %v245 = vld [vmem:[#allocation7 + $0x288] sm:$0xff]
    %v246 = vld [vmem:[#allocation7 + $0x290] sm:$0xff]
    %v247 = vld [vmem:[#allocation7 + $0x298] sm:$0xff]
    %v248 = vld [vmem:[#allocation7 + $0x2a0] sm:$0xff]
    %v249 = vld [vmem:[#allocation7 + $0x2a8] sm:$0xff]
    %v250 = vld [vmem:[#allocation7 + $0x2b0] sm:$0xff]
    %v251 = vld [vmem:[#allocation7 + $0x2b8] sm:$0xff]
    %v252 = vld [vmem:[#allocation7 + $0x2c0] sm:$0xff]
    %v253 = vld [vmem:[#allocation7 + $0x2c8] sm:$0xff]
    %v254 = vld [vmem:[#allocation7 + $0x2d0] sm:$0xff]
    %v255 = vld [vmem:[#allocation7 + $0x2d8] sm:$0xff]
    %v256 = vld [vmem:[#allocation7 + $0x2e0] sm:$0xff]
    %v257 = vld [vmem:[#allocation7 + $0x2e8] sm:$0xff]
    %v258 = vld [vmem:[#allocation7 + $0x2f0] sm:$0xff]
    %v259 = vld [vmem:[#allocation7 + $0x2f8] sm:$0xff]
    %v260 = vld [vmem:[#allocation7 + $0x300] sm:$0xff]
    %v261 = vld [vmem:[#allocation7 + $0x308] sm:$0xff]
    %v262 = vld [vmem:[#allocation7 + $0x310] sm:$0xff]
    %v263 = vld [vmem:[#allocation7 + $0x318] sm:$0xff]
    %v264 = vld [vmem:[#allocation7 + $0x320] sm:$0xff]
    %v265 = vld [vmem:[#allocation7 + $0x328] sm:$0xff]
    %v266 = vld [vmem:[#allocation7 + $0x330] sm:$0xff]
    %v267 = vld [vmem:[#allocation7 + $0x338] sm:$0xff]
    %v268 = vld [vmem:[#allocation7 + $0x340] sm:$0xff]
    %v269 = vld [vmem:[#allocation7 + $0x348] sm:$0xff]
    %v270 = vld [vmem:[#allocation7 + $0x350] sm:$0xff]
    %v271 = vld [vmem:[#allocation7 + $0x358] sm:$0xff]
    %v272 = vld [vmem:[#allocation7 + $0x360] sm:$0xff]
    %v273 = vld [vmem:[#allocation7 + $0x368] sm:$0xff]
    %v274 = vld [vmem:[#allocation7 + $0x370] sm:$0xff]
    %v275 = vld [vmem:[#allocation7 + $0x378] sm:$0xff]
    %v276 = vld [vmem:[#allocation7 + $0x380] sm:$0xff]
    %v277 = vld [vmem:[#allocation7 + $0x388] sm:$0xff]
    %v278 = vld [vmem:[#allocation7 + $0x390] sm:$0xff]
    %v279 = vld [vmem:[#allocation7 + $0x398] sm:$0xff]
    %v280 = vld [vmem:[#allocation7 + $0x3a0] sm:$0xff]
    %v281 = vld [vmem:[#allocation7 + $0x3a8] sm:$0xff]
    %v282 = vld [vmem:[#allocation7 + $0x3b0] sm:$0xff]
    %v283 = vld [vmem:[#allocation7 + $0x3b8] sm:$0xff]
    %v284 = vld [vmem:[#allocation7 + $0x3c0] sm:$0xff]
    %v285 = vld [vmem:[#allocation7 + $0x3c8] sm:$0xff]
    %v286 = vld [vmem:[#allocation7 + $0x3d0] sm:$0xff]
    %v287 = vld [vmem:[#allocation7 + $0x3d8] sm:$0xff]
    %v288 = vld [vmem:[#allocation7 + $0x3e0] sm:$0xff]
    %v289 = vld [vmem:[#allocation7 + $0x3e8] sm:$0xff]
    %v290 = vld [vmem:[#allocation7 + $0x3f0] sm:$0xff]
    %v291 = vld [vmem:[#allocation7 + $0x3f8] sm:$0xff]
    %v292 = vld [vmem:[#allocation8] sm:$0xf]
    %v294 = vperm.slane %v292, 0
    %v295 = vperm.slane %v292, 1
    %v296 = vperm.slane %v292, 2
    %v297 = vperm.slane %v292, 3
    %v302 = vld [vmem:[#allocation2] sm:$0xff]
    %303 = vmatpush.msra.mxu0 %v160
    %304 = vmatpush.msra.mxu0 %v156
    %305 = vmatpush.msra.mxu0 %v152
    %306 = vmatpush.msra.mxu0 %v148
    %307 = vmatpush.msra.mxu0 %v144
    %308 = vmatpush.msra.mxu0 %v140
    %309 = vmatpush.msra.mxu0 %v136
    %310 = vmatpush.msra.mxu0 %v132
    %311 = vmatpush.msra.mxu0 %v128
    %312 = vmatpush.msra.mxu0 %v124
    %313 = vmatpush.msra.mxu0 %v120
    %314 = vmatpush.msra.mxu0 %v116
    %315 = vmatpush.msra.mxu0 %v112
    %316 = vmatpush.msra.mxu0 %v108
    %317 = vmatpush.msra.mxu0 %v104
    %318 = vmatpush.msra.mxu0 %v100
    %319 = vmatmul.f32.gmra.mxu0 0.0
    %v320 = vpop.f32.mrf.mxu0
    %v321 = vadd.f32 0.0, %v320
    %322 = vdwg.mxu0
    %323 = vmatpush.msra.mxu0 %v161
    %324 = vmatpush.msra.mxu0 %v157
    %325 = vmatpush.msra.mxu0 %v153
    %326 = vmatpush.msra.mxu0 %v149
    %327 = vmatpush.msra.mxu0 %v145
    %328 = vmatpush.msra.mxu0 %v141
    %329 = vmatpush.msra.mxu0 %v137
    %330 = vmatpush.msra.mxu0 %v133
    %331 = vmatpush.msra.mxu0 %v129
    %332 = vmatpush.msra.mxu0 %v125
    %333 = vmatpush.msra.mxu0 %v121
    %334 = vmatpush.msra.mxu0 %v117
    %335 = vmatpush.msra.mxu0 %v113
    %336 = vmatpush.msra.mxu0 %v109
    %337 = vmatpush.msra.mxu0 %v105
    %338 = vmatpush.msra.mxu0 %v101
    %339 = vmatmul.f32.gmra.mxu0 0.0
    %v340 = vpop.f32.mrf.mxu0
    %v341 = vadd.f32 0.0, %v340
    %342 = vdwg.mxu0
    %343 = vmatpush.msra.mxu0 %v162
    %344 = vmatpush.msra.mxu0 %v158
    %345 = vmatpush.msra.mxu0 %v154
    %346 = vmatpush.msra.mxu0 %v150
    %347 = vmatpush.msra.mxu0 %v146
    %348 = vmatpush.msra.mxu0 %v142
    %349 = vmatpush.msra.mxu0 %v138
    %350 = vmatpush.msra.mxu0 %v134
    %351 = vmatpush.msra.mxu0 %v130
    %352 = vmatpush.msra.mxu0 %v126
    %353 = vmatpush.msra.mxu0 %v122
    %354 = vmatpush.msra.mxu0 %v118
    %355 = vmatpush.msra.mxu0 %v114
    %356 = vmatpush.msra.mxu0 %v110
    %357 = vmatpush.msra.mxu0 %v106
    %358 = vmatpush.msra.mxu0 %v102
    %359 = vmatmul.f32.gmra.mxu0 0.0
    %v360 = vpop.f32.mrf.mxu0
    %v361 = vadd.f32 0.0, %v360
    %362 = vdwg.mxu0
    %363 = vmatpush.msra.mxu0 %v163
    %364 = vmatpush.msra.mxu0 %v159
    %365 = vmatpush.msra.mxu0 %v155
    %366 = vmatpush.msra.mxu0 %v151
    %367 = vmatpush.msra.mxu0 %v147
    %368 = vmatpush.msra.mxu0 %v143
    %369 = vmatpush.msra.mxu0 %v139
    %370 = vmatpush.msra.mxu0 %v135
    %371 = vmatpush.msra.mxu0 %v131
    %372 = vmatpush.msra.mxu0 %v127
    %373 = vmatpush.msra.mxu0 %v123
    %374 = vmatpush.msra.mxu0 %v119
    %375 = vmatpush.msra.mxu0 %v115
    %376 = vmatpush.msra.mxu0 %v111
    %377 = vmatpush.msra.mxu0 %v107
    %378 = vmatpush.msra.mxu0 %v103
    %379 = vmatmul.f32.gmra.mxu0 0.0
    %v380 = vpop.f32.mrf.mxu0
    %v381 = vadd.f32 0.0, %v380
    %382 = vdwg.mxu0
    %v387 = vrot.slane %v341, 6
    %v388 = vrot.slane %v361, 4
    %v389 = vrot.slane %v381, 2
    %vm390 = vcmask 1041408
    %v391 = vsel %vm390, %v321, %v387
    %vm392 = vcmask 1045508
    %v393 = vsel %vm392, %v388, %v389
    %vm394 = vcmask 1043456
    %v395 = vsel %vm394, %v391, %v393
    %v397 = vadd.f32 %v302, %v395
    %v398 = vxor.u32 %v397, 2147483648
    %v399 = vmul.f32 %v398, 1.442695
    %v400 = vpow.pop %v399
    %v401 = vadd.f32 %v400, 1.0
    %v402 = vrcp.pop %v401
    %v403 = vmul.f32 %v401, %v402
    %v404 = vsub.f32 1.0, %v403
    %v405 = vmul.f32 %v402, %v404
    %v406 = vadd.f32 %v402, %v405
    %vm407 = vweird.f32 %v401
    %vm408 = vweird.f32 %v402
    %vm409 = vmor %vm407, %vm408
    %v410 = vsel %vm409, %v402, %v406
    %v411 = vand.u32 2147483647, %v401
    %vm412 = vcmp.eq.f32.partialorder %v411, 8.507059e+37
    %v413 = vand.u32 %v401, 2147483648
    %v414 = vor.u32 1.1754944e-38, %v413
    %v415 = vsel %vm412, %v414, %v410
    %v416 = vmul.f32 1.0, %v415
    %v418 = vrot.slane %v397, 6
    %v420 = vtanh.pop %v418
    %v422 = vrot.slane %v416, 2
    %v424 = vmul.f32 %v422, 0.0
    %v425 = vmul.f32 %v416, %v420
    %v426 = vadd.f32 %v424, %v425
    %v427 = vtanh.pop %v426
    %v428 = vrot.slane %v416, 4
    %v430 = vmul.f32 %v428, %v427
    %431 = vmatpush.msra.mxu0 %v224
    %432 = vmatpush.msra.mxu0 %v220
    %433 = vmatpush.msra.mxu0 %v216
    %434 = vmatpush.msra.mxu0 %v212
    %435 = vmatpush.msra.mxu0 %v208
    %436 = vmatpush.msra.mxu0 %v204
    %437 = vmatpush.msra.mxu0 %v200
    %438 = vmatpush.msra.mxu0 %v196
    %439 = vmatpush.msra.mxu0 %v192
    %440 = vmatpush.msra.mxu0 %v188
    %441 = vmatpush.msra.mxu0 %v184
    %442 = vmatpush.msra.mxu0 %v180
    %443 = vmatpush.msra.mxu0 %v176
    %444 = vmatpush.msra.mxu0 %v172
    %445 = vmatpush.msra.mxu0 %v168
    %446 = vmatpush.msra.mxu0 %v164
    %447 = vmatmul.f32.gmra.mxu0 %v430
    %v448 = vpop.f32.mrf.mxu0
    %v449 = vadd.f32 %v294, %v448
    %450 = vdwg.mxu0
    %451 = vmatpush.msra.mxu0 %v288
    %452 = vmatpush.msra.mxu0 %v284
    %453 = vmatpush.msra.mxu0 %v280
    %454 = vmatpush.msra.mxu0 %v276
    %455 = vmatpush.msra.mxu0 %v272
    %456 = vmatpush.msra.mxu0 %v268
    %457 = vmatpush.msra.mxu0 %v264
    %458 = vmatpush.msra.mxu0 %v260
    %459 = vmatpush.msra.mxu0 %v256
    %460 = vmatpush.msra.mxu0 %v252
    %461 = vmatpush.msra.mxu0 %v248
    %462 = vmatpush.msra.mxu0 %v244
    %463 = vmatpush.msra.mxu0 %v240
    %464 = vmatpush.msra.mxu0 %v236
    %465 = vmatpush.msra.mxu0 %v232
    %466 = vmatpush.msra.mxu0 %v228
    %467 = vmatmul.f32.gmra.mxu0 0.0
    %v468 = vpop.f32.mrf.mxu0
    %v469 = vadd.f32 %v449, %v468
    %470 = vdwg.mxu0
    %471 = vmatpush.msra.mxu0 %v225
    %472 = vmatpush.msra.mxu0 %v221
    %473 = vmatpush.msra.mxu0 %v217
    %474 = vmatpush.msra.mxu0 %v213
    %475 = vmatpush.msra.mxu0 %v209
    %476 = vmatpush.msra.mxu0 %v205
    %477 = vmatpush.msra.mxu0 %v201
    %478 = vmatpush.msra.mxu0 %v197
    %479 = vmatpush.msra.mxu0 %v193
    %480 = vmatpush.msra.mxu0 %v189
    %481 = vmatpush.msra.mxu0 %v185
    %482 = vmatpush.msra.mxu0 %v181
    %483 = vmatpush.msra.mxu0 %v177
    %484 = vmatpush.msra.mxu0 %v173
    %485 = vmatpush.msra.mxu0 %v169
    %486 = vmatpush.msra.mxu0 %v165
    %487 = vmatmul.f32.gmra.mxu0 %v430
    %v488 = vpop.f32.mrf.mxu0
    %v489 = vadd.f32 %v295, %v488
    %490 = vdwg.mxu0
    %491 = vmatpush.msra.mxu0 %v289
    %492 = vmatpush.msra.mxu0 %v285
    %493 = vmatpush.msra.mxu0 %v281
    %494 = vmatpush.msra.mxu0 %v277
    %495 = vmatpush.msra.mxu0 %v273
    %496 = vmatpush.msra.mxu0 %v269
    %497 = vmatpush.msra.mxu0 %v265
    %498 = vmatpush.msra.mxu0 %v261
    %499 = vmatpush.msra.mxu0 %v257
    %500 = vmatpush.msra.mxu0 %v253
    %501 = vmatpush.msra.mxu0 %v249
    %502 = vmatpush.msra.mxu0 %v245
    %503 = vmatpush.msra.mxu0 %v241
    %504 = vmatpush.msra.mxu0 %v237
    %505 = vmatpush.msra.mxu0 %v233
    %506 = vmatpush.msra.mxu0 %v229
    %507 = vmatmul.f32.gmra.mxu0 0.0
    %v508 = vpop.f32.mrf.mxu0
    %v509 = vadd.f32 %v489, %v508
    %510 = vdwg.mxu0
    %511 = vmatpush.msra.mxu0 %v226
    %512 = vmatpush.msra.mxu0 %v222
    %513 = vmatpush.msra.mxu0 %v218
    %514 = vmatpush.msra.mxu0 %v214
    %515 = vmatpush.msra.mxu0 %v210
    %516 = vmatpush.msra.mxu0 %v206
    %517 = vmatpush.msra.mxu0 %v202
    %518 = vmatpush.msra.mxu0 %v198
    %519 = vmatpush.msra.mxu0 %v194
    %520 = vmatpush.msra.mxu0 %v190
    %521 = vmatpush.msra.mxu0 %v186
    %522 = vmatpush.msra.mxu0 %v182
    %523 = vmatpush.msra.mxu0 %v178
    %524 = vmatpush.msra.mxu0 %v174
    %525 = vmatpush.msra.mxu0 %v170
    %526 = vmatpush.msra.mxu0 %v166
    %527 = vmatmul.f32.gmra.mxu0 %v430
    %v528 = vpop.f32.mrf.mxu0
    %v529 = vadd.f32 %v296, %v528
    %530 = vdwg.mxu0
    %531 = vmatpush.msra.mxu0 %v290
    %532 = vmatpush.msra.mxu0 %v286
    %533 = vmatpush.msra.mxu0 %v282
    %534 = vmatpush.msra.mxu0 %v278
    %535 = vmatpush.msra.mxu0 %v274
    %536 = vmatpush.msra.mxu0 %v270
    %537 = vmatpush.msra.mxu0 %v266
    %538 = vmatpush.msra.mxu0 %v262
    %539 = vmatpush.msra.mxu0 %v258
    %540 = vmatpush.msra.mxu0 %v254
    %541 = vmatpush.msra.mxu0 %v250
    %542 = vmatpush.msra.mxu0 %v246
    %543 = vmatpush.msra.mxu0 %v242
    %544 = vmatpush.msra.mxu0 %v238
    %545 = vmatpush.msra.mxu0 %v234
    %546 = vmatpush.msra.mxu0 %v230
    %547 = vmatmul.f32.gmra.mxu0 0.0
    %v548 = vpop.f32.mrf.mxu0
    %v549 = vadd.f32 %v529, %v548
    %550 = vdwg.mxu0
    %551 = vmatpush.msra.mxu0 %v227
    %552 = vmatpush.msra.mxu0 %v223
    %553 = vmatpush.msra.mxu0 %v219
    %554 = vmatpush.msra.mxu0 %v215
    %555 = vmatpush.msra.mxu0 %v211
    %556 = vmatpush.msra.mxu0 %v207
    %557 = vmatpush.msra.mxu0 %v203
    %558 = vmatpush.msra.mxu0 %v199
    %559 = vmatpush.msra.mxu0 %v195
    %560 = vmatpush.msra.mxu0 %v191
    %561 = vmatpush.msra.mxu0 %v187
    %562 = vmatpush.msra.mxu0 %v183
    %563 = vmatpush.msra.mxu0 %v179
    %564 = vmatpush.msra.mxu0 %v175
    %565 = vmatpush.msra.mxu0 %v171
    %566 = vmatpush.msra.mxu0 %v167
    %567 = vmatmul.f32.gmra.mxu0 %v430
    %v568 = vpop.f32.mrf.mxu0
    %v569 = vadd.f32 %v297, %v568
    %570 = vdwg.mxu0
    %571 = vmatpush.msra.mxu0 %v291
    %572 = vmatpush.msra.mxu0 %v287
    %573 = vmatpush.msra.mxu0 %v283
    %574 = vmatpush.msra.mxu0 %v279
    %575 = vmatpush.msra.mxu0 %v275
    %576 = vmatpush.msra.mxu0 %v271
    %577 = vmatpush.msra.mxu0 %v267
    %578 = vmatpush.msra.mxu0 %v263
    %579 = vmatpush.msra.mxu0 %v259
    %580 = vmatpush.msra.mxu0 %v255
    %581 = vmatpush.msra.mxu0 %v251
    %582 = vmatpush.msra.mxu0 %v247
    %583 = vmatpush.msra.mxu0 %v243
    %584 = vmatpush.msra.mxu0 %v239
    %585 = vmatpush.msra.mxu0 %v235
    %586 = vmatpush.msra.mxu0 %v231
    %587 = vmatmul.f32.gmra.mxu0 0.0
    %v588 = vpop.f32.mrf.mxu0
    %v589 = vadd.f32 %v569, %v588
    %590 = vdwg.mxu0
    %v591 = vxor.u32 %v469, 2147483648
    %v592 = vxor.u32 %v509, 2147483648
    %v593 = vxor.u32 %v549, 2147483648
    %v594 = vmul.f32 %v591, 1.442695
    %v595 = vpow.pop %v594
    %v596 = vmul.f32 %v592, 1.442695
    %v597 = vpow.pop %v596
    %v598 = vmul.f32 %v593, 1.442695
    %v599 = vpow.pop %v598
    %v600 = vadd.f32 %v595, 1.0
    %v601 = vadd.f32 %v597, 1.0
    %v602 = vadd.f32 %v599, 1.0
    %v603 = vrcp.pop %v600
    %v604 = vmul.f32 %v600, %v603
    %v605 = vsub.f32 1.0, %v604
    %v606 = vmul.f32 %v603, %v605
    %v607 = vadd.f32 %v603, %v606
    %vm608 = vweird.f32 %v600
    %vm609 = vweird.f32 %v603
    %vm610 = vmor %vm608, %vm609
    %v611 = vsel %vm610, %v603, %v607
    %v612 = vand.u32 2147483647, %v600
    %vm613 = vcmp.eq.f32.partialorder %v612, 8.507059e+37
    %v614 = vand.u32 %v600, 2147483648
    %v615 = vor.u32 1.1754944e-38, %v614
    %v616 = vsel %vm613, %v615, %v611
    %v617 = vmul.f32 1.0, %v616
    %v618 = vrcp.pop %v601
    %v619 = vmul.f32 %v601, %v618
    %v620 = vsub.f32 1.0, %v619
    %v621 = vmul.f32 %v618, %v620
    %v622 = vadd.f32 %v618, %v621
    %vm623 = vweird.f32 %v601
    %vm624 = vweird.f32 %v618
    %vm625 = vmor %vm623, %vm624
    %v626 = vsel %vm625, %v618, %v622
    %v627 = vand.u32 2147483647, %v601
    %vm628 = vcmp.eq.f32.partialorder %v627, 8.507059e+37
    %v629 = vand.u32 %v601, 2147483648
    %v630 = vor.u32 1.1754944e-38, %v629
    %v631 = vsel %vm628, %v630, %v626
    %v632 = vmul.f32 1.0, %v631
    %v633 = vrcp.pop %v602
    %v634 = vmul.f32 %v602, %v633
    %v635 = vsub.f32 1.0, %v634
    %v636 = vmul.f32 %v633, %v635
    %v637 = vadd.f32 %v633, %v636
    %vm638 = vweird.f32 %v602
    %vm639 = vweird.f32 %v633
    %vm640 = vmor %vm638, %vm639
    %v641 = vsel %vm640, %v633, %v637
    %v642 = vand.u32 2147483647, %v602
    %vm643 = vcmp.eq.f32.partialorder %v642, 8.507059e+37
    %v644 = vand.u32 %v602, 2147483648
    %v645 = vor.u32 1.1754944e-38, %v644
    %v646 = vsel %vm643, %v645, %v641
    %v647 = vmul.f32 1.0, %v646
    %v648 = vtanh.pop %v589
    %v649 = vmul.f32 %v632, 0.0
    %v650 = vmul.f32 %v617, %v648
    %v651 = vadd.f32 %v649, %v650
    %v652 = vtanh.pop %v651
    %v653 = vmul.f32 %v647, %v652
    %s654 = scalar_lea.vmem [#allocation2], 8
    %v655 = vld [vmem:[%s654] sm:$0xff]
    %656 = vmatpush.msra.mxu0 %v160
    %657 = vmatpush.msra.mxu0 %v156
    %658 = vmatpush.msra.mxu0 %v152
    %659 = vmatpush.msra.mxu0 %v148
    %660 = vmatpush.msra.mxu0 %v144
    %661 = vmatpush.msra.mxu0 %v140
    %662 = vmatpush.msra.mxu0 %v136
    %663 = vmatpush.msra.mxu0 %v132
    %664 = vmatpush.msra.mxu0 %v128
    %665 = vmatpush.msra.mxu0 %v124
    %666 = vmatpush.msra.mxu0 %v120
    %667 = vmatpush.msra.mxu0 %v116
    %668 = vmatpush.msra.mxu0 %v112
    %669 = vmatpush.msra.mxu0 %v108
    %670 = vmatpush.msra.mxu0 %v104
    %671 = vmatpush.msra.mxu0 %v100
    %672 = vmatmul.f32.gmra.mxu0 %v430
    %v673 = vpop.f32.mrf.mxu0
    %v674 = vadd.f32 0.0, %v673
    %675 = vdwg.mxu0
    %676 = vmatpush.msra.mxu0 %v161
    %677 = vmatpush.msra.mxu0 %v157
    %678 = vmatpush.msra.mxu0 %v153
    %679 = vmatpush.msra.mxu0 %v149
    %680 = vmatpush.msra.mxu0 %v145
    %681 = vmatpush.msra.mxu0 %v141
    %682 = vmatpush.msra.mxu0 %v137
    %683 = vmatpush.msra.mxu0 %v133
    %684 = vmatpush.msra.mxu0 %v129
    %685 = vmatpush.msra.mxu0 %v125
    %686 = vmatpush.msra.mxu0 %v121
    %687 = vmatpush.msra.mxu0 %v117
    %688 = vmatpush.msra.mxu0 %v113
    %689 = vmatpush.msra.mxu0 %v109
    %690 = vmatpush.msra.mxu0 %v105
    %691 = vmatpush.msra.mxu0 %v101
    %692 = vmatmul.f32.gmra.mxu0 %v430
    %v693 = vpop.f32.mrf.mxu0
    %v694 = vadd.f32 0.0, %v693
    %695 = vdwg.mxu0
    %696 = vmatpush.msra.mxu0 %v162
    %697 = vmatpush.msra.mxu0 %v158
    %698 = vmatpush.msra.mxu0 %v154
    %699 = vmatpush.msra.mxu0 %v150
    %700 = vmatpush.msra.mxu0 %v146
    %701 = vmatpush.msra.mxu0 %v142
    %702 = vmatpush.msra.mxu0 %v138
    %703 = vmatpush.msra.mxu0 %v134
    %704 = vmatpush.msra.mxu0 %v130
    %705 = vmatpush.msra.mxu0 %v126
    %706 = vmatpush.msra.mxu0 %v122
    %707 = vmatpush.msra.mxu0 %v118
    %708 = vmatpush.msra.mxu0 %v114
    %709 = vmatpush.msra.mxu0 %v110
    %710 = vmatpush.msra.mxu0 %v106
    %711 = vmatpush.msra.mxu0 %v102
    %712 = vmatmul.f32.gmra.mxu0 %v430
    %v713 = vpop.f32.mrf.mxu0
    %v714 = vadd.f32 0.0, %v713
    %715 = vdwg.mxu0
    %716 = vmatpush.msra.mxu0 %v163
    %717 = vmatpush.msra.mxu0 %v159
    %718 = vmatpush.msra.mxu0 %v155
    %719 = vmatpush.msra.mxu0 %v151
    %720 = vmatpush.msra.mxu0 %v147
    %721 = vmatpush.msra.mxu0 %v143
    %722 = vmatpush.msra.mxu0 %v139
    %723 = vmatpush.msra.mxu0 %v135
    %724 = vmatpush.msra.mxu0 %v131
    %725 = vmatpush.msra.mxu0 %v127
    %726 = vmatpush.msra.mxu0 %v123
    %727 = vmatpush.msra.mxu0 %v119
    %728 = vmatpush.msra.mxu0 %v115
    %729 = vmatpush.msra.mxu0 %v111
    %730 = vmatpush.msra.mxu0 %v107
    %731 = vmatpush.msra.mxu0 %v103
    %732 = vmatmul.f32.gmra.mxu0 %v430
    %v733 = vpop.f32.mrf.mxu0
    %v734 = vadd.f32 0.0, %v733
    %735 = vdwg.mxu0
    %v740 = vrot.slane %v694, 6
    %v741 = vrot.slane %v714, 4
    %v742 = vrot.slane %v734, 2
    %v743 = vsel %vm390, %v674, %v740
    %v744 = vsel %vm392, %v741, %v742
    %v745 = vsel %vm394, %v743, %v744
    %v747 = vadd.f32 %v655, %v745
    %v748 = vxor.u32 %v747, 2147483648
    %v749 = vmul.f32 %v748, 1.442695
    %v750 = vpow.pop %v749
    %v751 = vadd.f32 %v750, 1.0
    %v752 = vrcp.pop %v751
    %v753 = vmul.f32 %v751, %v752
    %v754 = vsub.f32 1.0, %v753
    %v755 = vmul.f32 %v752, %v754
    %v756 = vadd.f32 %v752, %v755
    %vm757 = vweird.f32 %v751
    %vm758 = vweird.f32 %v752
    %vm759 = vmor %vm757, %vm758
    %v760 = vsel %vm759, %v752, %v756
    %v761 = vand.u32 2147483647, %v751
    %vm762 = vcmp.eq.f32.partialorder %v761, 8.507059e+37
    %v763 = vand.u32 %v751, 2147483648
    %v764 = vor.u32 1.1754944e-38, %v763
    %v765 = vsel %vm762, %v764, %v760
    %v766 = vmul.f32 1.0, %v765
    %v768 = vrot.slane %v747, 6
    %v770 = vtanh.pop %v768
    %v772 = vrot.slane %v766, 2
    %v774 = vmul.f32 %v772, %v426
    %v775 = vmul.f32 %v766, %v770
    %v776 = vadd.f32 %v774, %v775
    %v777 = vtanh.pop %v776
    %v778 = vrot.slane %v766, 4
    %v780 = vmul.f32 %v778, %v777
    %781 = vmatpush.msra.mxu0 %v224
    %782 = vmatpush.msra.mxu0 %v220
    %783 = vmatpush.msra.mxu0 %v216
    %784 = vmatpush.msra.mxu0 %v212
    %785 = vmatpush.msra.mxu0 %v208
    %786 = vmatpush.msra.mxu0 %v204
    %787 = vmatpush.msra.mxu0 %v200
    %788 = vmatpush.msra.mxu0 %v196
    %789 = vmatpush.msra.mxu0 %v192
    %790 = vmatpush.msra.mxu0 %v188
    %791 = vmatpush.msra.mxu0 %v184
    %792 = vmatpush.msra.mxu0 %v180
    %793 = vmatpush.msra.mxu0 %v176
    %794 = vmatpush.msra.mxu0 %v172
    %795 = vmatpush.msra.mxu0 %v168
    %796 = vmatpush.msra.mxu0 %v164
    %797 = vmatmul.f32.gmra.mxu0 %v780
    %v798 = vpop.f32.mrf.mxu0
    %v799 = vadd.f32 %v294, %v798
    %800 = vdwg.mxu0
    %801 = vmatpush.msra.mxu0 %v288
    %802 = vmatpush.msra.mxu0 %v284
    %803 = vmatpush.msra.mxu0 %v280
    %804 = vmatpush.msra.mxu0 %v276
    %805 = vmatpush.msra.mxu0 %v272
    %806 = vmatpush.msra.mxu0 %v268
    %807 = vmatpush.msra.mxu0 %v264
    %808 = vmatpush.msra.mxu0 %v260
    %809 = vmatpush.msra.mxu0 %v256
    %810 = vmatpush.msra.mxu0 %v252
    %811 = vmatpush.msra.mxu0 %v248
    %812 = vmatpush.msra.mxu0 %v244
    %813 = vmatpush.msra.mxu0 %v240
    %814 = vmatpush.msra.mxu0 %v236
    %815 = vmatpush.msra.mxu0 %v232
    %816 = vmatpush.msra.mxu0 %v228
    %817 = vmatmul.f32.gmra.mxu0 %v653
    %v818 = vpop.f32.mrf.mxu0
    %v819 = vadd.f32 %v799, %v818
    %820 = vdwg.mxu0
    %821 = vmatpush.msra.mxu0 %v225
    %822 = vmatpush.msra.mxu0 %v221
    %823 = vmatpush.msra.mxu0 %v217
    %824 = vmatpush.msra.mxu0 %v213
    %825 = vmatpush.msra.mxu0 %v209
    %826 = vmatpush.msra.mxu0 %v205
    %827 = vmatpush.msra.mxu0 %v201
    %828 = vmatpush.msra.mxu0 %v197
    %829 = vmatpush.msra.mxu0 %v193
    %830 = vmatpush.msra.mxu0 %v189
    %831 = vmatpush.msra.mxu0 %v185
    %832 = vmatpush.msra.mxu0 %v181
    %833 = vmatpush.msra.mxu0 %v177
    %834 = vmatpush.msra.mxu0 %v173
    %835 = vmatpush.msra.mxu0 %v169
    %836 = vmatpush.msra.mxu0 %v165
    %837 = vmatmul.f32.gmra.mxu0 %v780
    %v838 = vpop.f32.mrf.mxu0
    %v839 = vadd.f32 %v295, %v838
    %840 = vdwg.mxu0
    %841 = vmatpush.msra.mxu0 %v289
    %842 = vmatpush.msra.mxu0 %v285
    %843 = vmatpush.msra.mxu0 %v281
    %844 = vmatpush.msra.mxu0 %v277
    %845 = vmatpush.msra.mxu0 %v273
    %846 = vmatpush.msra.mxu0 %v269
    %847 = vmatpush.msra.mxu0 %v265
    %848 = vmatpush.msra.mxu0 %v261
    %849 = vmatpush.msra.mxu0 %v257
    %850 = vmatpush.msra.mxu0 %v253
    %851 = vmatpush.msra.mxu0 %v249
    %852 = vmatpush.msra.mxu0 %v245
    %853 = vmatpush.msra.mxu0 %v241
    %854 = vmatpush.msra.mxu0 %v237
    %855 = vmatpush.msra.mxu0 %v233
    %856 = vmatpush.msra.mxu0 %v229
    %857 = vmatmul.f32.gmra.mxu0 %v653
    %v858 = vpop.f32.mrf.mxu0
    %v859 = vadd.f32 %v839, %v858
    %860 = vdwg.mxu0
    %861 = vmatpush.msra.mxu0 %v226
    %862 = vmatpush.msra.mxu0 %v222
    %863 = vmatpush.msra.mxu0 %v218
    %864 = vmatpush.msra.mxu0 %v214
    %865 = vmatpush.msra.mxu0 %v210
    %866 = vmatpush.msra.mxu0 %v206
    %867 = vmatpush.msra.mxu0 %v202
    %868 = vmatpush.msra.mxu0 %v198
    %869 = vmatpush.msra.mxu0 %v194
    %870 = vmatpush.msra.mxu0 %v190
    %871 = vmatpush.msra.mxu0 %v186
    %872 = vmatpush.msra.mxu0 %v182
    %873 = vmatpush.msra.mxu0 %v178
    %874 = vmatpush.msra.mxu0 %v174
    %875 = vmatpush.msra.mxu0 %v170
    %876 = vmatpush.msra.mxu0 %v166
    %877 = vmatmul.f32.gmra.mxu0 %v780
    %v878 = vpop.f32.mrf.mxu0
    %v879 = vadd.f32 %v296, %v878
    %880 = vdwg.mxu0
    %881 = vmatpush.msra.mxu0 %v290
    %882 = vmatpush.msra.mxu0 %v286
    %883 = vmatpush.msra.mxu0 %v282
    %884 = vmatpush.msra.mxu0 %v278
    %885 = vmatpush.msra.mxu0 %v274
    %886 = vmatpush.msra.mxu0 %v270
    %887 = vmatpush.msra.mxu0 %v266
    %888 = vmatpush.msra.mxu0 %v262
    %889 = vmatpush.msra.mxu0 %v258
    %890 = vmatpush.msra.mxu0 %v254
    %891 = vmatpush.msra.mxu0 %v250
    %892 = vmatpush.msra.mxu0 %v246
    %893 = vmatpush.msra.mxu0 %v242
    %894 = vmatpush.msra.mxu0 %v238
    %895 = vmatpush.msra.mxu0 %v234
    %896 = vmatpush.msra.mxu0 %v230
    %897 = vmatmul.f32.gmra.mxu0 %v653
    %v898 = vpop.f32.mrf.mxu0
    %v899 = vadd.f32 %v879, %v898
    %900 = vdwg.mxu0
    %901 = vmatpush.msra.mxu0 %v227
    %902 = vmatpush.msra.mxu0 %v223
    %903 = vmatpush.msra.mxu0 %v219
    %904 = vmatpush.msra.mxu0 %v215
    %905 = vmatpush.msra.mxu0 %v211
    %906 = vmatpush.msra.mxu0 %v207
    %907 = vmatpush.msra.mxu0 %v203
    %908 = vmatpush.msra.mxu0 %v199
    %909 = vmatpush.msra.mxu0 %v195
    %910 = vmatpush.msra.mxu0 %v191
    %911 = vmatpush.msra.mxu0 %v187
    %912 = vmatpush.msra.mxu0 %v183
    %913 = vmatpush.msra.mxu0 %v179
    %914 = vmatpush.msra.mxu0 %v175
    %915 = vmatpush.msra.mxu0 %v171
    %916 = vmatpush.msra.mxu0 %v167
    %917 = vmatmul.f32.gmra.mxu0 %v780
    %v918 = vpop.f32.mrf.mxu0
    %v919 = vadd.f32 %v297, %v918
    %920 = vdwg.mxu0
    %921 = vmatpush.msra.mxu0 %v291
    %922 = vmatpush.msra.mxu0 %v287
    %923 = vmatpush.msra.mxu0 %v283
    %924 = vmatpush.msra.mxu0 %v279
    %925 = vmatpush.msra.mxu0 %v275
    %926 = vmatpush.msra.mxu0 %v271
    %927 = vmatpush.msra.mxu0 %v267
    %928 = vmatpush.msra.mxu0 %v263
    %929 = vmatpush.msra.mxu0 %v259
    %930 = vmatpush.msra.mxu0 %v255
    %931 = vmatpush.msra.mxu0 %v251
    %932 = vmatpush.msra.mxu0 %v247
    %933 = vmatpush.msra.mxu0 %v243
    %934 = vmatpush.msra.mxu0 %v239
    %935 = vmatpush.msra.mxu0 %v235
    %936 = vmatpush.msra.mxu0 %v231
    %937 = vmatmul.f32.gmra.mxu0 %v653
    %v938 = vpop.f32.mrf.mxu0
    %v939 = vadd.f32 %v919, %v938
    %940 = vdwg.mxu0
    %v941 = vxor.u32 %v819, 2147483648
    %v942 = vxor.u32 %v859, 2147483648
    %v943 = vxor.u32 %v899, 2147483648
    %v944 = vmul.f32 %v941, 1.442695
    %v945 = vpow.pop %v944
    %v946 = vmul.f32 %v942, 1.442695
    %v947 = vpow.pop %v946
    %v948 = vmul.f32 %v943, 1.442695
    %v949 = vpow.pop %v948
    %v950 = vadd.f32 %v945, 1.0
    %v951 = vadd.f32 %v947, 1.0
    %v952 = vadd.f32 %v949, 1.0
    %v953 = vrcp.pop %v950
    %v954 = vmul.f32 %v950, %v953
    %v955 = vsub.f32 1.0, %v954
    %v956 = vmul.f32 %v953, %v955
    %v957 = vadd.f32 %v953, %v956
    %vm958 = vweird.f32 %v950
    %vm959 = vweird.f32 %v953
    %vm960 = vmor %vm958, %vm959
    %v961 = vsel %vm960, %v953, %v957
    %v962 = vand.u32 2147483647, %v950
    %vm963 = vcmp.eq.f32.partialorder %v962, 8.507059e+37
    %v964 = vand.u32 %v950, 2147483648
    %v965 = vor.u32 1.1754944e-38, %v964
    %v966 = vsel %vm963, %v965, %v961
    %v967 = vmul.f32 1.0, %v966
    %v968 = vrcp.pop %v951
    %v969 = vmul.f32 %v951, %v968
    %v970 = vsub.f32 1.0, %v969
    %v971 = vmul.f32 %v968, %v970
    %v972 = vadd.f32 %v968, %v971
    %vm973 = vweird.f32 %v951
    %vm974 = vweird.f32 %v968
    %vm975 = vmor %vm973, %vm974
    %v976 = vsel %vm975, %v968, %v972
    %v977 = vand.u32 2147483647, %v951
    %vm978 = vcmp.eq.f32.partialorder %v977, 8.507059e+37
    %v979 = vand.u32 %v951, 2147483648
    %v980 = vor.u32 1.1754944e-38, %v979
    %v981 = vsel %vm978, %v980, %v976
    %v982 = vmul.f32 1.0, %v981
    %v983 = vrcp.pop %v952
    %v984 = vmul.f32 %v952, %v983
    %v985 = vsub.f32 1.0, %v984
    %v986 = vmul.f32 %v983, %v985
    %v987 = vadd.f32 %v983, %v986
    %vm988 = vweird.f32 %v952
    %vm989 = vweird.f32 %v983
    %vm990 = vmor %vm988, %vm989
    %v991 = vsel %vm990, %v983, %v987
    %v992 = vand.u32 2147483647, %v952
    %vm993 = vcmp.eq.f32.partialorder %v992, 8.507059e+37
    %v994 = vand.u32 %v952, 2147483648
    %v995 = vor.u32 1.1754944e-38, %v994
    %v996 = vsel %vm993, %v995, %v991
    %v997 = vmul.f32 1.0, %v996
    %v998 = vtanh.pop %v939
    %v999 = vmul.f32 %v982, %v651
    %v1000 = vmul.f32 %v967, %v998
    %v1001 = vadd.f32 %v999, %v1000
    %v1002 = vtanh.pop %v1001
    %v1003 = vmul.f32 %v997, %v1002
    %s1004 = scalar_lea.vmem [#allocation2], 16
    %v1005 = vld [vmem:[%s1004] sm:$0xff]
    %1006 = vmatpush.msra.mxu0 %v160
    %1007 = vmatpush.msra.mxu0 %v156
    %1008 = vmatpush.msra.mxu0 %v152
    %1009 = vmatpush.msra.mxu0 %v148
    %1010 = vmatpush.msra.mxu0 %v144
    %1011 = vmatpush.msra.mxu0 %v140
    %1012 = vmatpush.msra.mxu0 %v136
    %1013 = vmatpush.msra.mxu0 %v132
    %1014 = vmatpush.msra.mxu0 %v128
    %1015 = vmatpush.msra.mxu0 %v124
    %1016 = vmatpush.msra.mxu0 %v120
    %1017 = vmatpush.msra.mxu0 %v116
    %1018 = vmatpush.msra.mxu0 %v112
    %1019 = vmatpush.msra.mxu0 %v108
    %1020 = vmatpush.msra.mxu0 %v104
    %1021 = vmatpush.msra.mxu0 %v100
    %1022 = vmatmul.f32.gmra.mxu0 %v780
    %v1023 = vpop.f32.mrf.mxu0
    %v1024 = vadd.f32 0.0, %v1023
    %1025 = vdwg.mxu0
    %1026 = vmatpush.msra.mxu0 %v161
    %1027 = vmatpush.msra.mxu0 %v157
    %1028 = vmatpush.msra.mxu0 %v153
    %1029 = vmatpush.msra.mxu0 %v149
    %1030 = vmatpush.msra.mxu0 %v145
    %1031 = vmatpush.msra.mxu0 %v141
    %1032 = vmatpush.msra.mxu0 %v137
    %1033 = vmatpush.msra.mxu0 %v133
    %1034 = vmatpush.msra.mxu0 %v129
    %1035 = vmatpush.msra.mxu0 %v125
    %1036 = vmatpush.msra.mxu0 %v121
    %1037 = vmatpush.msra.mxu0 %v117
    %1038 = vmatpush.msra.mxu0 %v113
    %1039 = vmatpush.msra.mxu0 %v109
    %1040 = vmatpush.msra.mxu0 %v105
    %1041 = vmatpush.msra.mxu0 %v101
    %1042 = vmatmul.f32.gmra.mxu0 %v780
    %v1043 = vpop.f32.mrf.mxu0
    %v1044 = vadd.f32 0.0, %v1043
    %1045 = vdwg.mxu0
    %1046 = vmatpush.msra.mxu0 %v162
    %1047 = vmatpush.msra.mxu0 %v158
    %1048 = vmatpush.msra.mxu0 %v154
    %1049 = vmatpush.msra.mxu0 %v150
    %1050 = vmatpush.msra.mxu0 %v146
    %1051 = vmatpush.msra.mxu0 %v142
    %1052 = vmatpush.msra.mxu0 %v138
    %1053 = vmatpush.msra.mxu0 %v134
    %1054 = vmatpush.msra.mxu0 %v130
    %1055 = vmatpush.msra.mxu0 %v126
    %1056 = vmatpush.msra.mxu0 %v122
    %1057 = vmatpush.msra.mxu0 %v118
    %1058 = vmatpush.msra.mxu0 %v114
    %1059 = vmatpush.msra.mxu0 %v110
    %1060 = vmatpush.msra.mxu0 %v106
    %1061 = vmatpush.msra.mxu0 %v102
    %1062 = vmatmul.f32.gmra.mxu0 %v780
    %v1063 = vpop.f32.mrf.mxu0
    %v1064 = vadd.f32 0.0, %v1063
    %1065 = vdwg.mxu0
    %1066 = vmatpush.msra.mxu0 %v163
    %1067 = vmatpush.msra.mxu0 %v159
    %1068 = vmatpush.msra.mxu0 %v155
    %1069 = vmatpush.msra.mxu0 %v151
    %1070 = vmatpush.msra.mxu0 %v147
    %1071 = vmatpush.msra.mxu0 %v143
    %1072 = vmatpush.msra.mxu0 %v139
    %1073 = vmatpush.msra.mxu0 %v135
    %1074 = vmatpush.msra.mxu0 %v131
    %1075 = vmatpush.msra.mxu0 %v127
    %1076 = vmatpush.msra.mxu0 %v123
    %1077 = vmatpush.msra.mxu0 %v119
    %1078 = vmatpush.msra.mxu0 %v115
    %1079 = vmatpush.msra.mxu0 %v111
    %1080 = vmatpush.msra.mxu0 %v107
    %1081 = vmatpush.msra.mxu0 %v103
    %1082 = vmatmul.f32.gmra.mxu0 %v780
    %v1083 = vpop.f32.mrf.mxu0
    %v1084 = vadd.f32 0.0, %v1083
    %1085 = vdwg.mxu0
    %v1090 = vrot.slane %v1044, 6
    %v1091 = vrot.slane %v1064, 4
    %v1092 = vrot.slane %v1084, 2
    %v1093 = vsel %vm390, %v1024, %v1090
    %v1094 = vsel %vm392, %v1091, %v1092
    %v1095 = vsel %vm394, %v1093, %v1094
    %v1097 = vadd.f32 %v1005, %v1095
    %v1098 = vxor.u32 %v1097, 2147483648
    %v1099 = vmul.f32 %v1098, 1.442695
    %v1100 = vpow.pop %v1099
    %v1101 = vadd.f32 %v1100, 1.0
    %v1102 = vrcp.pop %v1101
    %v1103 = vmul.f32 %v1101, %v1102
    %v1104 = vsub.f32 1.0, %v1103
    %v1105 = vmul.f32 %v1102, %v1104
    %v1106 = vadd.f32 %v1102, %v1105
    %vm1107 = vweird.f32 %v1101
    %vm1108 = vweird.f32 %v1102
    %vm1109 = vmor %vm1107, %vm1108
    %v1110 = vsel %vm1109, %v1102, %v1106
    %v1111 = vand.u32 2147483647, %v1101
    %vm1112 = vcmp.eq.f32.partialorder %v1111, 8.507059e+37
    %v1113 = vand.u32 %v1101, 2147483648
    %v1114 = vor.u32 1.1754944e-38, %v1113
    %v1115 = vsel %vm1112, %v1114, %v1110
    %v1116 = vmul.f32 1.0, %v1115
    %v1118 = vrot.slane %v1097, 6
    %v1120 = vtanh.pop %v1118
    %v1122 = vrot.slane %v1116, 2
    %v1124 = vmul.f32 %v1122, %v776
    %v1125 = vmul.f32 %v1116, %v1120
    %v1126 = vadd.f32 %v1124, %v1125
    %v1127 = vtanh.pop %v1126
    %v1128 = vrot.slane %v1116, 4
    %v1130 = vmul.f32 %v1128, %v1127
    %1131 = vmatpush.msra.mxu0 %v224
    %1132 = vmatpush.msra.mxu0 %v220
    %1133 = vmatpush.msra.mxu0 %v216
    %1134 = vmatpush.msra.mxu0 %v212
    %1135 = vmatpush.msra.mxu0 %v208
    %1136 = vmatpush.msra.mxu0 %v204
    %1137 = vmatpush.msra.mxu0 %v200
    %1138 = vmatpush.msra.mxu0 %v196
    %1139 = vmatpush.msra.mxu0 %v192
    %1140 = vmatpush.msra.mxu0 %v188
    %1141 = vmatpush.msra.mxu0 %v184
    %1142 = vmatpush.msra.mxu0 %v180
    %1143 = vmatpush.msra.mxu0 %v176
    %1144 = vmatpush.msra.mxu0 %v172
    %1145 = vmatpush.msra.mxu0 %v168
    %1146 = vmatpush.msra.mxu0 %v164
    %1147 = vmatmul.f32.gmra.mxu0 %v1130
    %v1148 = vpop.f32.mrf.mxu0
    %v1149 = vadd.f32 %v294, %v1148
    %1150 = vdwg.mxu0
    %1151 = vmatpush.msra.mxu0 %v288
    %1152 = vmatpush.msra.mxu0 %v284
    %1153 = vmatpush.msra.mxu0 %v280
    %1154 = vmatpush.msra.mxu0 %v276
    %1155 = vmatpush.msra.mxu0 %v272
    %1156 = vmatpush.msra.mxu0 %v268
    %1157 = vmatpush.msra.mxu0 %v264
    %1158 = vmatpush.msra.mxu0 %v260
    %1159 = vmatpush.msra.mxu0 %v256
    %1160 = vmatpush.msra.mxu0 %v252
    %1161 = vmatpush.msra.mxu0 %v248
    %1162 = vmatpush.msra.mxu0 %v244
    %1163 = vmatpush.msra.mxu0 %v240
    %1164 = vmatpush.msra.mxu0 %v236
    %1165 = vmatpush.msra.mxu0 %v232
    %1166 = vmatpush.msra.mxu0 %v228
    %1167 = vmatmul.f32.gmra.mxu0 %v1003
    %v1168 = vpop.f32.mrf.mxu0
    %v1169 = vadd.f32 %v1149, %v1168
    %1170 = vdwg.mxu0
    %1171 = vmatpush.msra.mxu0 %v225
    %1172 = vmatpush.msra.mxu0 %v221
    %1173 = vmatpush.msra.mxu0 %v217
    %1174 = vmatpush.msra.mxu0 %v213
    %1175 = vmatpush.msra.mxu0 %v209
    %1176 = vmatpush.msra.mxu0 %v205
    %1177 = vmatpush.msra.mxu0 %v201
    %1178 = vmatpush.msra.mxu0 %v197
    %1179 = vmatpush.msra.mxu0 %v193
    %1180 = vmatpush.msra.mxu0 %v189
    %1181 = vmatpush.msra.mxu0 %v185
    %1182 = vmatpush.msra.mxu0 %v181
    %1183 = vmatpush.msra.mxu0 %v177
    %1184 = vmatpush.msra.mxu0 %v173
    %1185 = vmatpush.msra.mxu0 %v169
    %1186 = vmatpush.msra.mxu0 %v165
    %1187 = vmatmul.f32.gmra.mxu0 %v1130
    %v1188 = vpop.f32.mrf.mxu0
    %v1189 = vadd.f32 %v295, %v1188
    %1190 = vdwg.mxu0
    %1191 = vmatpush.msra.mxu0 %v289
    %1192 = vmatpush.msra.mxu0 %v285
    %1193 = vmatpush.msra.mxu0 %v281
    %1194 = vmatpush.msra.mxu0 %v277
    %1195 = vmatpush.msra.mxu0 %v273
    %1196 = vmatpush.msra.mxu0 %v269
    %1197 = vmatpush.msra.mxu0 %v265
    %1198 = vmatpush.msra.mxu0 %v261
    %1199 = vmatpush.msra.mxu0 %v257
    %1200 = vmatpush.msra.mxu0 %v253
    %1201 = vmatpush.msra.mxu0 %v249
    %1202 = vmatpush.msra.mxu0 %v245
    %1203 = vmatpush.msra.mxu0 %v241
    %1204 = vmatpush.msra.mxu0 %v237
    %1205 = vmatpush.msra.mxu0 %v233
    %1206 = vmatpush.msra.mxu0 %v229
    %1207 = vmatmul.f32.gmra.mxu0 %v1003
    %v1208 = vpop.f32.mrf.mxu0
    %v1209 = vadd.f32 %v1189, %v1208
    %1210 = vdwg.mxu0
    %1211 = vmatpush.msra.mxu0 %v226
    %1212 = vmatpush.msra.mxu0 %v222
    %1213 = vmatpush.msra.mxu0 %v218
    %1214 = vmatpush.msra.mxu0 %v214
    %1215 = vmatpush.msra.mxu0 %v210
    %1216 = vmatpush.msra.mxu0 %v206
    %1217 = vmatpush.msra.mxu0 %v202
    %1218 = vmatpush.msra.mxu0 %v198
    %1219 = vmatpush.msra.mxu0 %v194
    %1220 = vmatpush.msra.mxu0 %v190
    %1221 = vmatpush.msra.mxu0 %v186
    %1222 = vmatpush.msra.mxu0 %v182
    %1223 = vmatpush.msra.mxu0 %v178
    %1224 = vmatpush.msra.mxu0 %v174
    %1225 = vmatpush.msra.mxu0 %v170
    %1226 = vmatpush.msra.mxu0 %v166
    %1227 = vmatmul.f32.gmra.mxu0 %v1130
    %v1228 = vpop.f32.mrf.mxu0
    %v1229 = vadd.f32 %v296, %v1228
    %1230 = vdwg.mxu0
    %1231 = vmatpush.msra.mxu0 %v290
    %1232 = vmatpush.msra.mxu0 %v286
    %1233 = vmatpush.msra.mxu0 %v282
    %1234 = vmatpush.msra.mxu0 %v278
    %1235 = vmatpush.msra.mxu0 %v274
    %1236 = vmatpush.msra.mxu0 %v270
    %1237 = vmatpush.msra.mxu0 %v266
    %1238 = vmatpush.msra.mxu0 %v262
    %1239 = vmatpush.msra.mxu0 %v258
    %1240 = vmatpush.msra.mxu0 %v254
    %1241 = vmatpush.msra.mxu0 %v250
    %1242 = vmatpush.msra.mxu0 %v246
    %1243 = vmatpush.msra.mxu0 %v242
    %1244 = vmatpush.msra.mxu0 %v238
    %1245 = vmatpush.msra.mxu0 %v234
    %1246 = vmatpush.msra.mxu0 %v230
    %1247 = vmatmul.f32.gmra.mxu0 %v1003
    %v1248 = vpop.f32.mrf.mxu0
    %v1249 = vadd.f32 %v1229, %v1248
    %1250 = vdwg.mxu0
    %1251 = vmatpush.msra.mxu0 %v227
    %1252 = vmatpush.msra.mxu0 %v223
    %1253 = vmatpush.msra.mxu0 %v219
    %1254 = vmatpush.msra.mxu0 %v215
    %1255 = vmatpush.msra.mxu0 %v211
    %1256 = vmatpush.msra.mxu0 %v207
    %1257 = vmatpush.msra.mxu0 %v203
    %1258 = vmatpush.msra.mxu0 %v199
    %1259 = vmatpush.msra.mxu0 %v195
    %1260 = vmatpush.msra.mxu0 %v191
    %1261 = vmatpush.msra.mxu0 %v187
    %1262 = vmatpush.msra.mxu0 %v183
    %1263 = vmatpush.msra.mxu0 %v179
    %1264 = vmatpush.msra.mxu0 %v175
    %1265 = vmatpush.msra.mxu0 %v171
    %1266 = vmatpush.msra.mxu0 %v167
    %1267 = vmatmul.f32.gmra.mxu0 %v1130
    %v1268 = vpop.f32.mrf.mxu0
    %v1269 = vadd.f32 %v297, %v1268
    %1270 = vdwg.mxu0
    %1271 = vmatpush.msra.mxu0 %v291
    %1272 = vmatpush.msra.mxu0 %v287
    %1273 = vmatpush.msra.mxu0 %v283
    %1274 = vmatpush.msra.mxu0 %v279
    %1275 = vmatpush.msra.mxu0 %v275
    %1276 = vmatpush.msra.mxu0 %v271
    %1277 = vmatpush.msra.mxu0 %v267
    %1278 = vmatpush.msra.mxu0 %v263
    %1279 = vmatpush.msra.mxu0 %v259
    %1280 = vmatpush.msra.mxu0 %v255
    %1281 = vmatpush.msra.mxu0 %v251
    %1282 = vmatpush.msra.mxu0 %v247
    %1283 = vmatpush.msra.mxu0 %v243
    %1284 = vmatpush.msra.mxu0 %v239
    %1285 = vmatpush.msra.mxu0 %v235
    %1286 = vmatpush.msra.mxu0 %v231
    %1287 = vmatmul.f32.gmra.mxu0 %v1003
    %v1288 = vpop.f32.mrf.mxu0
    %v1289 = vadd.f32 %v1269, %v1288
    %1290 = vdwg.mxu0
    %v1291 = vxor.u32 %v1169, 2147483648
    %v1292 = vxor.u32 %v1209, 2147483648
    %v1293 = vxor.u32 %v1249, 2147483648
    %v1294 = vmul.f32 %v1291, 1.442695
    %v1295 = vpow.pop %v1294
    %v1296 = vmul.f32 %v1292, 1.442695
    %v1297 = vpow.pop %v1296
    %v1298 = vmul.f32 %v1293, 1.442695
    %v1299 = vpow.pop %v1298
    %v1300 = vadd.f32 %v1295, 1.0
    %v1301 = vadd.f32 %v1297, 1.0
    %v1302 = vadd.f32 %v1299, 1.0
    %v1303 = vrcp.pop %v1300
    %v1304 = vmul.f32 %v1300, %v1303
    %v1305 = vsub.f32 1.0, %v1304
    %v1306 = vmul.f32 %v1303, %v1305
    %v1307 = vadd.f32 %v1303, %v1306
    %vm1308 = vweird.f32 %v1300
    %vm1309 = vweird.f32 %v1303
    %vm1310 = vmor %vm1308, %vm1309
    %v1311 = vsel %vm1310, %v1303, %v1307
    %v1312 = vand.u32 2147483647, %v1300
    %vm1313 = vcmp.eq.f32.partialorder %v1312, 8.507059e+37
    %v1314 = vand.u32 %v1300, 2147483648
    %v1315 = vor.u32 1.1754944e-38, %v1314
    %v1316 = vsel %vm1313, %v1315, %v1311
    %v1317 = vmul.f32 1.0, %v1316
    %v1318 = vrcp.pop %v1301
    %v1319 = vmul.f32 %v1301, %v1318
    %v1320 = vsub.f32 1.0, %v1319
    %v1321 = vmul.f32 %v1318, %v1320
    %v1322 = vadd.f32 %v1318, %v1321
    %vm1323 = vweird.f32 %v1301
    %vm1324 = vweird.f32 %v1318
    %vm1325 = vmor %vm1323, %vm1324
    %v1326 = vsel %vm1325, %v1318, %v1322
    %v1327 = vand.u32 2147483647, %v1301
    %vm1328 = vcmp.eq.f32.partialorder %v1327, 8.507059e+37
    %v1329 = vand.u32 %v1301, 2147483648
    %v1330 = vor.u32 1.1754944e-38, %v1329
    %v1331 = vsel %vm1328, %v1330, %v1326
    %v1332 = vmul.f32 1.0, %v1331
    %v1333 = vrcp.pop %v1302
    %v1334 = vmul.f32 %v1302, %v1333
    %v1335 = vsub.f32 1.0, %v1334
    %v1336 = vmul.f32 %v1333, %v1335
    %v1337 = vadd.f32 %v1333, %v1336
    %vm1338 = vweird.f32 %v1302
    %vm1339 = vweird.f32 %v1333
    %vm1340 = vmor %vm1338, %vm1339
    %v1341 = vsel %vm1340, %v1333, %v1337
    %v1342 = vand.u32 2147483647, %v1302
    %vm1343 = vcmp.eq.f32.partialorder %v1342, 8.507059e+37
    %v1344 = vand.u32 %v1302, 2147483648
    %v1345 = vor.u32 1.1754944e-38, %v1344
    %v1346 = vsel %vm1343, %v1345, %v1341
    %v1347 = vmul.f32 1.0, %v1346
    %v1348 = vtanh.pop %v1289
    %v1349 = vmul.f32 %v1332, %v1001
    %v1350 = vmul.f32 %v1317, %v1348
    %v1351 = vadd.f32 %v1349, %v1350
    %v1352 = vtanh.pop %v1351
    %v1353 = vmul.f32 %v1347, %v1352
    %s1354 = scalar_lea.vmem [#allocation2], 24
    %v1355 = vld [vmem:[%s1354] sm:$0xff]
    %1356 = vmatpush.msra.mxu0 %v160
    %1357 = vmatpush.msra.mxu0 %v156
    %1358 = vmatpush.msra.mxu0 %v152
    %1359 = vmatpush.msra.mxu0 %v148
    %1360 = vmatpush.msra.mxu0 %v144
    %1361 = vmatpush.msra.mxu0 %v140
    %1362 = vmatpush.msra.mxu0 %v136
    %1363 = vmatpush.msra.mxu0 %v132
    %1364 = vmatpush.msra.mxu0 %v128
    %1365 = vmatpush.msra.mxu0 %v124
    %1366 = vmatpush.msra.mxu0 %v120
    %1367 = vmatpush.msra.mxu0 %v116
    %1368 = vmatpush.msra.mxu0 %v112
    %1369 = vmatpush.msra.mxu0 %v108
    %1370 = vmatpush.msra.mxu0 %v104
    %1371 = vmatpush.msra.mxu0 %v100
    %1372 = vmatmul.f32.gmra.mxu0 %v1130
    %v1373 = vpop.f32.mrf.mxu0
    %v1374 = vadd.f32 0.0, %v1373
    %1375 = vdwg.mxu0
    %1376 = vmatpush.msra.mxu0 %v161
    %1377 = vmatpush.msra.mxu0 %v157
    %1378 = vmatpush.msra.mxu0 %v153
    %1379 = vmatpush.msra.mxu0 %v149
    %1380 = vmatpush.msra.mxu0 %v145
    %1381 = vmatpush.msra.mxu0 %v141
    %1382 = vmatpush.msra.mxu0 %v137
    %1383 = vmatpush.msra.mxu0 %v133
    %1384 = vmatpush.msra.mxu0 %v129
    %1385 = vmatpush.msra.mxu0 %v125
    %1386 = vmatpush.msra.mxu0 %v121
    %1387 = vmatpush.msra.mxu0 %v117
    %1388 = vmatpush.msra.mxu0 %v113
    %1389 = vmatpush.msra.mxu0 %v109
    %1390 = vmatpush.msra.mxu0 %v105
    %1391 = vmatpush.msra.mxu0 %v101
    %1392 = vmatmul.f32.gmra.mxu0 %v1130
    %v1393 = vpop.f32.mrf.mxu0
    %v1394 = vadd.f32 0.0, %v1393
    %1395 = vdwg.mxu0
    %1396 = vmatpush.msra.mxu0 %v162
    %1397 = vmatpush.msra.mxu0 %v158
    %1398 = vmatpush.msra.mxu0 %v154
    %1399 = vmatpush.msra.mxu0 %v150
    %1400 = vmatpush.msra.mxu0 %v146
    %1401 = vmatpush.msra.mxu0 %v142
    %1402 = vmatpush.msra.mxu0 %v138
    %1403 = vmatpush.msra.mxu0 %v134
    %1404 = vmatpush.msra.mxu0 %v130
    %1405 = vmatpush.msra.mxu0 %v126
    %1406 = vmatpush.msra.mxu0 %v122
    %1407 = vmatpush.msra.mxu0 %v118
    %1408 = vmatpush.msra.mxu0 %v114
    %1409 = vmatpush.msra.mxu0 %v110
    %1410 = vmatpush.msra.mxu0 %v106
    %1411 = vmatpush.msra.mxu0 %v102
    %1412 = vmatmul.f32.gmra.mxu0 %v1130
    %v1413 = vpop.f32.mrf.mxu0
    %v1414 = vadd.f32 0.0, %v1413
    %1415 = vdwg.mxu0
    %1416 = vmatpush.msra.mxu0 %v163
    %1417 = vmatpush.msra.mxu0 %v159
    %1418 = vmatpush.msra.mxu0 %v155
    %1419 = vmatpush.msra.mxu0 %v151
    %1420 = vmatpush.msra.mxu0 %v147
    %1421 = vmatpush.msra.mxu0 %v143
    %1422 = vmatpush.msra.mxu0 %v139
    %1423 = vmatpush.msra.mxu0 %v135
    %1424 = vmatpush.msra.mxu0 %v131
    %1425 = vmatpush.msra.mxu0 %v127
    %1426 = vmatpush.msra.mxu0 %v123
    %1427 = vmatpush.msra.mxu0 %v119
    %1428 = vmatpush.msra.mxu0 %v115
    %1429 = vmatpush.msra.mxu0 %v111
    %1430 = vmatpush.msra.mxu0 %v107
    %1431 = vmatpush.msra.mxu0 %v103
    %1432 = vmatmul.f32.gmra.mxu0 %v1130
    %v1433 = vpop.f32.mrf.mxu0
    %v1434 = vadd.f32 0.0, %v1433
    %1435 = vdwg.mxu0
    %v1440 = vrot.slane %v1394, 6
    %v1441 = vrot.slane %v1414, 4
    %v1442 = vrot.slane %v1434, 2
    %v1443 = vsel %vm390, %v1374, %v1440
    %v1444 = vsel %vm392, %v1441, %v1442
    %v1445 = vsel %vm394, %v1443, %v1444
    %v1447 = vadd.f32 %v1355, %v1445
    %v1448 = vxor.u32 %v1447, 2147483648
    %v1449 = vmul.f32 %v1448, 1.442695
    %v1450 = vpow.pop %v1449
    %v1451 = vadd.f32 %v1450, 1.0
    %v1452 = vrcp.pop %v1451
    %v1453 = vmul.f32 %v1451, %v1452
    %v1454 = vsub.f32 1.0, %v1453
    %v1455 = vmul.f32 %v1452, %v1454
    %v1456 = vadd.f32 %v1452, %v1455
    %vm1457 = vweird.f32 %v1451
    %vm1458 = vweird.f32 %v1452
    %vm1459 = vmor %vm1457, %vm1458
    %v1460 = vsel %vm1459, %v1452, %v1456
    %v1461 = vand.u32 2147483647, %v1451
    %vm1462 = vcmp.eq.f32.partialorder %v1461, 8.507059e+37
    %v1463 = vand.u32 %v1451, 2147483648
    %v1464 = vor.u32 1.1754944e-38, %v1463
    %v1465 = vsel %vm1462, %v1464, %v1460
    %v1466 = vmul.f32 1.0, %v1465
    %v1468 = vrot.slane %v1447, 6
    %v1470 = vtanh.pop %v1468
    %v1472 = vrot.slane %v1466, 2
    %v1474 = vmul.f32 %v1472, %v1126
    %v1475 = vmul.f32 %v1466, %v1470
    %v1476 = vadd.f32 %v1474, %v1475
    %v1477 = vtanh.pop %v1476
    %v1478 = vrot.slane %v1466, 4
    %v1480 = vmul.f32 %v1478, %v1477
    %1481 = vmatpush.msra.mxu0 %v224
    %1482 = vmatpush.msra.mxu0 %v220
    %1483 = vmatpush.msra.mxu0 %v216
    %1484 = vmatpush.msra.mxu0 %v212
    %1485 = vmatpush.msra.mxu0 %v208
    %1486 = vmatpush.msra.mxu0 %v204
    %1487 = vmatpush.msra.mxu0 %v200
    %1488 = vmatpush.msra.mxu0 %v196
    %1489 = vmatpush.msra.mxu0 %v192
    %1490 = vmatpush.msra.mxu0 %v188
    %1491 = vmatpush.msra.mxu0 %v184
    %1492 = vmatpush.msra.mxu0 %v180
    %1493 = vmatpush.msra.mxu0 %v176
    %1494 = vmatpush.msra.mxu0 %v172
    %1495 = vmatpush.msra.mxu0 %v168
    %1496 = vmatpush.msra.mxu0 %v164
    %1497 = vmatmul.f32.gmra.mxu0 %v1480
    %v1498 = vpop.f32.mrf.mxu0
    %v1499 = vadd.f32 %v294, %v1498
    %1500 = vdwg.mxu0
    %1501 = vmatpush.msra.mxu0 %v288
    %1502 = vmatpush.msra.mxu0 %v284
    %1503 = vmatpush.msra.mxu0 %v280
    %1504 = vmatpush.msra.mxu0 %v276
    %1505 = vmatpush.msra.mxu0 %v272
    %1506 = vmatpush.msra.mxu0 %v268
    %1507 = vmatpush.msra.mxu0 %v264
    %1508 = vmatpush.msra.mxu0 %v260
    %1509 = vmatpush.msra.mxu0 %v256
    %1510 = vmatpush.msra.mxu0 %v252
    %1511 = vmatpush.msra.mxu0 %v248
    %1512 = vmatpush.msra.mxu0 %v244
    %1513 = vmatpush.msra.mxu0 %v240
    %1514 = vmatpush.msra.mxu0 %v236
    %1515 = vmatpush.msra.mxu0 %v232
    %1516 = vmatpush.msra.mxu0 %v228
    %1517 = vmatmul.f32.gmra.mxu0 %v1353
    %v1518 = vpop.f32.mrf.mxu0
    %v1519 = vadd.f32 %v1499, %v1518
    %1520 = vdwg.mxu0
    %1521 = vmatpush.msra.mxu0 %v225
    %1522 = vmatpush.msra.mxu0 %v221
    %1523 = vmatpush.msra.mxu0 %v217
    %1524 = vmatpush.msra.mxu0 %v213
    %1525 = vmatpush.msra.mxu0 %v209
    %1526 = vmatpush.msra.mxu0 %v205
    %1527 = vmatpush.msra.mxu0 %v201
    %1528 = vmatpush.msra.mxu0 %v197
    %1529 = vmatpush.msra.mxu0 %v193
    %1530 = vmatpush.msra.mxu0 %v189
    %1531 = vmatpush.msra.mxu0 %v185
    %1532 = vmatpush.msra.mxu0 %v181
    %1533 = vmatpush.msra.mxu0 %v177
    %1534 = vmatpush.msra.mxu0 %v173
    %1535 = vmatpush.msra.mxu0 %v169
    %1536 = vmatpush.msra.mxu0 %v165
    %1537 = vmatmul.f32.gmra.mxu0 %v1480
    %v1538 = vpop.f32.mrf.mxu0
    %v1539 = vadd.f32 %v295, %v1538
    %1540 = vdwg.mxu0
    %1541 = vmatpush.msra.mxu0 %v289
    %1542 = vmatpush.msra.mxu0 %v285
    %1543 = vmatpush.msra.mxu0 %v281
    %1544 = vmatpush.msra.mxu0 %v277
    %1545 = vmatpush.msra.mxu0 %v273
    %1546 = vmatpush.msra.mxu0 %v269
    %1547 = vmatpush.msra.mxu0 %v265
    %1548 = vmatpush.msra.mxu0 %v261
    %1549 = vmatpush.msra.mxu0 %v257
    %1550 = vmatpush.msra.mxu0 %v253
    %1551 = vmatpush.msra.mxu0 %v249
    %1552 = vmatpush.msra.mxu0 %v245
    %1553 = vmatpush.msra.mxu0 %v241
    %1554 = vmatpush.msra.mxu0 %v237
    %1555 = vmatpush.msra.mxu0 %v233
    %1556 = vmatpush.msra.mxu0 %v229
    %1557 = vmatmul.f32.gmra.mxu0 %v1353
    %v1558 = vpop.f32.mrf.mxu0
    %v1559 = vadd.f32 %v1539, %v1558
    %1560 = vdwg.mxu0
    %1561 = vmatpush.msra.mxu0 %v226
    %1562 = vmatpush.msra.mxu0 %v222
    %1563 = vmatpush.msra.mxu0 %v218
    %1564 = vmatpush.msra.mxu0 %v214
    %1565 = vmatpush.msra.mxu0 %v210
    %1566 = vmatpush.msra.mxu0 %v206
    %1567 = vmatpush.msra.mxu0 %v202
    %1568 = vmatpush.msra.mxu0 %v198
    %1569 = vmatpush.msra.mxu0 %v194
    %1570 = vmatpush.msra.mxu0 %v190
    %1571 = vmatpush.msra.mxu0 %v186
    %1572 = vmatpush.msra.mxu0 %v182
    %1573 = vmatpush.msra.mxu0 %v178
    %1574 = vmatpush.msra.mxu0 %v174
    %1575 = vmatpush.msra.mxu0 %v170
    %1576 = vmatpush.msra.mxu0 %v166
    %1577 = vmatmul.f32.gmra.mxu0 %v1480
    %v1578 = vpop.f32.mrf.mxu0
    %v1579 = vadd.f32 %v296, %v1578
    %1580 = vdwg.mxu0
    %1581 = vmatpush.msra.mxu0 %v290
    %1582 = vmatpush.msra.mxu0 %v286
    %1583 = vmatpush.msra.mxu0 %v282
    %1584 = vmatpush.msra.mxu0 %v278
    %1585 = vmatpush.msra.mxu0 %v274
    %1586 = vmatpush.msra.mxu0 %v270
    %1587 = vmatpush.msra.mxu0 %v266
    %1588 = vmatpush.msra.mxu0 %v262
    %1589 = vmatpush.msra.mxu0 %v258
    %1590 = vmatpush.msra.mxu0 %v254
    %1591 = vmatpush.msra.mxu0 %v250
    %1592 = vmatpush.msra.mxu0 %v246
    %1593 = vmatpush.msra.mxu0 %v242
    %1594 = vmatpush.msra.mxu0 %v238
    %1595 = vmatpush.msra.mxu0 %v234
    %1596 = vmatpush.msra.mxu0 %v230
    %1597 = vmatmul.f32.gmra.mxu0 %v1353
    %v1598 = vpop.f32.mrf.mxu0
    %v1599 = vadd.f32 %v1579, %v1598
    %1600 = vdwg.mxu0
    %1601 = vmatpush.msra.mxu0 %v227
    %1602 = vmatpush.msra.mxu0 %v223
    %1603 = vmatpush.msra.mxu0 %v219
    %1604 = vmatpush.msra.mxu0 %v215
    %1605 = vmatpush.msra.mxu0 %v211
    %1606 = vmatpush.msra.mxu0 %v207
    %1607 = vmatpush.msra.mxu0 %v203
    %1608 = vmatpush.msra.mxu0 %v199
    %1609 = vmatpush.msra.mxu0 %v195
    %1610 = vmatpush.msra.mxu0 %v191
    %1611 = vmatpush.msra.mxu0 %v187
    %1612 = vmatpush.msra.mxu0 %v183
    %1613 = vmatpush.msra.mxu0 %v179
    %1614 = vmatpush.msra.mxu0 %v175
    %1615 = vmatpush.msra.mxu0 %v171
    %1616 = vmatpush.msra.mxu0 %v167
    %1617 = vmatmul.f32.gmra.mxu0 %v1480
    %v1618 = vpop.f32.mrf.mxu0
    %v1619 = vadd.f32 %v297, %v1618
    %1620 = vdwg.mxu0
    %1621 = vmatpush.msra.mxu0 %v291
    %1622 = vmatpush.msra.mxu0 %v287
    %1623 = vmatpush.msra.mxu0 %v283
    %1624 = vmatpush.msra.mxu0 %v279
    %1625 = vmatpush.msra.mxu0 %v275
    %1626 = vmatpush.msra.mxu0 %v271
    %1627 = vmatpush.msra.mxu0 %v267
    %1628 = vmatpush.msra.mxu0 %v263
    %1629 = vmatpush.msra.mxu0 %v259
    %1630 = vmatpush.msra.mxu0 %v255
    %1631 = vmatpush.msra.mxu0 %v251
    %1632 = vmatpush.msra.mxu0 %v247
    %1633 = vmatpush.msra.mxu0 %v243
    %1634 = vmatpush.msra.mxu0 %v239
    %1635 = vmatpush.msra.mxu0 %v235
    %1636 = vmatpush.msra.mxu0 %v231
    %1637 = vmatmul.f32.gmra.mxu0 %v1353
    %v1638 = vpop.f32.mrf.mxu0
    %v1639 = vadd.f32 %v1619, %v1638
    %1640 = vdwg.mxu0
    %v1641 = vxor.u32 %v1519, 2147483648
    %v1642 = vxor.u32 %v1559, 2147483648
    %v1643 = vxor.u32 %v1599, 2147483648
    %v1644 = vmul.f32 %v1641, 1.442695
    %v1645 = vpow.pop %v1644
    %v1646 = vmul.f32 %v1642, 1.442695
    %v1647 = vpow.pop %v1646
    %v1648 = vmul.f32 %v1643, 1.442695
    %v1649 = vpow.pop %v1648
    %v1650 = vadd.f32 %v1645, 1.0
    %v1651 = vadd.f32 %v1647, 1.0
    %v1652 = vadd.f32 %v1649, 1.0
    %v1653 = vrcp.pop %v1650
    %v1654 = vmul.f32 %v1650, %v1653
    %v1655 = vsub.f32 1.0, %v1654
    %v1656 = vmul.f32 %v1653, %v1655
    %v1657 = vadd.f32 %v1653, %v1656
    %vm1658 = vweird.f32 %v1650
    %vm1659 = vweird.f32 %v1653
    %vm1660 = vmor %vm1658, %vm1659
    %v1661 = vsel %vm1660, %v1653, %v1657
    %v1662 = vand.u32 2147483647, %v1650
    %vm1663 = vcmp.eq.f32.partialorder %v1662, 8.507059e+37
    %v1664 = vand.u32 %v1650, 2147483648
    %v1665 = vor.u32 1.1754944e-38, %v1664
    %v1666 = vsel %vm1663, %v1665, %v1661
    %v1667 = vmul.f32 1.0, %v1666
    %v1668 = vrcp.pop %v1651
    %v1669 = vmul.f32 %v1651, %v1668
    %v1670 = vsub.f32 1.0, %v1669
    %v1671 = vmul.f32 %v1668, %v1670
    %v1672 = vadd.f32 %v1668, %v1671
    %vm1673 = vweird.f32 %v1651
    %vm1674 = vweird.f32 %v1668
    %vm1675 = vmor %vm1673, %vm1674
    %v1676 = vsel %vm1675, %v1668, %v1672
    %v1677 = vand.u32 2147483647, %v1651
    %vm1678 = vcmp.eq.f32.partialorder %v1677, 8.507059e+37
    %v1679 = vand.u32 %v1651, 2147483648
    %v1680 = vor.u32 1.1754944e-38, %v1679
    %v1681 = vsel %vm1678, %v1680, %v1676
    %v1682 = vmul.f32 1.0, %v1681
    %v1683 = vrcp.pop %v1652
    %v1684 = vmul.f32 %v1652, %v1683
    %v1685 = vsub.f32 1.0, %v1684
    %v1686 = vmul.f32 %v1683, %v1685
    %v1687 = vadd.f32 %v1683, %v1686
    %vm1688 = vweird.f32 %v1652
    %vm1689 = vweird.f32 %v1683
    %vm1690 = vmor %vm1688, %vm1689
    %v1691 = vsel %vm1690, %v1683, %v1687
    %v1692 = vand.u32 2147483647, %v1652
    %vm1693 = vcmp.eq.f32.partialorder %v1692, 8.507059e+37
    %v1694 = vand.u32 %v1652, 2147483648
    %v1695 = vor.u32 1.1754944e-38, %v1694
    %v1696 = vsel %vm1693, %v1695, %v1691
    %v1697 = vmul.f32 1.0, %v1696
    %v1698 = vtanh.pop %v1639
    %v1699 = vmul.f32 %v1682, %v1351
    %v1700 = vmul.f32 %v1667, %v1698
    %v1701 = vadd.f32 %v1699, %v1700
    %v1702 = vtanh.pop %v1701
    %v1703 = vmul.f32 %v1697, %v1702
    %s1704 = scalar_lea.vmem [#allocation2], 32
    %v1705 = vld [vmem:[%s1704] sm:$0xff]
    %1706 = vmatpush.msra.mxu0 %v160
    %1707 = vmatpush.msra.mxu0 %v156
    %1708 = vmatpush.msra.mxu0 %v152
    %1709 = vmatpush.msra.mxu0 %v148
    %1710 = vmatpush.msra.mxu0 %v144
    %1711 = vmatpush.msra.mxu0 %v140
    %1712 = vmatpush.msra.mxu0 %v136
    %1713 = vmatpush.msra.mxu0 %v132
    %1714 = vmatpush.msra.mxu0 %v128
    %1715 = vmatpush.msra.mxu0 %v124
    %1716 = vmatpush.msra.mxu0 %v120
    %1717 = vmatpush.msra.mxu0 %v116
    %1718 = vmatpush.msra.mxu0 %v112
    %1719 = vmatpush.msra.mxu0 %v108
    %1720 = vmatpush.msra.mxu0 %v104
    %1721 = vmatpush.msra.mxu0 %v100
    %1722 = vmatmul.f32.gmra.mxu0 %v1480
    %v1723 = vpop.f32.mrf.mxu0
    %v1724 = vadd.f32 0.0, %v1723
    %1725 = vdwg.mxu0
    %1726 = vmatpush.msra.mxu0 %v161
    %1727 = vmatpush.msra.mxu0 %v157
    %1728 = vmatpush.msra.mxu0 %v153
    %1729 = vmatpush.msra.mxu0 %v149
    %1730 = vmatpush.msra.mxu0 %v145
    %1731 = vmatpush.msra.mxu0 %v141
    %1732 = vmatpush.msra.mxu0 %v137
    %1733 = vmatpush.msra.mxu0 %v133
    %1734 = vmatpush.msra.mxu0 %v129
    %1735 = vmatpush.msra.mxu0 %v125
    %1736 = vmatpush.msra.mxu0 %v121
    %1737 = vmatpush.msra.mxu0 %v117
    %1738 = vmatpush.msra.mxu0 %v113
    %1739 = vmatpush.msra.mxu0 %v109
    %1740 = vmatpush.msra.mxu0 %v105
    %1741 = vmatpush.msra.mxu0 %v101
    %1742 = vmatmul.f32.gmra.mxu0 %v1480
    %v1743 = vpop.f32.mrf.mxu0
    %v1744 = vadd.f32 0.0, %v1743
    %1745 = vdwg.mxu0
    %1746 = vmatpush.msra.mxu0 %v162
    %1747 = vmatpush.msra.mxu0 %v158
    %1748 = vmatpush.msra.mxu0 %v154
    %1749 = vmatpush.msra.mxu0 %v150
    %1750 = vmatpush.msra.mxu0 %v146
    %1751 = vmatpush.msra.mxu0 %v142
    %1752 = vmatpush.msra.mxu0 %v138
    %1753 = vmatpush.msra.mxu0 %v134
    %1754 = vmatpush.msra.mxu0 %v130
    %1755 = vmatpush.msra.mxu0 %v126
    %1756 = vmatpush.msra.mxu0 %v122
    %1757 = vmatpush.msra.mxu0 %v118
    %1758 = vmatpush.msra.mxu0 %v114
    %1759 = vmatpush.msra.mxu0 %v110
    %1760 = vmatpush.msra.mxu0 %v106
    %1761 = vmatpush.msra.mxu0 %v102
    %1762 = vmatmul.f32.gmra.mxu0 %v1480
    %v1763 = vpop.f32.mrf.mxu0
    %v1764 = vadd.f32 0.0, %v1763
    %1765 = vdwg.mxu0
    %1766 = vmatpush.msra.mxu0 %v163
    %1767 = vmatpush.msra.mxu0 %v159
    %1768 = vmatpush.msra.mxu0 %v155
    %1769 = vmatpush.msra.mxu0 %v151
    %1770 = vmatpush.msra.mxu0 %v147
    %1771 = vmatpush.msra.mxu0 %v143
    %1772 = vmatpush.msra.mxu0 %v139
    %1773 = vmatpush.msra.mxu0 %v135
    %1774 = vmatpush.msra.mxu0 %v131
    %1775 = vmatpush.msra.mxu0 %v127
    %1776 = vmatpush.msra.mxu0 %v123
    %1777 = vmatpush.msra.mxu0 %v119
    %1778 = vmatpush.msra.mxu0 %v115
    %1779 = vmatpush.msra.mxu0 %v111
    %1780 = vmatpush.msra.mxu0 %v107
    %1781 = vmatpush.msra.mxu0 %v103
    %1782 = vmatmul.f32.gmra.mxu0 %v1480
    %v1783 = vpop.f32.mrf.mxu0
    %v1784 = vadd.f32 0.0, %v1783
    %1785 = vdwg.mxu0
    %v1790 = vrot.slane %v1744, 6
    %v1791 = vrot.slane %v1764, 4
    %v1792 = vrot.slane %v1784, 2
    %v1793 = vsel %vm390, %v1724, %v1790
    %v1794 = vsel %vm392, %v1791, %v1792
    %v1795 = vsel %vm394, %v1793, %v1794
    %v1797 = vadd.f32 %v1705, %v1795
    %v1798 = vxor.u32 %v1797, 2147483648
    %v1799 = vmul.f32 %v1798, 1.442695
    %v1800 = vpow.pop %v1799
    %v1801 = vadd.f32 %v1800, 1.0
    %v1802 = vrcp.pop %v1801
    %v1803 = vmul.f32 %v1801, %v1802
    %v1804 = vsub.f32 1.0, %v1803
    %v1805 = vmul.f32 %v1802, %v1804
    %v1806 = vadd.f32 %v1802, %v1805
    %vm1807 = vweird.f32 %v1801
    %vm1808 = vweird.f32 %v1802
    %vm1809 = vmor %vm1807, %vm1808
    %v1810 = vsel %vm1809, %v1802, %v1806
    %v1811 = vand.u32 2147483647, %v1801
    %vm1812 = vcmp.eq.f32.partialorder %v1811, 8.507059e+37
    %v1813 = vand.u32 %v1801, 2147483648
    %v1814 = vor.u32 1.1754944e-38, %v1813
    %v1815 = vsel %vm1812, %v1814, %v1810
    %v1816 = vmul.f32 1.0, %v1815
    %v1818 = vrot.slane %v1797, 6
    %v1820 = vtanh.pop %v1818
    %v1822 = vrot.slane %v1816, 2
    %v1824 = vmul.f32 %v1822, %v1476
    %v1825 = vmul.f32 %v1816, %v1820
    %v1826 = vadd.f32 %v1824, %v1825
    %v1827 = vtanh.pop %v1826
    %v1828 = vrot.slane %v1816, 4
    %v1830 = vmul.f32 %v1828, %v1827
    %1831 = vmatpush.msra.mxu0 %v224
    %1832 = vmatpush.msra.mxu0 %v220
    %1833 = vmatpush.msra.mxu0 %v216
    %1834 = vmatpush.msra.mxu0 %v212
    %1835 = vmatpush.msra.mxu0 %v208
    %1836 = vmatpush.msra.mxu0 %v204
    %1837 = vmatpush.msra.mxu0 %v200
    %1838 = vmatpush.msra.mxu0 %v196
    %1839 = vmatpush.msra.mxu0 %v192
    %1840 = vmatpush.msra.mxu0 %v188
    %1841 = vmatpush.msra.mxu0 %v184
    %1842 = vmatpush.msra.mxu0 %v180
    %1843 = vmatpush.msra.mxu0 %v176
    %1844 = vmatpush.msra.mxu0 %v172
    %1845 = vmatpush.msra.mxu0 %v168
    %1846 = vmatpush.msra.mxu0 %v164
    %1847 = vmatmul.f32.gmra.mxu0 %v1830
    %v1848 = vpop.f32.mrf.mxu0
    %v1849 = vadd.f32 %v294, %v1848
    %1850 = vdwg.mxu0
    %1851 = vmatpush.msra.mxu0 %v288
    %1852 = vmatpush.msra.mxu0 %v284
    %1853 = vmatpush.msra.mxu0 %v280
    %1854 = vmatpush.msra.mxu0 %v276
    %1855 = vmatpush.msra.mxu0 %v272
    %1856 = vmatpush.msra.mxu0 %v268
    %1857 = vmatpush.msra.mxu0 %v264
    %1858 = vmatpush.msra.mxu0 %v260
    %1859 = vmatpush.msra.mxu0 %v256
    %1860 = vmatpush.msra.mxu0 %v252
    %1861 = vmatpush.msra.mxu0 %v248
    %1862 = vmatpush.msra.mxu0 %v244
    %1863 = vmatpush.msra.mxu0 %v240
    %1864 = vmatpush.msra.mxu0 %v236
    %1865 = vmatpush.msra.mxu0 %v232
    %1866 = vmatpush.msra.mxu0 %v228
    %1867 = vmatmul.f32.gmra.mxu0 %v1703
    %v1868 = vpop.f32.mrf.mxu0
    %v1869 = vadd.f32 %v1849, %v1868
    %1870 = vdwg.mxu0
    %1871 = vmatpush.msra.mxu0 %v225
    %1872 = vmatpush.msra.mxu0 %v221
    %1873 = vmatpush.msra.mxu0 %v217
    %1874 = vmatpush.msra.mxu0 %v213
    %1875 = vmatpush.msra.mxu0 %v209
    %1876 = vmatpush.msra.mxu0 %v205
    %1877 = vmatpush.msra.mxu0 %v201
    %1878 = vmatpush.msra.mxu0 %v197
    %1879 = vmatpush.msra.mxu0 %v193
    %1880 = vmatpush.msra.mxu0 %v189
    %1881 = vmatpush.msra.mxu0 %v185
    %1882 = vmatpush.msra.mxu0 %v181
    %1883 = vmatpush.msra.mxu0 %v177
    %1884 = vmatpush.msra.mxu0 %v173
    %1885 = vmatpush.msra.mxu0 %v169
    %1886 = vmatpush.msra.mxu0 %v165
    %1887 = vmatmul.f32.gmra.mxu0 %v1830
    %v1888 = vpop.f32.mrf.mxu0
    %v1889 = vadd.f32 %v295, %v1888
    %1890 = vdwg.mxu0
    %1891 = vmatpush.msra.mxu0 %v289
    %1892 = vmatpush.msra.mxu0 %v285
    %1893 = vmatpush.msra.mxu0 %v281
    %1894 = vmatpush.msra.mxu0 %v277
    %1895 = vmatpush.msra.mxu0 %v273
    %1896 = vmatpush.msra.mxu0 %v269
    %1897 = vmatpush.msra.mxu0 %v265
    %1898 = vmatpush.msra.mxu0 %v261
    %1899 = vmatpush.msra.mxu0 %v257
    %1900 = vmatpush.msra.mxu0 %v253
    %1901 = vmatpush.msra.mxu0 %v249
    %1902 = vmatpush.msra.mxu0 %v245
    %1903 = vmatpush.msra.mxu0 %v241
    %1904 = vmatpush.msra.mxu0 %v237
    %1905 = vmatpush.msra.mxu0 %v233
    %1906 = vmatpush.msra.mxu0 %v229
    %1907 = vmatmul.f32.gmra.mxu0 %v1703
    %v1908 = vpop.f32.mrf.mxu0
    %v1909 = vadd.f32 %v1889, %v1908
    %1910 = vdwg.mxu0
    %1911 = vmatpush.msra.mxu0 %v226
    %1912 = vmatpush.msra.mxu0 %v222
    %1913 = vmatpush.msra.mxu0 %v218
    %1914 = vmatpush.msra.mxu0 %v214
    %1915 = vmatpush.msra.mxu0 %v210
    %1916 = vmatpush.msra.mxu0 %v206
    %1917 = vmatpush.msra.mxu0 %v202
    %1918 = vmatpush.msra.mxu0 %v198
    %1919 = vmatpush.msra.mxu0 %v194
    %1920 = vmatpush.msra.mxu0 %v190
    %1921 = vmatpush.msra.mxu0 %v186
    %1922 = vmatpush.msra.mxu0 %v182
    %1923 = vmatpush.msra.mxu0 %v178
    %1924 = vmatpush.msra.mxu0 %v174
    %1925 = vmatpush.msra.mxu0 %v170
    %1926 = vmatpush.msra.mxu0 %v166
    %1927 = vmatmul.f32.gmra.mxu0 %v1830
    %v1928 = vpop.f32.mrf.mxu0
    %v1929 = vadd.f32 %v296, %v1928
    %1930 = vdwg.mxu0
    %1931 = vmatpush.msra.mxu0 %v290
    %1932 = vmatpush.msra.mxu0 %v286
    %1933 = vmatpush.msra.mxu0 %v282
    %1934 = vmatpush.msra.mxu0 %v278
    %1935 = vmatpush.msra.mxu0 %v274
    %1936 = vmatpush.msra.mxu0 %v270
    %1937 = vmatpush.msra.mxu0 %v266
    %1938 = vmatpush.msra.mxu0 %v262
    %1939 = vmatpush.msra.mxu0 %v258
    %1940 = vmatpush.msra.mxu0 %v254
    %1941 = vmatpush.msra.mxu0 %v250
    %1942 = vmatpush.msra.mxu0 %v246
    %1943 = vmatpush.msra.mxu0 %v242
    %1944 = vmatpush.msra.mxu0 %v238
    %1945 = vmatpush.msra.mxu0 %v234
    %1946 = vmatpush.msra.mxu0 %v230
    %1947 = vmatmul.f32.gmra.mxu0 %v1703
    %v1948 = vpop.f32.mrf.mxu0
    %v1949 = vadd.f32 %v1929, %v1948
    %1950 = vdwg.mxu0
    %1951 = vmatpush.msra.mxu0 %v227
    %1952 = vmatpush.msra.mxu0 %v223
    %1953 = vmatpush.msra.mxu0 %v219
    %1954 = vmatpush.msra.mxu0 %v215
    %1955 = vmatpush.msra.mxu0 %v211
    %1956 = vmatpush.msra.mxu0 %v207
    %1957 = vmatpush.msra.mxu0 %v203
    %1958 = vmatpush.msra.mxu0 %v199
    %1959 = vmatpush.msra.mxu0 %v195
    %1960 = vmatpush.msra.mxu0 %v191
    %1961 = vmatpush.msra.mxu0 %v187
    %1962 = vmatpush.msra.mxu0 %v183
    %1963 = vmatpush.msra.mxu0 %v179
    %1964 = vmatpush.msra.mxu0 %v175
    %1965 = vmatpush.msra.mxu0 %v171
    %1966 = vmatpush.msra.mxu0 %v167
    %1967 = vmatmul.f32.gmra.mxu0 %v1830
    %v1968 = vpop.f32.mrf.mxu0
    %v1969 = vadd.f32 %v297, %v1968
    %1970 = vdwg.mxu0
    %1971 = vmatpush.msra.mxu0 %v291
    %1972 = vmatpush.msra.mxu0 %v287
    %1973 = vmatpush.msra.mxu0 %v283
    %1974 = vmatpush.msra.mxu0 %v279
    %1975 = vmatpush.msra.mxu0 %v275
    %1976 = vmatpush.msra.mxu0 %v271
    %1977 = vmatpush.msra.mxu0 %v267
    %1978 = vmatpush.msra.mxu0 %v263
    %1979 = vmatpush.msra.mxu0 %v259
    %1980 = vmatpush.msra.mxu0 %v255
    %1981 = vmatpush.msra.mxu0 %v251
    %1982 = vmatpush.msra.mxu0 %v247
    %1983 = vmatpush.msra.mxu0 %v243
    %1984 = vmatpush.msra.mxu0 %v239
    %1985 = vmatpush.msra.mxu0 %v235
    %1986 = vmatpush.msra.mxu0 %v231
    %1987 = vmatmul.f32.gmra.mxu0 %v1703
    %v1988 = vpop.f32.mrf.mxu0
    %v1989 = vadd.f32 %v1969, %v1988
    %1990 = vdwg.mxu0
    %v1991 = vxor.u32 %v1869, 2147483648
    %v1992 = vxor.u32 %v1909, 2147483648
    %v1993 = vxor.u32 %v1949, 2147483648
    %v1994 = vmul.f32 %v1991, 1.442695
    %v1995 = vpow.pop %v1994
    %v1996 = vmul.f32 %v1992, 1.442695
    %v1997 = vpow.pop %v1996
    %v1998 = vmul.f32 %v1993, 1.442695
    %v1999 = vpow.pop %v1998
    %v2000 = vadd.f32 %v1995, 1.0
    %v2001 = vadd.f32 %v1997, 1.0
    %v2002 = vadd.f32 %v1999, 1.0
    %v2003 = vrcp.pop %v2000
    %v2004 = vmul.f32 %v2000, %v2003
    %v2005 = vsub.f32 1.0, %v2004
    %v2006 = vmul.f32 %v2003, %v2005
    %v2007 = vadd.f32 %v2003, %v2006
    %vm2008 = vweird.f32 %v2000
    %vm2009 = vweird.f32 %v2003
    %vm2010 = vmor %vm2008, %vm2009
    %v2011 = vsel %vm2010, %v2003, %v2007
    %v2012 = vand.u32 2147483647, %v2000
    %vm2013 = vcmp.eq.f32.partialorder %v2012, 8.507059e+37
    %v2014 = vand.u32 %v2000, 2147483648
    %v2015 = vor.u32 1.1754944e-38, %v2014
    %v2016 = vsel %vm2013, %v2015, %v2011
    %v2017 = vmul.f32 1.0, %v2016
    %v2018 = vrcp.pop %v2001
    %v2019 = vmul.f32 %v2001, %v2018
    %v2020 = vsub.f32 1.0, %v2019
    %v2021 = vmul.f32 %v2018, %v2020
    %v2022 = vadd.f32 %v2018, %v2021
    %vm2023 = vweird.f32 %v2001
    %vm2024 = vweird.f32 %v2018
    %vm2025 = vmor %vm2023, %vm2024
    %v2026 = vsel %vm2025, %v2018, %v2022
    %v2027 = vand.u32 2147483647, %v2001
    %vm2028 = vcmp.eq.f32.partialorder %v2027, 8.507059e+37
    %v2029 = vand.u32 %v2001, 2147483648
    %v2030 = vor.u32 1.1754944e-38, %v2029
    %v2031 = vsel %vm2028, %v2030, %v2026
    %v2032 = vmul.f32 1.0, %v2031
    %v2033 = vrcp.pop %v2002
    %v2034 = vmul.f32 %v2002, %v2033
    %v2035 = vsub.f32 1.0, %v2034
    %v2036 = vmul.f32 %v2033, %v2035
    %v2037 = vadd.f32 %v2033, %v2036
    %vm2038 = vweird.f32 %v2002
    %vm2039 = vweird.f32 %v2033
    %vm2040 = vmor %vm2038, %vm2039
    %v2041 = vsel %vm2040, %v2033, %v2037
    %v2042 = vand.u32 2147483647, %v2002
    %vm2043 = vcmp.eq.f32.partialorder %v2042, 8.507059e+37
    %v2044 = vand.u32 %v2002, 2147483648
    %v2045 = vor.u32 1.1754944e-38, %v2044
    %v2046 = vsel %vm2043, %v2045, %v2041
    %v2047 = vmul.f32 1.0, %v2046
    %v2048 = vtanh.pop %v1989
    %v2049 = vmul.f32 %v2032, %v1701
    %v2050 = vmul.f32 %v2017, %v2048
    %v2051 = vadd.f32 %v2049, %v2050
    %v2052 = vtanh.pop %v2051
    %v2053 = vmul.f32 %v2047, %v2052
    %s2054 = scalar_lea.vmem [#allocation2], 40
    %v2055 = vld [vmem:[%s2054] sm:$0xff]
    %2056 = vmatpush.msra.mxu0 %v160
    %2057 = vmatpush.msra.mxu0 %v156
    %2058 = vmatpush.msra.mxu0 %v152
    %2059 = vmatpush.msra.mxu0 %v148
    %2060 = vmatpush.msra.mxu0 %v144
    %2061 = vmatpush.msra.mxu0 %v140
    %2062 = vmatpush.msra.mxu0 %v136
    %2063 = vmatpush.msra.mxu0 %v132
    %2064 = vmatpush.msra.mxu0 %v128
    %2065 = vmatpush.msra.mxu0 %v124
    %2066 = vmatpush.msra.mxu0 %v120
    %2067 = vmatpush.msra.mxu0 %v116
    %2068 = vmatpush.msra.mxu0 %v112
    %2069 = vmatpush.msra.mxu0 %v108
    %2070 = vmatpush.msra.mxu0 %v104
    %2071 = vmatpush.msra.mxu0 %v100
    %2072 = vmatmul.f32.gmra.mxu0 %v1830
    %v2073 = vpop.f32.mrf.mxu0
    %v2074 = vadd.f32 0.0, %v2073
    %2075 = vdwg.mxu0
    %2076 = vmatpush.msra.mxu0 %v161
    %2077 = vmatpush.msra.mxu0 %v157
    %2078 = vmatpush.msra.mxu0 %v153
    %2079 = vmatpush.msra.mxu0 %v149
    %2080 = vmatpush.msra.mxu0 %v145
    %2081 = vmatpush.msra.mxu0 %v141
    %2082 = vmatpush.msra.mxu0 %v137
    %2083 = vmatpush.msra.mxu0 %v133
    %2084 = vmatpush.msra.mxu0 %v129
    %2085 = vmatpush.msra.mxu0 %v125
    %2086 = vmatpush.msra.mxu0 %v121
    %2087 = vmatpush.msra.mxu0 %v117
    %2088 = vmatpush.msra.mxu0 %v113
    %2089 = vmatpush.msra.mxu0 %v109
    %2090 = vmatpush.msra.mxu0 %v105
    %2091 = vmatpush.msra.mxu0 %v101
    %2092 = vmatmul.f32.gmra.mxu0 %v1830
    %v2093 = vpop.f32.mrf.mxu0
    %v2094 = vadd.f32 0.0, %v2093
    %2095 = vdwg.mxu0
    %2096 = vmatpush.msra.mxu0 %v162
    %2097 = vmatpush.msra.mxu0 %v158
    %2098 = vmatpush.msra.mxu0 %v154
    %2099 = vmatpush.msra.mxu0 %v150
    %2100 = vmatpush.msra.mxu0 %v146
    %2101 = vmatpush.msra.mxu0 %v142
    %2102 = vmatpush.msra.mxu0 %v138
    %2103 = vmatpush.msra.mxu0 %v134
    %2104 = vmatpush.msra.mxu0 %v130
    %2105 = vmatpush.msra.mxu0 %v126
    %2106 = vmatpush.msra.mxu0 %v122
    %2107 = vmatpush.msra.mxu0 %v118
    %2108 = vmatpush.msra.mxu0 %v114
    %2109 = vmatpush.msra.mxu0 %v110
    %2110 = vmatpush.msra.mxu0 %v106
    %2111 = vmatpush.msra.mxu0 %v102
    %2112 = vmatmul.f32.gmra.mxu0 %v1830
    %v2113 = vpop.f32.mrf.mxu0
    %v2114 = vadd.f32 0.0, %v2113
    %2115 = vdwg.mxu0
    %2116 = vmatpush.msra.mxu0 %v163
    %2117 = vmatpush.msra.mxu0 %v159
    %2118 = vmatpush.msra.mxu0 %v155
    %2119 = vmatpush.msra.mxu0 %v151
    %2120 = vmatpush.msra.mxu0 %v147
    %2121 = vmatpush.msra.mxu0 %v143
    %2122 = vmatpush.msra.mxu0 %v139
    %2123 = vmatpush.msra.mxu0 %v135
    %2124 = vmatpush.msra.mxu0 %v131
    %2125 = vmatpush.msra.mxu0 %v127
    %2126 = vmatpush.msra.mxu0 %v123
    %2127 = vmatpush.msra.mxu0 %v119
    %2128 = vmatpush.msra.mxu0 %v115
    %2129 = vmatpush.msra.mxu0 %v111
    %2130 = vmatpush.msra.mxu0 %v107
    %2131 = vmatpush.msra.mxu0 %v103
    %2132 = vmatmul.f32.gmra.mxu0 %v1830
    %v2133 = vpop.f32.mrf.mxu0
    %v2134 = vadd.f32 0.0, %v2133
    %2135 = vdwg.mxu0
    %v2140 = vrot.slane %v2094, 6
    %v2141 = vrot.slane %v2114, 4
    %v2142 = vrot.slane %v2134, 2
    %v2143 = vsel %vm390, %v2074, %v2140
    %v2144 = vsel %vm392, %v2141, %v2142
    %v2145 = vsel %vm394, %v2143, %v2144
    %v2147 = vadd.f32 %v2055, %v2145
    %v2148 = vxor.u32 %v2147, 2147483648
    %v2149 = vmul.f32 %v2148, 1.442695
    %v2150 = vpow.pop %v2149
    %v2151 = vadd.f32 %v2150, 1.0
    %v2152 = vrcp.pop %v2151
    %v2153 = vmul.f32 %v2151, %v2152
    %v2154 = vsub.f32 1.0, %v2153
    %v2155 = vmul.f32 %v2152, %v2154
    %v2156 = vadd.f32 %v2152, %v2155
    %vm2157 = vweird.f32 %v2151
    %vm2158 = vweird.f32 %v2152
    %vm2159 = vmor %vm2157, %vm2158
    %v2160 = vsel %vm2159, %v2152, %v2156
    %v2161 = vand.u32 2147483647, %v2151
    %vm2162 = vcmp.eq.f32.partialorder %v2161, 8.507059e+37
    %v2163 = vand.u32 %v2151, 2147483648
    %v2164 = vor.u32 1.1754944e-38, %v2163
    %v2165 = vsel %vm2162, %v2164, %v2160
    %v2166 = vmul.f32 1.0, %v2165
    %v2168 = vrot.slane %v2147, 6
    %v2170 = vtanh.pop %v2168
    %v2172 = vrot.slane %v2166, 2
    %v2174 = vmul.f32 %v2172, %v1826
    %v2175 = vmul.f32 %v2166, %v2170
    %v2176 = vadd.f32 %v2174, %v2175
    %v2177 = vtanh.pop %v2176
    %v2178 = vrot.slane %v2166, 4
    %v2180 = vmul.f32 %v2178, %v2177
    %2181 = vmatpush.msra.mxu0 %v224
    %2182 = vmatpush.msra.mxu0 %v220
    %2183 = vmatpush.msra.mxu0 %v216
    %2184 = vmatpush.msra.mxu0 %v212
    %2185 = vmatpush.msra.mxu0 %v208
    %2186 = vmatpush.msra.mxu0 %v204
    %2187 = vmatpush.msra.mxu0 %v200
    %2188 = vmatpush.msra.mxu0 %v196
    %2189 = vmatpush.msra.mxu0 %v192
    %2190 = vmatpush.msra.mxu0 %v188
    %2191 = vmatpush.msra.mxu0 %v184
    %2192 = vmatpush.msra.mxu0 %v180
    %2193 = vmatpush.msra.mxu0 %v176
    %2194 = vmatpush.msra.mxu0 %v172
    %2195 = vmatpush.msra.mxu0 %v168
    %2196 = vmatpush.msra.mxu0 %v164
    %2197 = vmatmul.f32.gmra.mxu0 %v2180
    %v2198 = vpop.f32.mrf.mxu0
    %v2199 = vadd.f32 %v294, %v2198
    %2200 = vdwg.mxu0
    %2201 = vmatpush.msra.mxu0 %v288
    %2202 = vmatpush.msra.mxu0 %v284
    %2203 = vmatpush.msra.mxu0 %v280
    %2204 = vmatpush.msra.mxu0 %v276
    %2205 = vmatpush.msra.mxu0 %v272
    %2206 = vmatpush.msra.mxu0 %v268
    %2207 = vmatpush.msra.mxu0 %v264
    %2208 = vmatpush.msra.mxu0 %v260
    %2209 = vmatpush.msra.mxu0 %v256
    %2210 = vmatpush.msra.mxu0 %v252
    %2211 = vmatpush.msra.mxu0 %v248
    %2212 = vmatpush.msra.mxu0 %v244
    %2213 = vmatpush.msra.mxu0 %v240
    %2214 = vmatpush.msra.mxu0 %v236
    %2215 = vmatpush.msra.mxu0 %v232
    %2216 = vmatpush.msra.mxu0 %v228
    %2217 = vmatmul.f32.gmra.mxu0 %v2053
    %v2218 = vpop.f32.mrf.mxu0
    %v2219 = vadd.f32 %v2199, %v2218
    %2220 = vdwg.mxu0
    %2221 = vmatpush.msra.mxu0 %v225
    %2222 = vmatpush.msra.mxu0 %v221
    %2223 = vmatpush.msra.mxu0 %v217
    %2224 = vmatpush.msra.mxu0 %v213
    %2225 = vmatpush.msra.mxu0 %v209
    %2226 = vmatpush.msra.mxu0 %v205
    %2227 = vmatpush.msra.mxu0 %v201
    %2228 = vmatpush.msra.mxu0 %v197
    %2229 = vmatpush.msra.mxu0 %v193
    %2230 = vmatpush.msra.mxu0 %v189
    %2231 = vmatpush.msra.mxu0 %v185
    %2232 = vmatpush.msra.mxu0 %v181
    %2233 = vmatpush.msra.mxu0 %v177
    %2234 = vmatpush.msra.mxu0 %v173
    %2235 = vmatpush.msra.mxu0 %v169
    %2236 = vmatpush.msra.mxu0 %v165
    %2237 = vmatmul.f32.gmra.mxu0 %v2180
    %v2238 = vpop.f32.mrf.mxu0
    %v2239 = vadd.f32 %v295, %v2238
    %2240 = vdwg.mxu0
    %2241 = vmatpush.msra.mxu0 %v289
    %2242 = vmatpush.msra.mxu0 %v285
    %2243 = vmatpush.msra.mxu0 %v281
    %2244 = vmatpush.msra.mxu0 %v277
    %2245 = vmatpush.msra.mxu0 %v273
    %2246 = vmatpush.msra.mxu0 %v269
    %2247 = vmatpush.msra.mxu0 %v265
    %2248 = vmatpush.msra.mxu0 %v261
    %2249 = vmatpush.msra.mxu0 %v257
    %2250 = vmatpush.msra.mxu0 %v253
    %2251 = vmatpush.msra.mxu0 %v249
    %2252 = vmatpush.msra.mxu0 %v245
    %2253 = vmatpush.msra.mxu0 %v241
    %2254 = vmatpush.msra.mxu0 %v237
    %2255 = vmatpush.msra.mxu0 %v233
    %2256 = vmatpush.msra.mxu0 %v229
    %2257 = vmatmul.f32.gmra.mxu0 %v2053
    %v2258 = vpop.f32.mrf.mxu0
    %v2259 = vadd.f32 %v2239, %v2258
    %2260 = vdwg.mxu0
    %2261 = vmatpush.msra.mxu0 %v226
    %2262 = vmatpush.msra.mxu0 %v222
    %2263 = vmatpush.msra.mxu0 %v218
    %2264 = vmatpush.msra.mxu0 %v214
    %2265 = vmatpush.msra.mxu0 %v210
    %2266 = vmatpush.msra.mxu0 %v206
    %2267 = vmatpush.msra.mxu0 %v202
    %2268 = vmatpush.msra.mxu0 %v198
    %2269 = vmatpush.msra.mxu0 %v194
    %2270 = vmatpush.msra.mxu0 %v190
    %2271 = vmatpush.msra.mxu0 %v186
    %2272 = vmatpush.msra.mxu0 %v182
    %2273 = vmatpush.msra.mxu0 %v178
    %2274 = vmatpush.msra.mxu0 %v174
    %2275 = vmatpush.msra.mxu0 %v170
    %2276 = vmatpush.msra.mxu0 %v166
    %2277 = vmatmul.f32.gmra.mxu0 %v2180
    %v2278 = vpop.f32.mrf.mxu0
    %v2279 = vadd.f32 %v296, %v2278
    %2280 = vdwg.mxu0
    %2281 = vmatpush.msra.mxu0 %v290
    %2282 = vmatpush.msra.mxu0 %v286
    %2283 = vmatpush.msra.mxu0 %v282
    %2284 = vmatpush.msra.mxu0 %v278
    %2285 = vmatpush.msra.mxu0 %v274
    %2286 = vmatpush.msra.mxu0 %v270
    %2287 = vmatpush.msra.mxu0 %v266
    %2288 = vmatpush.msra.mxu0 %v262
    %2289 = vmatpush.msra.mxu0 %v258
    %2290 = vmatpush.msra.mxu0 %v254
    %2291 = vmatpush.msra.mxu0 %v250
    %2292 = vmatpush.msra.mxu0 %v246
    %2293 = vmatpush.msra.mxu0 %v242
    %2294 = vmatpush.msra.mxu0 %v238
    %2295 = vmatpush.msra.mxu0 %v234
    %2296 = vmatpush.msra.mxu0 %v230
    %2297 = vmatmul.f32.gmra.mxu0 %v2053
    %v2298 = vpop.f32.mrf.mxu0
    %v2299 = vadd.f32 %v2279, %v2298
    %2300 = vdwg.mxu0
    %2301 = vmatpush.msra.mxu0 %v227
    %2302 = vmatpush.msra.mxu0 %v223
    %2303 = vmatpush.msra.mxu0 %v219
    %2304 = vmatpush.msra.mxu0 %v215
    %2305 = vmatpush.msra.mxu0 %v211
    %2306 = vmatpush.msra.mxu0 %v207
    %2307 = vmatpush.msra.mxu0 %v203
    %2308 = vmatpush.msra.mxu0 %v199
    %2309 = vmatpush.msra.mxu0 %v195
    %2310 = vmatpush.msra.mxu0 %v191
    %2311 = vmatpush.msra.mxu0 %v187
    %2312 = vmatpush.msra.mxu0 %v183
    %2313 = vmatpush.msra.mxu0 %v179
    %2314 = vmatpush.msra.mxu0 %v175
    %2315 = vmatpush.msra.mxu0 %v171
    %2316 = vmatpush.msra.mxu0 %v167
    %2317 = vmatmul.f32.gmra.mxu0 %v2180
    %v2318 = vpop.f32.mrf.mxu0
    %v2319 = vadd.f32 %v297, %v2318
    %2320 = vdwg.mxu0
    %2321 = vmatpush.msra.mxu0 %v291
    %2322 = vmatpush.msra.mxu0 %v287
    %2323 = vmatpush.msra.mxu0 %v283
    %2324 = vmatpush.msra.mxu0 %v279
    %2325 = vmatpush.msra.mxu0 %v275
    %2326 = vmatpush.msra.mxu0 %v271
    %2327 = vmatpush.msra.mxu0 %v267
    %2328 = vmatpush.msra.mxu0 %v263
    %2329 = vmatpush.msra.mxu0 %v259
    %2330 = vmatpush.msra.mxu0 %v255
    %2331 = vmatpush.msra.mxu0 %v251
    %2332 = vmatpush.msra.mxu0 %v247
    %2333 = vmatpush.msra.mxu0 %v243
    %2334 = vmatpush.msra.mxu0 %v239
    %2335 = vmatpush.msra.mxu0 %v235
    %2336 = vmatpush.msra.mxu0 %v231
    %2337 = vmatmul.f32.gmra.mxu0 %v2053
    %v2338 = vpop.f32.mrf.mxu0
    %v2339 = vadd.f32 %v2319, %v2338
    %2340 = vdwg.mxu0
    %v2341 = vxor.u32 %v2219, 2147483648
    %v2342 = vxor.u32 %v2259, 2147483648
    %v2343 = vxor.u32 %v2299, 2147483648
    %v2344 = vmul.f32 %v2341, 1.442695
    %v2345 = vpow.pop %v2344
    %v2346 = vmul.f32 %v2342, 1.442695
    %v2347 = vpow.pop %v2346
    %v2348 = vmul.f32 %v2343, 1.442695
    %v2349 = vpow.pop %v2348
    %v2350 = vadd.f32 %v2345, 1.0
    %v2351 = vadd.f32 %v2347, 1.0
    %v2352 = vadd.f32 %v2349, 1.0
    %v2353 = vrcp.pop %v2350
    %v2354 = vmul.f32 %v2350, %v2353
    %v2355 = vsub.f32 1.0, %v2354
    %v2356 = vmul.f32 %v2353, %v2355
    %v2357 = vadd.f32 %v2353, %v2356
    %vm2358 = vweird.f32 %v2350
    %vm2359 = vweird.f32 %v2353
    %vm2360 = vmor %vm2358, %vm2359
    %v2361 = vsel %vm2360, %v2353, %v2357
    %v2362 = vand.u32 2147483647, %v2350
    %vm2363 = vcmp.eq.f32.partialorder %v2362, 8.507059e+37
    %v2364 = vand.u32 %v2350, 2147483648
    %v2365 = vor.u32 1.1754944e-38, %v2364
    %v2366 = vsel %vm2363, %v2365, %v2361
    %v2367 = vmul.f32 1.0, %v2366
    %v2368 = vrcp.pop %v2351
    %v2369 = vmul.f32 %v2351, %v2368
    %v2370 = vsub.f32 1.0, %v2369
    %v2371 = vmul.f32 %v2368, %v2370
    %v2372 = vadd.f32 %v2368, %v2371
    %vm2373 = vweird.f32 %v2351
    %vm2374 = vweird.f32 %v2368
    %vm2375 = vmor %vm2373, %vm2374
    %v2376 = vsel %vm2375, %v2368, %v2372
    %v2377 = vand.u32 2147483647, %v2351
    %vm2378 = vcmp.eq.f32.partialorder %v2377, 8.507059e+37
    %v2379 = vand.u32 %v2351, 2147483648
    %v2380 = vor.u32 1.1754944e-38, %v2379
    %v2381 = vsel %vm2378, %v2380, %v2376
    %v2382 = vmul.f32 1.0, %v2381
    %v2383 = vrcp.pop %v2352
    %v2384 = vmul.f32 %v2352, %v2383
    %v2385 = vsub.f32 1.0, %v2384
    %v2386 = vmul.f32 %v2383, %v2385
    %v2387 = vadd.f32 %v2383, %v2386
    %vm2388 = vweird.f32 %v2352
    %vm2389 = vweird.f32 %v2383
    %vm2390 = vmor %vm2388, %vm2389
    %v2391 = vsel %vm2390, %v2383, %v2387
    %v2392 = vand.u32 2147483647, %v2352
    %vm2393 = vcmp.eq.f32.partialorder %v2392, 8.507059e+37
    %v2394 = vand.u32 %v2352, 2147483648
    %v2395 = vor.u32 1.1754944e-38, %v2394
    %v2396 = vsel %vm2393, %v2395, %v2391
    %v2397 = vmul.f32 1.0, %v2396
    %v2398 = vtanh.pop %v2339
    %v2399 = vmul.f32 %v2382, %v2051
    %v2400 = vmul.f32 %v2367, %v2398
    %v2401 = vadd.f32 %v2399, %v2400
    %v2402 = vtanh.pop %v2401
    %v2403 = vmul.f32 %v2397, %v2402
    %s2404 = scalar_lea.vmem [#allocation2], 48
    %v2405 = vld [vmem:[%s2404] sm:$0xff]
    %2406 = vmatpush.msra.mxu0 %v160
    %2407 = vmatpush.msra.mxu0 %v156
    %2408 = vmatpush.msra.mxu0 %v152
    %2409 = vmatpush.msra.mxu0 %v148
    %2410 = vmatpush.msra.mxu0 %v144
    %2411 = vmatpush.msra.mxu0 %v140
    %2412 = vmatpush.msra.mxu0 %v136
    %2413 = vmatpush.msra.mxu0 %v132
    %2414 = vmatpush.msra.mxu0 %v128
    %2415 = vmatpush.msra.mxu0 %v124
    %2416 = vmatpush.msra.mxu0 %v120
    %2417 = vmatpush.msra.mxu0 %v116
    %2418 = vmatpush.msra.mxu0 %v112
    %2419 = vmatpush.msra.mxu0 %v108
    %2420 = vmatpush.msra.mxu0 %v104
    %2421 = vmatpush.msra.mxu0 %v100
    %2422 = vmatmul.f32.gmra.mxu0 %v2180
    %v2423 = vpop.f32.mrf.mxu0
    %v2424 = vadd.f32 0.0, %v2423
    %2425 = vdwg.mxu0
    %2426 = vmatpush.msra.mxu0 %v161
    %2427 = vmatpush.msra.mxu0 %v157
    %2428 = vmatpush.msra.mxu0 %v153
    %2429 = vmatpush.msra.mxu0 %v149
    %2430 = vmatpush.msra.mxu0 %v145
    %2431 = vmatpush.msra.mxu0 %v141
    %2432 = vmatpush.msra.mxu0 %v137
    %2433 = vmatpush.msra.mxu0 %v133
    %2434 = vmatpush.msra.mxu0 %v129
    %2435 = vmatpush.msra.mxu0 %v125
    %2436 = vmatpush.msra.mxu0 %v121
    %2437 = vmatpush.msra.mxu0 %v117
    %2438 = vmatpush.msra.mxu0 %v113
    %2439 = vmatpush.msra.mxu0 %v109
    %2440 = vmatpush.msra.mxu0 %v105
    %2441 = vmatpush.msra.mxu0 %v101
    %2442 = vmatmul.f32.gmra.mxu0 %v2180
    %v2443 = vpop.f32.mrf.mxu0
    %v2444 = vadd.f32 0.0, %v2443
    %2445 = vdwg.mxu0
    %2446 = vmatpush.msra.mxu0 %v162
    %2447 = vmatpush.msra.mxu0 %v158
    %2448 = vmatpush.msra.mxu0 %v154
    %2449 = vmatpush.msra.mxu0 %v150
    %2450 = vmatpush.msra.mxu0 %v146
    %2451 = vmatpush.msra.mxu0 %v142
    %2452 = vmatpush.msra.mxu0 %v138
    %2453 = vmatpush.msra.mxu0 %v134
    %2454 = vmatpush.msra.mxu0 %v130
    %2455 = vmatpush.msra.mxu0 %v126
    %2456 = vmatpush.msra.mxu0 %v122
    %2457 = vmatpush.msra.mxu0 %v118
    %2458 = vmatpush.msra.mxu0 %v114
    %2459 = vmatpush.msra.mxu0 %v110
    %2460 = vmatpush.msra.mxu0 %v106
    %2461 = vmatpush.msra.mxu0 %v102
    %2462 = vmatmul.f32.gmra.mxu0 %v2180
    %v2463 = vpop.f32.mrf.mxu0
    %v2464 = vadd.f32 0.0, %v2463
    %2465 = vdwg.mxu0
    %2466 = vmatpush.msra.mxu0 %v163
    %2467 = vmatpush.msra.mxu0 %v159
    %2468 = vmatpush.msra.mxu0 %v155
    %2469 = vmatpush.msra.mxu0 %v151
    %2470 = vmatpush.msra.mxu0 %v147
    %2471 = vmatpush.msra.mxu0 %v143
    %2472 = vmatpush.msra.mxu0 %v139
    %2473 = vmatpush.msra.mxu0 %v135
    %2474 = vmatpush.msra.mxu0 %v131
    %2475 = vmatpush.msra.mxu0 %v127
    %2476 = vmatpush.msra.mxu0 %v123
    %2477 = vmatpush.msra.mxu0 %v119
    %2478 = vmatpush.msra.mxu0 %v115
    %2479 = vmatpush.msra.mxu0 %v111
    %2480 = vmatpush.msra.mxu0 %v107
    %2481 = vmatpush.msra.mxu0 %v103
    %2482 = vmatmul.f32.gmra.mxu0 %v2180
    %v2483 = vpop.f32.mrf.mxu0
    %v2484 = vadd.f32 0.0, %v2483
    %2485 = vdwg.mxu0
    %v2490 = vrot.slane %v2444, 6
    %v2491 = vrot.slane %v2464, 4
    %v2492 = vrot.slane %v2484, 2
    %v2493 = vsel %vm390, %v2424, %v2490
    %v2494 = vsel %vm392, %v2491, %v2492
    %v2495 = vsel %vm394, %v2493, %v2494
    %v2497 = vadd.f32 %v2405, %v2495
    %v2498 = vxor.u32 %v2497, 2147483648
    %v2499 = vmul.f32 %v2498, 1.442695
    %v2500 = vpow.pop %v2499
    %v2501 = vadd.f32 %v2500, 1.0
    %v2502 = vrcp.pop %v2501
    %v2503 = vmul.f32 %v2501, %v2502
    %v2504 = vsub.f32 1.0, %v2503
    %v2505 = vmul.f32 %v2502, %v2504
    %v2506 = vadd.f32 %v2502, %v2505
    %vm2507 = vweird.f32 %v2501
    %vm2508 = vweird.f32 %v2502
    %vm2509 = vmor %vm2507, %vm2508
    %v2510 = vsel %vm2509, %v2502, %v2506
    %v2511 = vand.u32 2147483647, %v2501
    %vm2512 = vcmp.eq.f32.partialorder %v2511, 8.507059e+37
    %v2513 = vand.u32 %v2501, 2147483648
    %v2514 = vor.u32 1.1754944e-38, %v2513
    %v2515 = vsel %vm2512, %v2514, %v2510
    %v2516 = vmul.f32 1.0, %v2515
    %v2518 = vrot.slane %v2497, 6
    %v2520 = vtanh.pop %v2518
    %v2522 = vrot.slane %v2516, 2
    %v2524 = vmul.f32 %v2522, %v2176
    %v2525 = vmul.f32 %v2516, %v2520
    %v2526 = vadd.f32 %v2524, %v2525
    %v2527 = vtanh.pop %v2526
    %v2528 = vrot.slane %v2516, 4
    %v2530 = vmul.f32 %v2528, %v2527
    %2531 = vmatpush.msra.mxu0 %v224
    %2532 = vmatpush.msra.mxu0 %v220
    %2533 = vmatpush.msra.mxu0 %v216
    %2534 = vmatpush.msra.mxu0 %v212
    %2535 = vmatpush.msra.mxu0 %v208
    %2536 = vmatpush.msra.mxu0 %v204
    %2537 = vmatpush.msra.mxu0 %v200
    %2538 = vmatpush.msra.mxu0 %v196
    %2539 = vmatpush.msra.mxu0 %v192
    %2540 = vmatpush.msra.mxu0 %v188
    %2541 = vmatpush.msra.mxu0 %v184
    %2542 = vmatpush.msra.mxu0 %v180
    %2543 = vmatpush.msra.mxu0 %v176
    %2544 = vmatpush.msra.mxu0 %v172
    %2545 = vmatpush.msra.mxu0 %v168
    %2546 = vmatpush.msra.mxu0 %v164
    %2547 = vmatmul.f32.gmra.mxu0 %v2530
    %v2548 = vpop.f32.mrf.mxu0
    %v2549 = vadd.f32 %v294, %v2548
    %2550 = vdwg.mxu0
    %2551 = vmatpush.msra.mxu0 %v288
    %2552 = vmatpush.msra.mxu0 %v284
    %2553 = vmatpush.msra.mxu0 %v280
    %2554 = vmatpush.msra.mxu0 %v276
    %2555 = vmatpush.msra.mxu0 %v272
    %2556 = vmatpush.msra.mxu0 %v268
    %2557 = vmatpush.msra.mxu0 %v264
    %2558 = vmatpush.msra.mxu0 %v260
    %2559 = vmatpush.msra.mxu0 %v256
    %2560 = vmatpush.msra.mxu0 %v252
    %2561 = vmatpush.msra.mxu0 %v248
    %2562 = vmatpush.msra.mxu0 %v244
    %2563 = vmatpush.msra.mxu0 %v240
    %2564 = vmatpush.msra.mxu0 %v236
    %2565 = vmatpush.msra.mxu0 %v232
    %2566 = vmatpush.msra.mxu0 %v228
    %2567 = vmatmul.f32.gmra.mxu0 %v2403
    %v2568 = vpop.f32.mrf.mxu0
    %v2569 = vadd.f32 %v2549, %v2568
    %2570 = vdwg.mxu0
    %2571 = vmatpush.msra.mxu0 %v225
    %2572 = vmatpush.msra.mxu0 %v221
    %2573 = vmatpush.msra.mxu0 %v217
    %2574 = vmatpush.msra.mxu0 %v213
    %2575 = vmatpush.msra.mxu0 %v209
    %2576 = vmatpush.msra.mxu0 %v205
    %2577 = vmatpush.msra.mxu0 %v201
    %2578 = vmatpush.msra.mxu0 %v197
    %2579 = vmatpush.msra.mxu0 %v193
    %2580 = vmatpush.msra.mxu0 %v189
    %2581 = vmatpush.msra.mxu0 %v185
    %2582 = vmatpush.msra.mxu0 %v181
    %2583 = vmatpush.msra.mxu0 %v177
    %2584 = vmatpush.msra.mxu0 %v173
    %2585 = vmatpush.msra.mxu0 %v169
    %2586 = vmatpush.msra.mxu0 %v165
    %2587 = vmatmul.f32.gmra.mxu0 %v2530
    %v2588 = vpop.f32.mrf.mxu0
    %v2589 = vadd.f32 %v295, %v2588
    %2590 = vdwg.mxu0
    %2591 = vmatpush.msra.mxu0 %v289
    %2592 = vmatpush.msra.mxu0 %v285
    %2593 = vmatpush.msra.mxu0 %v281
    %2594 = vmatpush.msra.mxu0 %v277
    %2595 = vmatpush.msra.mxu0 %v273
    %2596 = vmatpush.msra.mxu0 %v269
    %2597 = vmatpush.msra.mxu0 %v265
    %2598 = vmatpush.msra.mxu0 %v261
    %2599 = vmatpush.msra.mxu0 %v257
    %2600 = vmatpush.msra.mxu0 %v253
    %2601 = vmatpush.msra.mxu0 %v249
    %2602 = vmatpush.msra.mxu0 %v245
    %2603 = vmatpush.msra.mxu0 %v241
    %2604 = vmatpush.msra.mxu0 %v237
    %2605 = vmatpush.msra.mxu0 %v233
    %2606 = vmatpush.msra.mxu0 %v229
    %2607 = vmatmul.f32.gmra.mxu0 %v2403
    %v2608 = vpop.f32.mrf.mxu0
    %v2609 = vadd.f32 %v2589, %v2608
    %2610 = vdwg.mxu0
    %2611 = vmatpush.msra.mxu0 %v226
    %2612 = vmatpush.msra.mxu0 %v222
    %2613 = vmatpush.msra.mxu0 %v218
    %2614 = vmatpush.msra.mxu0 %v214
    %2615 = vmatpush.msra.mxu0 %v210
    %2616 = vmatpush.msra.mxu0 %v206
    %2617 = vmatpush.msra.mxu0 %v202
    %2618 = vmatpush.msra.mxu0 %v198
    %2619 = vmatpush.msra.mxu0 %v194
    %2620 = vmatpush.msra.mxu0 %v190
    %2621 = vmatpush.msra.mxu0 %v186
    %2622 = vmatpush.msra.mxu0 %v182
    %2623 = vmatpush.msra.mxu0 %v178
    %2624 = vmatpush.msra.mxu0 %v174
    %2625 = vmatpush.msra.mxu0 %v170
    %2626 = vmatpush.msra.mxu0 %v166
    %2627 = vmatmul.f32.gmra.mxu0 %v2530
    %v2628 = vpop.f32.mrf.mxu0
    %v2629 = vadd.f32 %v296, %v2628
    %2630 = vdwg.mxu0
    %2631 = vmatpush.msra.mxu0 %v290
    %2632 = vmatpush.msra.mxu0 %v286
    %2633 = vmatpush.msra.mxu0 %v282
    %2634 = vmatpush.msra.mxu0 %v278
    %2635 = vmatpush.msra.mxu0 %v274
    %2636 = vmatpush.msra.mxu0 %v270
    %2637 = vmatpush.msra.mxu0 %v266
    %2638 = vmatpush.msra.mxu0 %v262
    %2639 = vmatpush.msra.mxu0 %v258
    %2640 = vmatpush.msra.mxu0 %v254
    %2641 = vmatpush.msra.mxu0 %v250
    %2642 = vmatpush.msra.mxu0 %v246
    %2643 = vmatpush.msra.mxu0 %v242
    %2644 = vmatpush.msra.mxu0 %v238
    %2645 = vmatpush.msra.mxu0 %v234
    %2646 = vmatpush.msra.mxu0 %v230
    %2647 = vmatmul.f32.gmra.mxu0 %v2403
    %v2648 = vpop.f32.mrf.mxu0
    %v2649 = vadd.f32 %v2629, %v2648
    %2650 = vdwg.mxu0
    %2651 = vmatpush.msra.mxu0 %v227
    %2652 = vmatpush.msra.mxu0 %v223
    %2653 = vmatpush.msra.mxu0 %v219
    %2654 = vmatpush.msra.mxu0 %v215
    %2655 = vmatpush.msra.mxu0 %v211
    %2656 = vmatpush.msra.mxu0 %v207
    %2657 = vmatpush.msra.mxu0 %v203
    %2658 = vmatpush.msra.mxu0 %v199
    %2659 = vmatpush.msra.mxu0 %v195
    %2660 = vmatpush.msra.mxu0 %v191
    %2661 = vmatpush.msra.mxu0 %v187
    %2662 = vmatpush.msra.mxu0 %v183
    %2663 = vmatpush.msra.mxu0 %v179
    %2664 = vmatpush.msra.mxu0 %v175
    %2665 = vmatpush.msra.mxu0 %v171
    %2666 = vmatpush.msra.mxu0 %v167
    %2667 = vmatmul.f32.gmra.mxu0 %v2530
    %v2668 = vpop.f32.mrf.mxu0
    %v2669 = vadd.f32 %v297, %v2668
    %2670 = vdwg.mxu0
    %2671 = vmatpush.msra.mxu0 %v291
    %2672 = vmatpush.msra.mxu0 %v287
    %2673 = vmatpush.msra.mxu0 %v283
    %2674 = vmatpush.msra.mxu0 %v279
    %2675 = vmatpush.msra.mxu0 %v275
    %2676 = vmatpush.msra.mxu0 %v271
    %2677 = vmatpush.msra.mxu0 %v267
    %2678 = vmatpush.msra.mxu0 %v263
    %2679 = vmatpush.msra.mxu0 %v259
    %2680 = vmatpush.msra.mxu0 %v255
    %2681 = vmatpush.msra.mxu0 %v251
    %2682 = vmatpush.msra.mxu0 %v247
    %2683 = vmatpush.msra.mxu0 %v243
    %2684 = vmatpush.msra.mxu0 %v239
    %2685 = vmatpush.msra.mxu0 %v235
    %2686 = vmatpush.msra.mxu0 %v231
    %2687 = vmatmul.f32.gmra.mxu0 %v2403
    %v2688 = vpop.f32.mrf.mxu0
    %v2689 = vadd.f32 %v2669, %v2688
    %2690 = vdwg.mxu0
    %v2691 = vxor.u32 %v2569, 2147483648
    %v2692 = vxor.u32 %v2609, 2147483648
    %v2693 = vxor.u32 %v2649, 2147483648
    %v2694 = vmul.f32 %v2691, 1.442695
    %v2695 = vpow.pop %v2694
    %v2696 = vmul.f32 %v2692, 1.442695
    %v2697 = vpow.pop %v2696
    %v2698 = vmul.f32 %v2693, 1.442695
    %v2699 = vpow.pop %v2698
    %v2700 = vadd.f32 %v2695, 1.0
    %v2701 = vadd.f32 %v2697, 1.0
    %v2702 = vadd.f32 %v2699, 1.0
    %v2703 = vrcp.pop %v2700
    %v2704 = vmul.f32 %v2700, %v2703
    %v2705 = vsub.f32 1.0, %v2704
    %v2706 = vmul.f32 %v2703, %v2705
    %v2707 = vadd.f32 %v2703, %v2706
    %vm2708 = vweird.f32 %v2700
    %vm2709 = vweird.f32 %v2703
    %vm2710 = vmor %vm2708, %vm2709
    %v2711 = vsel %vm2710, %v2703, %v2707
    %v2712 = vand.u32 2147483647, %v2700
    %vm2713 = vcmp.eq.f32.partialorder %v2712, 8.507059e+37
    %v2714 = vand.u32 %v2700, 2147483648
    %v2715 = vor.u32 1.1754944e-38, %v2714
    %v2716 = vsel %vm2713, %v2715, %v2711
    %v2717 = vmul.f32 1.0, %v2716
    %v2718 = vrcp.pop %v2701
    %v2719 = vmul.f32 %v2701, %v2718
    %v2720 = vsub.f32 1.0, %v2719
    %v2721 = vmul.f32 %v2718, %v2720
    %v2722 = vadd.f32 %v2718, %v2721
    %vm2723 = vweird.f32 %v2701
    %vm2724 = vweird.f32 %v2718
    %vm2725 = vmor %vm2723, %vm2724
    %v2726 = vsel %vm2725, %v2718, %v2722
    %v2727 = vand.u32 2147483647, %v2701
    %vm2728 = vcmp.eq.f32.partialorder %v2727, 8.507059e+37
    %v2729 = vand.u32 %v2701, 2147483648
    %v2730 = vor.u32 1.1754944e-38, %v2729
    %v2731 = vsel %vm2728, %v2730, %v2726
    %v2732 = vmul.f32 1.0, %v2731
    %v2733 = vrcp.pop %v2702
    %v2734 = vmul.f32 %v2702, %v2733
    %v2735 = vsub.f32 1.0, %v2734
    %v2736 = vmul.f32 %v2733, %v2735
    %v2737 = vadd.f32 %v2733, %v2736
    %vm2738 = vweird.f32 %v2702
    %vm2739 = vweird.f32 %v2733
    %vm2740 = vmor %vm2738, %vm2739
    %v2741 = vsel %vm2740, %v2733, %v2737
    %v2742 = vand.u32 2147483647, %v2702
    %vm2743 = vcmp.eq.f32.partialorder %v2742, 8.507059e+37
    %v2744 = vand.u32 %v2702, 2147483648
    %v2745 = vor.u32 1.1754944e-38, %v2744
    %v2746 = vsel %vm2743, %v2745, %v2741
    %v2747 = vmul.f32 1.0, %v2746
    %v2748 = vtanh.pop %v2689
    %v2749 = vmul.f32 %v2732, %v2401
    %v2750 = vmul.f32 %v2717, %v2748
    %v2751 = vadd.f32 %v2749, %v2750
    %v2752 = vtanh.pop %v2751
    %v2753 = vmul.f32 %v2747, %v2752
    %s2754 = scalar_lea.vmem [#allocation2], 56
    %v2755 = vld [vmem:[%s2754] sm:$0xff]
    %2756 = vmatpush.msra.mxu0 %v160
    %2757 = vmatpush.msra.mxu0 %v156
    %2758 = vmatpush.msra.mxu0 %v152
    %2759 = vmatpush.msra.mxu0 %v148
    %2760 = vmatpush.msra.mxu0 %v144
    %2761 = vmatpush.msra.mxu0 %v140
    %2762 = vmatpush.msra.mxu0 %v136
    %2763 = vmatpush.msra.mxu0 %v132
    %2764 = vmatpush.msra.mxu0 %v128
    %2765 = vmatpush.msra.mxu0 %v124
    %2766 = vmatpush.msra.mxu0 %v120
    %2767 = vmatpush.msra.mxu0 %v116
    %2768 = vmatpush.msra.mxu0 %v112
    %2769 = vmatpush.msra.mxu0 %v108
    %2770 = vmatpush.msra.mxu0 %v104
    %2771 = vmatpush.msra.mxu0 %v100
    %2772 = vmatmul.f32.gmra.mxu0 %v2530
    %v2773 = vpop.f32.mrf.mxu0
    %v2774 = vadd.f32 0.0, %v2773
    %2775 = vdwg.mxu0
    %2776 = vmatpush.msra.mxu0 %v161
    %2777 = vmatpush.msra.mxu0 %v157
    %2778 = vmatpush.msra.mxu0 %v153
    %2779 = vmatpush.msra.mxu0 %v149
    %2780 = vmatpush.msra.mxu0 %v145
    %2781 = vmatpush.msra.mxu0 %v141
    %2782 = vmatpush.msra.mxu0 %v137
    %2783 = vmatpush.msra.mxu0 %v133
    %2784 = vmatpush.msra.mxu0 %v129
    %2785 = vmatpush.msra.mxu0 %v125
    %2786 = vmatpush.msra.mxu0 %v121
    %2787 = vmatpush.msra.mxu0 %v117
    %2788 = vmatpush.msra.mxu0 %v113
    %2789 = vmatpush.msra.mxu0 %v109
    %2790 = vmatpush.msra.mxu0 %v105
    %2791 = vmatpush.msra.mxu0 %v101
    %2792 = vmatmul.f32.gmra.mxu0 %v2530
    %v2793 = vpop.f32.mrf.mxu0
    %v2794 = vadd.f32 0.0, %v2793
    %2795 = vdwg.mxu0
    %2796 = vmatpush.msra.mxu0 %v162
    %2797 = vmatpush.msra.mxu0 %v158
    %2798 = vmatpush.msra.mxu0 %v154
    %2799 = vmatpush.msra.mxu0 %v150
    %2800 = vmatpush.msra.mxu0 %v146
    %2801 = vmatpush.msra.mxu0 %v142
    %2802 = vmatpush.msra.mxu0 %v138
    %2803 = vmatpush.msra.mxu0 %v134
    %2804 = vmatpush.msra.mxu0 %v130
    %2805 = vmatpush.msra.mxu0 %v126
    %2806 = vmatpush.msra.mxu0 %v122
    %2807 = vmatpush.msra.mxu0 %v118
    %2808 = vmatpush.msra.mxu0 %v114
    %2809 = vmatpush.msra.mxu0 %v110
    %2810 = vmatpush.msra.mxu0 %v106
    %2811 = vmatpush.msra.mxu0 %v102
    %2812 = vmatmul.f32.gmra.mxu0 %v2530
    %v2813 = vpop.f32.mrf.mxu0
    %v2814 = vadd.f32 0.0, %v2813
    %2815 = vdwg.mxu0
    %2816 = vmatpush.msra.mxu0 %v163
    %2817 = vmatpush.msra.mxu0 %v159
    %2818 = vmatpush.msra.mxu0 %v155
    %2819 = vmatpush.msra.mxu0 %v151
    %2820 = vmatpush.msra.mxu0 %v147
    %2821 = vmatpush.msra.mxu0 %v143
    %2822 = vmatpush.msra.mxu0 %v139
    %2823 = vmatpush.msra.mxu0 %v135
    %2824 = vmatpush.msra.mxu0 %v131
    %2825 = vmatpush.msra.mxu0 %v127
    %2826 = vmatpush.msra.mxu0 %v123
    %2827 = vmatpush.msra.mxu0 %v119
    %2828 = vmatpush.msra.mxu0 %v115
    %2829 = vmatpush.msra.mxu0 %v111
    %2830 = vmatpush.msra.mxu0 %v107
    %2831 = vmatpush.msra.mxu0 %v103
    %2832 = vmatmul.f32.gmra.mxu0 %v2530
    %v2833 = vpop.f32.mrf.mxu0
    %v2834 = vadd.f32 0.0, %v2833
    %2835 = vdwg.mxu0
    %v2840 = vrot.slane %v2794, 6
    %v2841 = vrot.slane %v2814, 4
    %v2842 = vrot.slane %v2834, 2
    %v2843 = vsel %vm390, %v2774, %v2840
    %v2844 = vsel %vm392, %v2841, %v2842
    %v2845 = vsel %vm394, %v2843, %v2844
    %v2847 = vadd.f32 %v2755, %v2845
    %v2848 = vxor.u32 %v2847, 2147483648
    %v2849 = vmul.f32 %v2848, 1.442695
    %v2850 = vpow.pop %v2849
    %v2851 = vadd.f32 %v2850, 1.0
    %v2852 = vrcp.pop %v2851
    %v2853 = vmul.f32 %v2851, %v2852
    %v2854 = vsub.f32 1.0, %v2853
    %v2855 = vmul.f32 %v2852, %v2854
    %v2856 = vadd.f32 %v2852, %v2855
    %vm2857 = vweird.f32 %v2851
    %vm2858 = vweird.f32 %v2852
    %vm2859 = vmor %vm2857, %vm2858
    %v2860 = vsel %vm2859, %v2852, %v2856
    %v2861 = vand.u32 2147483647, %v2851
    %vm2862 = vcmp.eq.f32.partialorder %v2861, 8.507059e+37
    %v2863 = vand.u32 %v2851, 2147483648
    %v2864 = vor.u32 1.1754944e-38, %v2863
    %v2865 = vsel %vm2862, %v2864, %v2860
    %v2866 = vmul.f32 1.0, %v2865
    %v2868 = vrot.slane %v2847, 6
    %v2870 = vtanh.pop %v2868
    %v2872 = vrot.slane %v2866, 2
    %v2874 = vmul.f32 %v2872, %v2526
    %v2875 = vmul.f32 %v2866, %v2870
    %v2876 = vadd.f32 %v2874, %v2875
    %v2877 = vtanh.pop %v2876
    %v2878 = vrot.slane %v2866, 4
    %v2880 = vmul.f32 %v2878, %v2877
    %2881 = vmatpush.msra.mxu0 %v224
    %2882 = vmatpush.msra.mxu0 %v220
    %2883 = vmatpush.msra.mxu0 %v216
    %2884 = vmatpush.msra.mxu0 %v212
    %2885 = vmatpush.msra.mxu0 %v208
    %2886 = vmatpush.msra.mxu0 %v204
    %2887 = vmatpush.msra.mxu0 %v200
    %2888 = vmatpush.msra.mxu0 %v196
    %2889 = vmatpush.msra.mxu0 %v192
    %2890 = vmatpush.msra.mxu0 %v188
    %2891 = vmatpush.msra.mxu0 %v184
    %2892 = vmatpush.msra.mxu0 %v180
    %2893 = vmatpush.msra.mxu0 %v176
    %2894 = vmatpush.msra.mxu0 %v172
    %2895 = vmatpush.msra.mxu0 %v168
    %2896 = vmatpush.msra.mxu0 %v164
    %2897 = vmatmul.f32.gmra.mxu0 %v2880
    %v2898 = vpop.f32.mrf.mxu0
    %v2899 = vadd.f32 %v294, %v2898
    %2900 = vdwg.mxu0
    %2901 = vmatpush.msra.mxu0 %v288
    %2902 = vmatpush.msra.mxu0 %v284
    %2903 = vmatpush.msra.mxu0 %v280
    %2904 = vmatpush.msra.mxu0 %v276
    %2905 = vmatpush.msra.mxu0 %v272
    %2906 = vmatpush.msra.mxu0 %v268
    %2907 = vmatpush.msra.mxu0 %v264
    %2908 = vmatpush.msra.mxu0 %v260
    %2909 = vmatpush.msra.mxu0 %v256
    %2910 = vmatpush.msra.mxu0 %v252
    %2911 = vmatpush.msra.mxu0 %v248
    %2912 = vmatpush.msra.mxu0 %v244
    %2913 = vmatpush.msra.mxu0 %v240
    %2914 = vmatpush.msra.mxu0 %v236
    %2915 = vmatpush.msra.mxu0 %v232
    %2916 = vmatpush.msra.mxu0 %v228
    %2917 = vmatmul.f32.gmra.mxu0 %v2753
    %v2918 = vpop.f32.mrf.mxu0
    %v2919 = vadd.f32 %v2899, %v2918
    %2920 = vdwg.mxu0
    %2921 = vmatpush.msra.mxu0 %v225
    %2922 = vmatpush.msra.mxu0 %v221
    %2923 = vmatpush.msra.mxu0 %v217
    %2924 = vmatpush.msra.mxu0 %v213
    %2925 = vmatpush.msra.mxu0 %v209
    %2926 = vmatpush.msra.mxu0 %v205
    %2927 = vmatpush.msra.mxu0 %v201
    %2928 = vmatpush.msra.mxu0 %v197
    %2929 = vmatpush.msra.mxu0 %v193
    %2930 = vmatpush.msra.mxu0 %v189
    %2931 = vmatpush.msra.mxu0 %v185
    %2932 = vmatpush.msra.mxu0 %v181
    %2933 = vmatpush.msra.mxu0 %v177
    %2934 = vmatpush.msra.mxu0 %v173
    %2935 = vmatpush.msra.mxu0 %v169
    %2936 = vmatpush.msra.mxu0 %v165
    %2937 = vmatmul.f32.gmra.mxu0 %v2880
    %v2938 = vpop.f32.mrf.mxu0
    %v2939 = vadd.f32 %v295, %v2938
    %2940 = vdwg.mxu0
    %2941 = vmatpush.msra.mxu0 %v289
    %2942 = vmatpush.msra.mxu0 %v285
    %2943 = vmatpush.msra.mxu0 %v281
    %2944 = vmatpush.msra.mxu0 %v277
    %2945 = vmatpush.msra.mxu0 %v273
    %2946 = vmatpush.msra.mxu0 %v269
    %2947 = vmatpush.msra.mxu0 %v265
    %2948 = vmatpush.msra.mxu0 %v261
    %2949 = vmatpush.msra.mxu0 %v257
    %2950 = vmatpush.msra.mxu0 %v253
    %2951 = vmatpush.msra.mxu0 %v249
    %2952 = vmatpush.msra.mxu0 %v245
    %2953 = vmatpush.msra.mxu0 %v241
    %2954 = vmatpush.msra.mxu0 %v237
    %2955 = vmatpush.msra.mxu0 %v233
    %2956 = vmatpush.msra.mxu0 %v229
    %2957 = vmatmul.f32.gmra.mxu0 %v2753
    %v2958 = vpop.f32.mrf.mxu0
    %v2959 = vadd.f32 %v2939, %v2958
    %2960 = vdwg.mxu0
    %2961 = vmatpush.msra.mxu0 %v226
    %2962 = vmatpush.msra.mxu0 %v222
    %2963 = vmatpush.msra.mxu0 %v218
    %2964 = vmatpush.msra.mxu0 %v214
    %2965 = vmatpush.msra.mxu0 %v210
    %2966 = vmatpush.msra.mxu0 %v206
    %2967 = vmatpush.msra.mxu0 %v202
    %2968 = vmatpush.msra.mxu0 %v198
    %2969 = vmatpush.msra.mxu0 %v194
    %2970 = vmatpush.msra.mxu0 %v190
    %2971 = vmatpush.msra.mxu0 %v186
    %2972 = vmatpush.msra.mxu0 %v182
    %2973 = vmatpush.msra.mxu0 %v178
    %2974 = vmatpush.msra.mxu0 %v174
    %2975 = vmatpush.msra.mxu0 %v170
    %2976 = vmatpush.msra.mxu0 %v166
    %2977 = vmatmul.f32.gmra.mxu0 %v2880
    %v2978 = vpop.f32.mrf.mxu0
    %v2979 = vadd.f32 %v296, %v2978
    %2980 = vdwg.mxu0
    %2981 = vmatpush.msra.mxu0 %v290
    %2982 = vmatpush.msra.mxu0 %v286
    %2983 = vmatpush.msra.mxu0 %v282
    %2984 = vmatpush.msra.mxu0 %v278
    %2985 = vmatpush.msra.mxu0 %v274
    %2986 = vmatpush.msra.mxu0 %v270
    %2987 = vmatpush.msra.mxu0 %v266
    %2988 = vmatpush.msra.mxu0 %v262
    %2989 = vmatpush.msra.mxu0 %v258
    %2990 = vmatpush.msra.mxu0 %v254
    %2991 = vmatpush.msra.mxu0 %v250
    %2992 = vmatpush.msra.mxu0 %v246
    %2993 = vmatpush.msra.mxu0 %v242
    %2994 = vmatpush.msra.mxu0 %v238
    %2995 = vmatpush.msra.mxu0 %v234
    %2996 = vmatpush.msra.mxu0 %v230
    %2997 = vmatmul.f32.gmra.mxu0 %v2753
    %v2998 = vpop.f32.mrf.mxu0
    %v2999 = vadd.f32 %v2979, %v2998
    %3000 = vdwg.mxu0
    %3001 = vmatpush.msra.mxu0 %v227
    %3002 = vmatpush.msra.mxu0 %v223
    %3003 = vmatpush.msra.mxu0 %v219
    %3004 = vmatpush.msra.mxu0 %v215
    %3005 = vmatpush.msra.mxu0 %v211
    %3006 = vmatpush.msra.mxu0 %v207
    %3007 = vmatpush.msra.mxu0 %v203
    %3008 = vmatpush.msra.mxu0 %v199
    %3009 = vmatpush.msra.mxu0 %v195
    %3010 = vmatpush.msra.mxu0 %v191
    %3011 = vmatpush.msra.mxu0 %v187
    %3012 = vmatpush.msra.mxu0 %v183
    %3013 = vmatpush.msra.mxu0 %v179
    %3014 = vmatpush.msra.mxu0 %v175
    %3015 = vmatpush.msra.mxu0 %v171
    %3016 = vmatpush.msra.mxu0 %v167
    %3017 = vmatmul.f32.gmra.mxu0 %v2880
    %v3018 = vpop.f32.mrf.mxu0
    %v3019 = vadd.f32 %v297, %v3018
    %3020 = vdwg.mxu0
    %3021 = vmatpush.msra.mxu0 %v291
    %3022 = vmatpush.msra.mxu0 %v287
    %3023 = vmatpush.msra.mxu0 %v283
    %3024 = vmatpush.msra.mxu0 %v279
    %3025 = vmatpush.msra.mxu0 %v275
    %3026 = vmatpush.msra.mxu0 %v271
    %3027 = vmatpush.msra.mxu0 %v267
    %3028 = vmatpush.msra.mxu0 %v263
    %3029 = vmatpush.msra.mxu0 %v259
    %3030 = vmatpush.msra.mxu0 %v255
    %3031 = vmatpush.msra.mxu0 %v251
    %3032 = vmatpush.msra.mxu0 %v247
    %3033 = vmatpush.msra.mxu0 %v243
    %3034 = vmatpush.msra.mxu0 %v239
    %3035 = vmatpush.msra.mxu0 %v235
    %3036 = vmatpush.msra.mxu0 %v231
    %3037 = vmatmul.f32.gmra.mxu0 %v2753
    %v3038 = vpop.f32.mrf.mxu0
    %v3039 = vadd.f32 %v3019, %v3038
    %3040 = vdwg.mxu0
    %v3041 = vxor.u32 %v2919, 2147483648
    %v3042 = vxor.u32 %v2959, 2147483648
    %v3043 = vxor.u32 %v2999, 2147483648
    %v3044 = vmul.f32 %v3041, 1.442695
    %v3045 = vpow.pop %v3044
    %v3046 = vmul.f32 %v3042, 1.442695
    %v3047 = vpow.pop %v3046
    %v3048 = vmul.f32 %v3043, 1.442695
    %v3049 = vpow.pop %v3048
    %v3050 = vadd.f32 %v3045, 1.0
    %v3051 = vadd.f32 %v3047, 1.0
    %v3052 = vadd.f32 %v3049, 1.0
    %v3053 = vrcp.pop %v3050
    %v3054 = vmul.f32 %v3050, %v3053
    %v3055 = vsub.f32 1.0, %v3054
    %v3056 = vmul.f32 %v3053, %v3055
    %v3057 = vadd.f32 %v3053, %v3056
    %vm3058 = vweird.f32 %v3050
    %vm3059 = vweird.f32 %v3053
    %vm3060 = vmor %vm3058, %vm3059
    %v3061 = vsel %vm3060, %v3053, %v3057
    %v3062 = vand.u32 2147483647, %v3050
    %vm3063 = vcmp.eq.f32.partialorder %v3062, 8.507059e+37
    %v3064 = vand.u32 %v3050, 2147483648
    %v3065 = vor.u32 1.1754944e-38, %v3064
    %v3066 = vsel %vm3063, %v3065, %v3061
    %v3067 = vmul.f32 1.0, %v3066
    %v3068 = vrcp.pop %v3051
    %v3069 = vmul.f32 %v3051, %v3068
    %v3070 = vsub.f32 1.0, %v3069
    %v3071 = vmul.f32 %v3068, %v3070
    %v3072 = vadd.f32 %v3068, %v3071
    %vm3073 = vweird.f32 %v3051
    %vm3074 = vweird.f32 %v3068
    %vm3075 = vmor %vm3073, %vm3074
    %v3076 = vsel %vm3075, %v3068, %v3072
    %v3077 = vand.u32 2147483647, %v3051
    %vm3078 = vcmp.eq.f32.partialorder %v3077, 8.507059e+37
    %v3079 = vand.u32 %v3051, 2147483648
    %v3080 = vor.u32 1.1754944e-38, %v3079
    %v3081 = vsel %vm3078, %v3080, %v3076
    %v3082 = vmul.f32 1.0, %v3081
    %v3083 = vrcp.pop %v3052
    %v3084 = vmul.f32 %v3052, %v3083
    %v3085 = vsub.f32 1.0, %v3084
    %v3086 = vmul.f32 %v3083, %v3085
    %v3087 = vadd.f32 %v3083, %v3086
    %vm3088 = vweird.f32 %v3052
    %vm3089 = vweird.f32 %v3083
    %vm3090 = vmor %vm3088, %vm3089
    %v3091 = vsel %vm3090, %v3083, %v3087
    %v3092 = vand.u32 2147483647, %v3052
    %vm3093 = vcmp.eq.f32.partialorder %v3092, 8.507059e+37
    %v3094 = vand.u32 %v3052, 2147483648
    %v3095 = vor.u32 1.1754944e-38, %v3094
    %v3096 = vsel %vm3093, %v3095, %v3091
    %v3097 = vmul.f32 1.0, %v3096
    %v3098 = vtanh.pop %v3039
    %v3099 = vmul.f32 %v3082, %v2751
    %v3100 = vmul.f32 %v3067, %v3098
    %v3101 = vadd.f32 %v3099, %v3100
    %v3102 = vtanh.pop %v3101
    %v3103 = vmul.f32 %v3097, %v3102
    %v3104 = vld [vmem:[#allocation10] sm:$0xff]
    %v3105 = vld [vmem:[#allocation10 + $0x8] sm:$0xff]
    %v3106 = vld [vmem:[#allocation10 + $0x10] sm:$0xff]
    %v3107 = vld [vmem:[#allocation10 + $0x18] sm:$0xff]
    %v3108 = vld [vmem:[#allocation10 + $0x20] sm:$0xff]
    %v3109 = vld [vmem:[#allocation10 + $0x28] sm:$0xff]
    %v3110 = vld [vmem:[#allocation10 + $0x30] sm:$0xff]
    %v3111 = vld [vmem:[#allocation10 + $0x38] sm:$0xff]
    %v3112 = vld [vmem:[#allocation10 + $0x40] sm:$0xff]
    %v3113 = vld [vmem:[#allocation10 + $0x48] sm:$0xff]
    %v3114 = vld [vmem:[#allocation10 + $0x50] sm:$0xff]
    %v3115 = vld [vmem:[#allocation10 + $0x58] sm:$0xff]
    %v3116 = vld [vmem:[#allocation10 + $0x60] sm:$0xff]
    %v3117 = vld [vmem:[#allocation10 + $0x68] sm:$0xff]
    %v3118 = vld [vmem:[#allocation10 + $0x70] sm:$0xff]
    %v3119 = vld [vmem:[#allocation10 + $0x78] sm:$0xff]
    %v3120 = vld [vmem:[%s5] sm:$0x1]
    %v3122 = vperm.slane %v3120, 0
    %3124 = vmatpush.msra.mxu0 %v3119
    %3125 = vmatpush.msra.mxu0 %v3118
    %3126 = vmatpush.msra.mxu0 %v3117
    %3127 = vmatpush.msra.mxu0 %v3116
    %3128 = vmatpush.msra.mxu0 %v3115
    %3129 = vmatpush.msra.mxu0 %v3114
    %3130 = vmatpush.msra.mxu0 %v3113
    %3131 = vmatpush.msra.mxu0 %v3112
    %3132 = vmatpush.msra.mxu0 %v3111
    %3133 = vmatpush.msra.mxu0 %v3110
    %3134 = vmatpush.msra.mxu0 %v3109
    %3135 = vmatpush.msra.mxu0 %v3108
    %3136 = vmatpush.msra.mxu0 %v3107
    %3137 = vmatpush.msra.mxu0 %v3106
    %3138 = vmatpush.msra.mxu0 %v3105
    %3139 = vmatpush.msra.mxu0 %v3104
    %3140 = vmatmul.f32.gmra.mxu0 %v3103
    %v3141 = vpop.f32.mrf.mxu0
    %v3142 = vadd.f32 %v3122, %v3141
    %3143 = vdwg.mxu0
    %3144 = vst [vmem:[#allocation11] sm:$0x3] %v3142
    // Predicated region
    $region46: #{tpu_custom_call.1} parent=1 // pred_check
      _
    $region47: #{tpu_custom_call.1} parent=1 // pred_check_branch
      %3146 = sbr.rel (0) target = $region49
    $region48: #{tpu_custom_call.1} parent=1 // pred_region
      %3148 = vsyncadd [#allocation4], 0
      %s3150 = sshll.u32 [#allocation11], 4
      %s3151 = int_to_ptr.vmem [resolvable:$true] %s3150
      %s3152 = sshll.u32 %s6, 4
      %s3153 = int_to_ptr.hbm [resolvable:$true] %s3152
      %3155 = dma.vmem_to_hbm [thread:$0]  %s3151, 32, %s3153, [#allocation4]
    $region49: #{tpu_custom_call.1} parent=1 // pred_fallthru
      _
    // Predicated region
    $region50: #{tpu_custom_call.1} parent=1 // pred_check
      _
    $region51: #{tpu_custom_call.1} parent=1 // pred_check_branch
      %3157 = sbr.rel (0) target = $region53
    $region52: #{tpu_custom_call.1} parent=1 // pred_region
      %3159 = dma.done [#allocation4], 32
    $region53: #{tpu_custom_call.1} parent=1 // pred_fallthru
      _
    %3160 = vsyncpa [#allocation3], 1
    %3161 = vsyncpa [#allocation6], 1
    %3162 = vsyncpa [#allocation9], 1
    %3163 = vsyncpa [#allocation4], 1

</llo_original>
